<compile_context>
chip_gen: v7x
topology: tpu7x:2x2x1
jax: 0.10.0
libtpu: 0.0.40
codegen_flags: <defaults>
</compile_context>

<pallas_src>
import math

import numpy as np
import jax
import jax.numpy as jnp
from jax.experimental import pallas as pl
from jax.experimental.pallas import tpu as pltpu

# ----------------------------- hyper-parameters ------------------------------
BATCH = 2
CHANS = 8            # "chans" (< depth, so Align takes the zero-pad branch)
SAMPLES = 64         # "samples"
DEPTH = 16           # "depth" (channel_weight2 is hard-coded 16x16)
KERNEL = 8           # temporal kernel length
AVEPOOL = 10
NUM_CLASSES = 2
KERNEL_SET = (1, 2, 3, 5)   # DilatedInception kernel set (dilation_factor = 1)
BN_EPS = 1e-5

# ------------------------------ derived sizes --------------------------------
W_T = SAMPLES - KERNEL + 1                  # 57  temporal output width
K_MAX = max(KERNEL_SET)                     # 5
W_M = W_T - (K_MAX - 1)                     # 53  MSTE output width
POOL = AVEPOOL if W_T >= AVEPOOL else W_T   # 10
W_P = (W_T - POOL) // POOL + 1              # 5   pooled width
FEAT_DIM = DEPTH * W_P                      # 80
COMPACT = BATCH * SAMPLES                   # 128 lanes per electrode block
LANES = CHANS * COMPACT                     # 1024 total "live" lanes
ET_W = LANES + 128                          # 1152 padded Et width
BW = BATCH * W_P                            # 10  pooled lane width
CNA_H = DEPTH // 2                          # 8
OUT_ROWS = FEAT_DIM + 8                     # 88  (rows 80:82 hold the logits)
BN_K = 1.0 / math.sqrt(1.0 + BN_EPS)        # eval-mode BN fold

# ---- weight-slab (16 rows) segment offsets, each segment 128-lane aligned ----
SEG = 128
OFF_WT = 0 * SEG            # (16, 8)   temporal merged conv  (BN folded)
OFF_WS1 = 1 * SEG           # (16, 16)  spatial 1x1
OFF_WS2 = 2 * SEG           # (16, 8)   spatial depthwise-over-electrodes (BN folded)
OFF_WSK = 3 * SEG           # (16, 8)   skip0 depthwise
OFF_WM = 4 * SEG            # (16, 80)  merged MSTE weights
OFF_WCNA2 = 5 * SEG         # (16, 8)   CNA FC2
OFF_WCLS = 6 * SEG          # (2, 80)   classifier (rows 2:16 zero)
OFF_CWS = 7 * SEG           # (1, 16)   column-sum of channel_weight2
OFF_BIAS = 8 * SEG          # cols: 0 bmste, 1 bsk0, 2 bcna1(8), 3 bcna2, 4 bcls(2)
OFF_W1M1 = 9 * SEG          # (8, 1024) wcna1 x GAP-mask combined
W_SLAB_W = OFF_W1M1 + LANES         # 2176

# ---- lane-constant slab (rows, 16 cols) row offsets --------------------------
ROW_M2 = 0                          # (1024, 10) batch-select GAP matrix (W_P-replicated)
ROW_PC = LANES                      # (256, 10)  [BN_K*mres@poolm ; BN_K*poolm]
ROW_EXP = ROW_PC + 2 * COMPACT      # (80, 16)   depth -> feature expansion
ROW_PM = ROW_EXP + FEAT_DIM         # (80, 10)   feature-position mask
ROW_BS = ROW_PM + FEAT_DIM          # (10, 2)    batch selector
C_SLAB_R = ROW_BS + 16              # 1456
C_SLAB_C = 16

_SQRT1_2 = 0.7071067811865476


# --------------------------------- helpers -----------------------------------
def _gelu(x):
    # Exact (erf-based) GELU matching nn.GELU(); erf via Abramowitz-Stegun
    # 7.1.26 (~1.5e-7 abs error).  A tanh-GELU would shift results by ~1e-3,
    # so the exact form is kept to preserve the reference semantics.
    z = x * _SQRT1_2
    az = jnp.abs(z)
    t = 1.0 / (1.0 + 0.3275911 * az)
    poly = t * (0.254829592 + t * (-0.284496736 + t * (1.421413741
              + t * (-1.453152027 + t * 1.061405429))))
    erf_abs = 1.0 - poly * jnp.exp(-az * az)
    erf = jnp.where(z >= 0, erf_abs, -erf_abs)
    return 0.5 * x * (1.0 + erf)


def _bilinear_w_matrix(w_in, w_out):
    # F.interpolate(mode='bilinear', align_corners=False) along width (H: 1->1).
    j = np.arange(w_out, dtype=np.float64)
    scale = w_in / w_out
    src = np.maximum(scale * (j + 0.5) - 0.5, 0.0)
    i0 = np.clip(np.floor(src).astype(np.int64), 0, w_in - 1)
    i1 = np.where(i0 < w_in - 1, i0 + 1, i0)
    frac = src - i0
    mat = np.zeros((w_in, w_out), np.float32)
    jj = j.astype(np.int64)
    mat[i0, jj] += (1.0 - frac)
    mat[i1, jj] += frac
    return mat


# ------------------------------ fused TPU kernel ------------------------------
def _listennet_kernel(x8_ref, w_ref, c_ref, res_ref):
    f32 = jnp.float32

    # ---- temporal: one im2col MXU dot (1x1 scalar + both BN scales folded) ----
    wt8 = w_ref[:, OFF_WT:OFF_WT + KERNEL]                       # (16, 8)
    acc = jnp.dot(wt8, x8_ref[...], preferred_element_type=f32)  # (16, ET_W)
    et = _gelu(acc)                                              # valid s < W_T
    et_m = et[:, :LANES]                                         # (16, 1024)

    # ---- spatial: 1x1 conv -> depthwise over electrodes (BN scales folded) ----
    ws1 = w_ref[:, OFF_WS1:OFF_WS1 + DEPTH]
    z1 = jnp.dot(ws1, et_m, preferred_element_type=f32)          # (16, 1024)
    ws2 = w_ref[:, OFF_WS2:OFF_WS2 + CHANS]                      # (16, 8)
    es = ws2[:, 0:1] * z1[:, 0:COMPACT]
    for e in range(1, CHANS):
        es = es + ws2[:, e:e + 1] * z1[:, e * COMPACT:(e + 1) * COMPACT]
    es = _gelu(es)                                               # (16, 128)

    # ---- MSTE: 4 DilatedInception branches merged into ONE K=80 MXU dot -------
    stk = jnp.concatenate(
        [et[:, tau:tau + LANES] for tau in range(K_MAX)], axis=0)   # (80, 1024)
    wm = w_ref[:, OFF_WM:OFF_WM + K_MAX * DEPTH]                  # (16, 80)
    outu = (jnp.dot(wm, stk, preferred_element_type=f32)
            + w_ref[:, OFF_BIAS + 0:OFF_BIAS + 1])                # (16, 1024)

    # ---- skip0: depthwise over electrodes (+bias); eval dropout = identity ----
    wsk = w_ref[:, OFF_WSK:OFF_WSK + CHANS]
    skip = wsk[:, 0:1] * outu[:, 0:COMPACT]
    for e in range(1, CHANS):
        skip = skip + wsk[:, e:e + 1] * outu[:, e * COMPACT:(e + 1) * COMPACT]
    skip = skip + w_ref[:, OFF_BIAS + 1:OFF_BIAS + 2]             # (16, 128)

    # ---- bilinear resize + add Es + BN + AvgPool fused into one dot -----------
    # pooled = BN_K * (skip @ mres + es) @ poolm
    pooled = jnp.dot(jnp.concatenate([skip, es], axis=1),
                     c_ref[ROW_PC:ROW_PC + 2 * COMPACT, 0:BW],
                     preferred_element_type=f32)                  # (16, 10)

    # ---- CNA -------------------------------------------------------------------
    # TODO(synk): class `CNA` is not defined in the provided PyTorch source; we
    # keep the previously-adopted SE-style substitute: GAP(InEt) -> FC -> ReLU
    # -> FC -> sigmoid gating InEs.  m1/m2/wcna1 are pre-combined host-side.
    cws = w_ref[0:1, OFF_CWS:OFF_CWS + DEPTH]                     # (1, 16)
    v = jnp.dot(cws, et_m, preferred_element_type=f32)            # (1, 1024)
    lhs8 = w_ref[0:CNA_H, OFF_W1M1:OFF_W1M1 + LANES] * v          # (8, 1024)
    h1 = jnp.maximum(
        jnp.dot(lhs8, c_ref[ROW_M2:ROW_M2 + LANES, 0:BW],
                preferred_element_type=f32)
        + w_ref[0:CNA_H, OFF_BIAS + 2:OFF_BIAS + 3], 0.0)         # (8, 10)
    attn = jax.nn.sigmoid(
        jnp.dot(w_ref[:, OFF_WCNA2:OFF_WCNA2 + CNA_H], h1,
                preferred_element_type=f32)
        + w_ref[:, OFF_BIAS + 3:OFF_BIAS + 4])                    # (16, 10)

    # ---- gate after pooling (exact: gate is constant per pooling window) ------
    gated = attn * pooled                                         # (16, 10)

    # ---- flatten-transpose (feat) + classifier ---------------------------------
    z = jnp.dot(c_ref[ROW_EXP:ROW_EXP + FEAT_DIM, 0:DEPTH], gated,
                preferred_element_type=f32)                       # (80, 10)
    zm = z * c_ref[ROW_PM:ROW_PM + FEAT_DIM, 0:BW]
    feat_t = jnp.dot(zm, c_ref[ROW_BS:ROW_BS + BW, 0:BATCH],
                     preferred_element_type=f32)                  # (80, 2)
    wcls8 = w_ref[0:8, OFF_WCLS:OFF_WCLS + FEAT_DIM]              # (8, 80) rows>=2 zero
    logits8 = (jnp.dot(wcls8, feat_t, preferred_element_type=f32)
               + w_ref[0:8, OFF_BIAS + 4:OFF_BIAS + 5])           # (8, 2)

    res_ref[0:FEAT_DIM, :] = feat_t
    res_ref[FEAT_DIM:OUT_ROWS, :] = logits8


# --------------------------- parameter construction ---------------------------
def _xavier(key, shape):
    if len(shape) > 2:
        rec = int(np.prod(shape[2:]))
        fan_in, fan_out = shape[1] * rec, shape[0] * rec
    else:
        fan_in, fan_out = shape[1], shape[0]
    limit = math.sqrt(6.0 / (fan_in + fan_out))
    return jax.random.uniform(key, shape, jnp.float32, -limit, limit)


def init_params(key):
    keys = jax.random.split(key, 10)
    cout1 = DEPTH // len(KERNEL_SET)
    p = {
        "w_t1": _xavier(keys[0], (DEPTH, 1, 1, 1)).reshape(DEPTH),
        "w_t2": _xavier(keys[1], (DEPTH, 1, 1, KERNEL)).reshape(DEPTH, KERNEL),
        "w_s1": _xavier(keys[2], (DEPTH, DEPTH, 1, 1)).reshape(DEPTH, DEPTH),
        "w_s2": _xavier(keys[3], (DEPTH, 1, CHANS, 1)).reshape(DEPTH, CHANS),
        "w_skip0": _xavier(keys[5], (DEPTH, 1, CHANS, 1)).reshape(DEPTH, CHANS),
        "b_skip0": jnp.zeros((DEPTH,), jnp.float32),
        "cw2": jax.random.normal(keys[6], (16, 16), jnp.float32),
        "w_cna1": _xavier(keys[7], (DEPTH // 2, DEPTH)),
        "b_cna1": jnp.zeros((DEPTH // 2,), jnp.float32),
        "w_cna2": _xavier(keys[8], (DEPTH, DEPTH // 2)),
        "b_cna2": jnp.zeros((DEPTH,), jnp.float32),
        "w_cls": _xavier(keys[9], (NUM_CLASSES, FEAT_DIM)),
        "b_cls": jnp.zeros((NUM_CLASSES,), jnp.float32),
    }
    mkeys = jax.random.split(keys[4], len(KERNEL_SET))
    p["w_mste"] = [_xavier(k, (cout1, DEPTH, 1, ks)).reshape(cout1, DEPTH, ks)
                   for k, ks in zip(mkeys, KERNEL_SET)]
    p["b_mste"] = [jnp.zeros((cout1,), jnp.float32) for _ in KERNEL_SET]
    return p


def prepare_params(p):
    """One-time host-side weight prep: fold eval-mode BN scales, merge the 4
    MSTE branches, pre-combine the CNA / resize / pooling / flatten matrices,
    and pack everything into TWO slabs so the kernel has 3 inputs total."""
    k2 = BN_K * BN_K
    cout1 = DEPTH // len(KERNEL_SET)

    # ---- weight slab (16 rows, 128-lane-aligned segments) ----
    wslab = np.zeros((DEPTH, W_SLAB_W), np.float32)
    wslab[:, OFF_WT:OFF_WT + KERNEL] = np.asarray(
        k2 * p["w_t1"][:, None] * p["w_t2"])
    wslab[:, OFF_WS1:OFF_WS1 + DEPTH] = np.asarray(p["w_s1"])
    wslab[:, OFF_WS2:OFF_WS2 + CHANS] = np.asarray(k2 * p["w_s2"])
    wslab[:, OFF_WSK:OFF_WSK + CHANS] = np.asarray(p["w_skip0"])
    # merged MSTE weights: Wm2[o, tau*D + c] = wcomb[tau, o, c]
    wcomb = np.zeros((K_MAX, DEPTH, DEPTH), np.float32)
    for i, ks in enumerate(KERNEL_SET):
        wi = np.asarray(p["w_mste"][i])                  # (cout1, D, ks)
        for t in range(ks):
            wcomb[K_MAX - ks + t, i * cout1:(i + 1) * cout1, :] = wi[:, :, t]
    wslab[:, OFF_WM:OFF_WM + K_MAX * DEPTH] = np.transpose(
        wcomb, (1, 0, 2)).reshape(DEPTH, K_MAX * DEPTH)
    wslab[:, OFF_WCNA2:OFF_WCNA2 + CNA_H] = np.asarray(p["w_cna2"])
    wslab[0:NUM_CLASSES, OFF_WCLS:OFF_WCLS + FEAT_DIM] = np.asarray(p["w_cls"])
    wslab[0:1, OFF_CWS:OFF_CWS + DEPTH] = np.asarray(
        jnp.sum(p["cw2"], axis=0)).reshape(1, DEPTH)
    # biases (one column each in the bias segment)
    wslab[:, OFF_BIAS + 0] = np.concatenate([np.asarray(b) for b in p["b_mste"]])
    wslab[:, OFF_BIAS + 1] = np.asarray(p["b_skip0"])
    wslab[0:CNA_H, OFF_BIAS + 2] = np.asarray(p["b_cna1"])
    wslab[:, OFF_BIAS + 3] = np.asarray(p["b_cna2"])
    wslab[0:NUM_CLASSES, OFF_BIAS + 4] = np.asarray(p["b_cls"])
    # CNA GAP LHS: wcna1[h, e(l)]/(D*W_T) on valid (s < W_T) lanes, else 0
    w1m1 = np.zeros((DEPTH, LANES), np.float32)
    wcna1 = np.asarray(p["w_cna1"])                      # (8, 16)
    for e in range(CHANS):
        for b in range(BATCH):
            lo = e * COMPACT + b * SAMPLES
            w1m1[0:CNA_H, lo:lo + W_T] = wcna1[:, e:e + 1] / (DEPTH * W_T)
    wslab[:, OFF_W1M1:OFF_W1M1 + LANES] = w1m1

    # ---- lane-dense constants slab ----
    cslab = np.zeros((C_SLAB_R, C_SLAB_C), np.float32)
    # m2rep: batch-of-lane selector, replicated over the W_P pooled positions
    for l in range(LANES):
        b = (l % COMPACT) // SAMPLES
        cslab[ROW_M2 + l, b * W_P:(b + 1) * W_P] = 1.0
    # bilinear resize (W_M -> W_T) and average pooling, folded together
    poolm = np.zeros((COMPACT, BW), np.float32)
    for b in range(BATCH):
        for q in range(W_P):
            poolm[b * SAMPLES + q * POOL:b * SAMPLES + (q + 1) * POOL,
                  b * W_P + q] = 1.0 / POOL
    m_int = _bilinear_w_matrix(W_M, W_T)
    mres = np.zeros((COMPACT, COMPACT), np.float32)
    for b in range(BATCH):
        mres[b * SAMPLES:b * SAMPLES + W_M, b * SAMPLES:b * SAMPLES + W_T] = m_int
    cslab[ROW_PC:ROW_PC + COMPACT, 0:BW] = BN_K * (mres @ poolm)     # skip path
    cslab[ROW_PC + COMPACT:ROW_PC + 2 * COMPACT, 0:BW] = BN_K * poolm  # Es path
    # flatten-transpose helpers
    expand = np.zeros((FEAT_DIM, DEPTH), np.float32)
    expand[np.arange(FEAT_DIM), np.arange(FEAT_DIM) // W_P] = 1.0
    cslab[ROW_EXP:ROW_EXP + FEAT_DIM, 0:DEPTH] = expand
    for f in range(FEAT_DIM):
        for b in range(BATCH):
            cslab[ROW_PM + f, b * W_P + (f % W_P)] = 1.0
    for b in range(BATCH):
        cslab[ROW_BS + b * W_P:ROW_BS + (b + 1) * W_P, b] = 1.0

    return {"wslab": jnp.asarray(wslab), "cslab": jnp.asarray(cslab)}


# --------------------------------- forward ------------------------------------
def listen_net_forward(x, prep):
    """x: (batch, 1, chans, samples) -> (feat (B, FEAT_DIM), logits (B, CLASSES))."""
    n, _, ch, s = x.shape
    # electrode-major / batch / time lane order  l = e*128 + b*64 + s
    xe = jnp.transpose(x.reshape(n, ch, s), (1, 0, 2)).reshape(ch * n * s)
    xf = jnp.pad(xe, (0, ET_W + KERNEL - ch * n * s))
    # im2col for the temporal conv: x8[t, l] = xf[l + t]
    x8 = jnp.stack([xf[t:t + ET_W] for t in range(KERNEL)], axis=0)   # (8, 1152)

    res = pl.pallas_call(
        _listennet_kernel,
        out_shape=jax.ShapeDtypeStruct((OUT_ROWS, BATCH), jnp.float32),
        in_specs=[pl.BlockSpec(memory_space=pltpu.MemorySpace.VMEM)] * 3,
        out_specs=pl.BlockSpec(memory_space=pltpu.MemorySpace.VMEM),
    )(x8, prep["wslab"], prep["cslab"])

    feat = res[0:FEAT_DIM, :].T                                   # (B, 80)
    out = res[FEAT_DIM:FEAT_DIM + NUM_CLASSES, :].T               # (B, 2)
    return feat, out


# ----------------------------------- main --------------------------------------
if __name__ == "__main__":
    key = jax.random.PRNGKey(0)
    k_x, k_p = jax.random.split(key)
    x = jax.random.normal(k_x, (BATCH, 1, CHANS, SAMPLES), jnp.float32)
    params = init_params(k_p)
    prep = prepare_params(params)

    fwd = jax.jit(listen_net_forward)
    feat, out = fwd(x, prep)
    jax.block_until_ready((feat, out))

    assert feat.shape == (BATCH, FEAT_DIM), feat.shape
    assert out.shape == (BATCH, NUM_CLASSES), out.shape
    assert bool(jnp.all(jnp.isfinite(feat))) and bool(jnp.all(jnp.isfinite(out)))
    print("KERNEL_OK")
</pallas_src>

<mosaic_0001>
module attributes {stable_mosaic.version = 11 : i64} {
  func.func @_listennet_kernel(%arg0: memref<8x1152xf32, #tpu.memory_space<vmem>>, %arg1: memref<16x2176xf32, #tpu.memory_space<vmem>>, %arg2: memref<1456x16xf32, #tpu.memory_space<vmem>>, %arg3: memref<88x2xf32, #tpu.memory_space<vmem>>) attributes {dimension_semantics = [], scalar_prefetch = 0 : i64, scratch_operands = 0 : i64, tpu.core_type = #tpu.core_type<tc>} {
    %c0 = arith.constant 0 : index
    %c0_0 = arith.constant 0 : index
    %0 = vector.load %arg1[%c0, %c0_0] : memref<16x2176xf32, #tpu.memory_space<vmem>>, vector<16x8xf32>
    %c0_1 = arith.constant 0 : index
    %c0_2 = arith.constant 0 : index
    %1 = vector.load %arg0[%c0_1, %c0_2] : memref<8x1152xf32, #tpu.memory_space<vmem>>, vector<8x1152xf32>
    %cst = arith.constant dense<0.000000e+00> : vector<16x1152xf32>
    %2 = tpu.matmul %0, %1, %cst {dimension_numbers = #tpu.dot_dimension_numbers<[1], [0], [0], [1], [0, 0, 1, 1], [], []>} : vector<16x8xf32>, vector<8x1152xf32>, vector<16x1152xf32> -> vector<16x1152xf32>
    %cst_3 = arith.constant 0.707106769 : f32
    %3 = vector.broadcast %cst_3 : f32 to vector<16x1152xf32>
    %4 = arith.mulf %2, %3 : vector<16x1152xf32>
    %5 = math.absf %4 : vector<16x1152xf32>
    %cst_4 = arith.constant 0.327591091 : f32
    %6 = vector.broadcast %cst_4 : f32 to vector<16x1152xf32>
    %7 = arith.mulf %6, %5 : vector<16x1152xf32>
    %cst_5 = arith.constant 1.000000e+00 : f32
    %8 = vector.broadcast %cst_5 : f32 to vector<16x1152xf32>
    %9 = arith.addf %8, %7 : vector<16x1152xf32>
    %cst_6 = arith.constant 1.000000e+00 : f32
    %10 = vector.broadcast %cst_6 : f32 to vector<16x1152xf32>
    %11 = arith.divf %10, %9 : vector<16x1152xf32>
    %cst_7 = arith.constant 1.06140542 : f32
    %12 = vector.broadcast %cst_7 : f32 to vector<16x1152xf32>
    %13 = arith.mulf %11, %12 : vector<16x1152xf32>
    %cst_8 = arith.constant -1.45315206 : f32
    %14 = vector.broadcast %cst_8 : f32 to vector<16x1152xf32>
    %15 = arith.addf %14, %13 : vector<16x1152xf32>
    %16 = arith.mulf %11, %15 : vector<16x1152xf32>
    %cst_9 = arith.constant 1.42141378 : f32
    %17 = vector.broadcast %cst_9 : f32 to vector<16x1152xf32>
    %18 = arith.addf %17, %16 : vector<16x1152xf32>
    %19 = arith.mulf %11, %18 : vector<16x1152xf32>
    %cst_10 = arith.constant -0.284496725 : f32
    %20 = vector.broadcast %cst_10 : f32 to vector<16x1152xf32>
    %21 = arith.addf %20, %19 : vector<16x1152xf32>
    %22 = arith.mulf %11, %21 : vector<16x1152xf32>
    %cst_11 = arith.constant 0.254829586 : f32
    %23 = vector.broadcast %cst_11 : f32 to vector<16x1152xf32>
    %24 = arith.addf %23, %22 : vector<16x1152xf32>
    %25 = arith.mulf %11, %24 : vector<16x1152xf32>
    %cst_12 = arith.constant 0.000000e+00 : f32
    %26 = vector.broadcast %cst_12 : f32 to vector<16x1152xf32>
    %27 = arith.subf %26, %5 : vector<16x1152xf32>
    %28 = arith.mulf %27, %5 : vector<16x1152xf32>
    %29 = math.exp %28 : vector<16x1152xf32>
    %30 = arith.mulf %25, %29 : vector<16x1152xf32>
    %cst_13 = arith.constant 1.000000e+00 : f32
    %31 = vector.broadcast %cst_13 : f32 to vector<16x1152xf32>
    %32 = arith.subf %31, %30 : vector<16x1152xf32>
    %cst_14 = arith.constant 0.000000e+00 : f32
    %33 = vector.broadcast %cst_14 : f32 to vector<16x1152xf32>
    %34 = arith.cmpf oge, %4, %33 : vector<16x1152xf32>
    %cst_15 = arith.constant 0.000000e+00 : f32
    %35 = vector.broadcast %cst_15 : f32 to vector<16x1152xf32>
    %36 = arith.subf %35, %32 : vector<16x1152xf32>
    %37 = arith.select %34, %32, %36 : vector<16x1152xi1>, vector<16x1152xf32>
    %cst_16 = arith.constant 5.000000e-01 : f32
    %38 = vector.broadcast %cst_16 : f32 to vector<16x1152xf32>
    %39 = arith.mulf %38, %2 : vector<16x1152xf32>
    %cst_17 = arith.constant 1.000000e+00 : f32
    %40 = vector.broadcast %cst_17 : f32 to vector<16x1152xf32>
    %41 = arith.addf %40, %37 : vector<16x1152xf32>
    %42 = arith.mulf %39, %41 : vector<16x1152xf32>
    %43 = vector.extract_strided_slice %42 {offsets = [0, 0], sizes = [16, 1024], strides = [1, 1]} : vector<16x1152xf32> to vector<16x1024xf32>
    %c0_18 = arith.constant 0 : index
    %c128 = arith.constant 128 : index
    %44 = vector.load %arg1[%c0_18, %c128] : memref<16x2176xf32, #tpu.memory_space<vmem>>, vector<16x16xf32>
    %cst_19 = arith.constant dense<0.000000e+00> : vector<16x1024xf32>
    %45 = tpu.matmul %44, %43, %cst_19 {dimension_numbers = #tpu.dot_dimension_numbers<[1], [0], [0], [1], [0, 0, 1, 1], [], []>} : vector<16x16xf32>, vector<16x1024xf32>, vector<16x1024xf32> -> vector<16x1024xf32>
    %c0_20 = arith.constant 0 : index
    %c256 = arith.constant 256 : index
    %46 = vector.load %arg1[%c0_20, %c256] : memref<16x2176xf32, #tpu.memory_space<vmem>>, vector<16x8xf32>
    %47 = vector.extract_strided_slice %46 {offsets = [0, 0], sizes = [16, 1], strides = [1, 1]} : vector<16x8xf32> to vector<16x1xf32>
    %48 = vector.extract_strided_slice %45 {offsets = [0, 0], sizes = [16, 128], strides = [1, 1]} : vector<16x1024xf32> to vector<16x128xf32>
    %49 = vector.broadcast %47 : vector<16x1xf32> to vector<16x128xf32>
    %50 = arith.mulf %49, %48 : vector<16x128xf32>
    %51 = vector.extract_strided_slice %46 {offsets = [0, 1], sizes = [16, 1], strides = [1, 1]} : vector<16x8xf32> to vector<16x1xf32>
    %52 = vector.extract_strided_slice %45 {offsets = [0, 128], sizes = [16, 128], strides = [1, 1]} : vector<16x1024xf32> to vector<16x128xf32>
    %53 = vector.broadcast %51 : vector<16x1xf32> to vector<16x128xf32>
    %54 = arith.mulf %53, %52 : vector<16x128xf32>
    %55 = arith.addf %50, %54 : vector<16x128xf32>
    %56 = vector.extract_strided_slice %46 {offsets = [0, 2], sizes = [16, 1], strides = [1, 1]} : vector<16x8xf32> to vector<16x1xf32>
    %57 = vector.extract_strided_slice %45 {offsets = [0, 256], sizes = [16, 128], strides = [1, 1]} : vector<16x1024xf32> to vector<16x128xf32>
    %58 = vector.broadcast %56 : vector<16x1xf32> to vector<16x128xf32>
    %59 = arith.mulf %58, %57 : vector<16x128xf32>
    %60 = arith.addf %55, %59 : vector<16x128xf32>
    %61 = vector.extract_strided_slice %46 {offsets = [0, 3], sizes = [16, 1], strides = [1, 1]} : vector<16x8xf32> to vector<16x1xf32>
    %62 = vector.extract_strided_slice %45 {offsets = [0, 384], sizes = [16, 128], strides = [1, 1]} : vector<16x1024xf32> to vector<16x128xf32>
    %63 = vector.broadcast %61 : vector<16x1xf32> to vector<16x128xf32>
    %64 = arith.mulf %63, %62 : vector<16x128xf32>
    %65 = arith.addf %60, %64 : vector<16x128xf32>
    %66 = vector.extract_strided_slice %46 {offsets = [0, 4], sizes = [16, 1], strides = [1, 1]} : vector<16x8xf32> to vector<16x1xf32>
    %67 = vector.extract_strided_slice %45 {offsets = [0, 512], sizes = [16, 128], strides = [1, 1]} : vector<16x1024xf32> to vector<16x128xf32>
    %68 = vector.broadcast %66 : vector<16x1xf32> to vector<16x128xf32>
    %69 = arith.mulf %68, %67 : vector<16x128xf32>
    %70 = arith.addf %65, %69 : vector<16x128xf32>
    %71 = vector.extract_strided_slice %46 {offsets = [0, 5], sizes = [16, 1], strides = [1, 1]} : vector<16x8xf32> to vector<16x1xf32>
    %72 = vector.extract_strided_slice %45 {offsets = [0, 640], sizes = [16, 128], strides = [1, 1]} : vector<16x1024xf32> to vector<16x128xf32>
    %73 = vector.broadcast %71 : vector<16x1xf32> to vector<16x128xf32>
    %74 = arith.mulf %73, %72 : vector<16x128xf32>
    %75 = arith.addf %70, %74 : vector<16x128xf32>
    %76 = vector.extract_strided_slice %46 {offsets = [0, 6], sizes = [16, 1], strides = [1, 1]} : vector<16x8xf32> to vector<16x1xf32>
    %77 = vector.extract_strided_slice %45 {offsets = [0, 768], sizes = [16, 128], strides = [1, 1]} : vector<16x1024xf32> to vector<16x128xf32>
    %78 = vector.broadcast %76 : vector<16x1xf32> to vector<16x128xf32>
    %79 = arith.mulf %78, %77 : vector<16x128xf32>
    %80 = arith.addf %75, %79 : vector<16x128xf32>
    %81 = vector.extract_strided_slice %46 {offsets = [0, 7], sizes = [16, 1], strides = [1, 1]} : vector<16x8xf32> to vector<16x1xf32>
    %82 = vector.extract_strided_slice %45 {offsets = [0, 896], sizes = [16, 128], strides = [1, 1]} : vector<16x1024xf32> to vector<16x128xf32>
    %83 = vector.broadcast %81 : vector<16x1xf32> to vector<16x128xf32>
    %84 = arith.mulf %83, %82 : vector<16x128xf32>
    %85 = arith.addf %80, %84 : vector<16x128xf32>
    %cst_21 = arith.constant 0.707106769 : f32
    %86 = vector.broadcast %cst_21 : f32 to vector<16x128xf32>
    %87 = arith.mulf %85, %86 : vector<16x128xf32>
    %88 = math.absf %87 : vector<16x128xf32>
    %cst_22 = arith.constant 0.327591091 : f32
    %89 = vector.broadcast %cst_22 : f32 to vector<16x128xf32>
    %90 = arith.mulf %89, %88 : vector<16x128xf32>
    %cst_23 = arith.constant 1.000000e+00 : f32
    %91 = vector.broadcast %cst_23 : f32 to vector<16x128xf32>
    %92 = arith.addf %91, %90 : vector<16x128xf32>
    %cst_24 = arith.constant 1.000000e+00 : f32
    %93 = vector.broadcast %cst_24 : f32 to vector<16x128xf32>
    %94 = arith.divf %93, %92 : vector<16x128xf32>
    %cst_25 = arith.constant 1.06140542 : f32
    %95 = vector.broadcast %cst_25 : f32 to vector<16x128xf32>
    %96 = arith.mulf %94, %95 : vector<16x128xf32>
    %cst_26 = arith.constant -1.45315206 : f32
    %97 = vector.broadcast %cst_26 : f32 to vector<16x128xf32>
    %98 = arith.addf %97, %96 : vector<16x128xf32>
    %99 = arith.mulf %94, %98 : vector<16x128xf32>
    %cst_27 = arith.constant 1.42141378 : f32
    %100 = vector.broadcast %cst_27 : f32 to vector<16x128xf32>
    %101 = arith.addf %100, %99 : vector<16x128xf32>
    %102 = arith.mulf %94, %101 : vector<16x128xf32>
    %cst_28 = arith.constant -0.284496725 : f32
    %103 = vector.broadcast %cst_28 : f32 to vector<16x128xf32>
    %104 = arith.addf %103, %102 : vector<16x128xf32>
    %105 = arith.mulf %94, %104 : vector<16x128xf32>
    %cst_29 = arith.constant 0.254829586 : f32
    %106 = vector.broadcast %cst_29 : f32 to vector<16x128xf32>
    %107 = arith.addf %106, %105 : vector<16x128xf32>
    %108 = arith.mulf %94, %107 : vector<16x128xf32>
    %cst_30 = arith.constant 0.000000e+00 : f32
    %109 = vector.broadcast %cst_30 : f32 to vector<16x128xf32>
    %110 = arith.subf %109, %88 : vector<16x128xf32>
    %111 = arith.mulf %110, %88 : vector<16x128xf32>
    %112 = math.exp %111 : vector<16x128xf32>
    %113 = arith.mulf %108, %112 : vector<16x128xf32>
    %cst_31 = arith.constant 1.000000e+00 : f32
    %114 = vector.broadcast %cst_31 : f32 to vector<16x128xf32>
    %115 = arith.subf %114, %113 : vector<16x128xf32>
    %cst_32 = arith.constant 0.000000e+00 : f32
    %116 = vector.broadcast %cst_32 : f32 to vector<16x128xf32>
    %117 = arith.cmpf oge, %87, %116 : vector<16x128xf32>
    %cst_33 = arith.constant 0.000000e+00 : f32
    %118 = vector.broadcast %cst_33 : f32 to vector<16x128xf32>
    %119 = arith.subf %118, %115 : vector<16x128xf32>
    %120 = arith.select %117, %115, %119 : vector<16x128xi1>, vector<16x128xf32>
    %cst_34 = arith.constant 5.000000e-01 : f32
    %121 = vector.broadcast %cst_34 : f32 to vector<16x128xf32>
    %122 = arith.mulf %121, %85 : vector<16x128xf32>
    %cst_35 = arith.constant 1.000000e+00 : f32
    %123 = vector.broadcast %cst_35 : f32 to vector<16x128xf32>
    %124 = arith.addf %123, %120 : vector<16x128xf32>
    %125 = arith.mulf %122, %124 : vector<16x128xf32>
    %126 = vector.extract_strided_slice %42 {offsets = [0, 0], sizes = [16, 1024], strides = [1, 1]} : vector<16x1152xf32> to vector<16x1024xf32>
    %127 = vector.extract_strided_slice %42 {offsets = [0, 1], sizes = [16, 1024], strides = [1, 1]} : vector<16x1152xf32> to vector<16x1024xf32>
    %128 = vector.extract_strided_slice %42 {offsets = [0, 2], sizes = [16, 1024], strides = [1, 1]} : vector<16x1152xf32> to vector<16x1024xf32>
    %129 = vector.extract_strided_slice %42 {offsets = [0, 3], sizes = [16, 1024], strides = [1, 1]} : vector<16x1152xf32> to vector<16x1024xf32>
    %130 = vector.extract_strided_slice %42 {offsets = [0, 4], sizes = [16, 1024], strides = [1, 1]} : vector<16x1152xf32> to vector<16x1024xf32>
    %131 = tpu.concatenate %126, %127, %128, %129, %130 in 0 : vector<16x1024xf32>, vector<16x1024xf32>, vector<16x1024xf32>, vector<16x1024xf32>, vector<16x1024xf32> -> vector<80x1024xf32>
    %c0_36 = arith.constant 0 : index
    %c512 = arith.constant 512 : index
    %132 = vector.load %arg1[%c0_36, %c512] : memref<16x2176xf32, #tpu.memory_space<vmem>>, vector<16x80xf32>
    %cst_37 = arith.constant dense<0.000000e+00> : vector<16x1024xf32>
    %133 = tpu.matmul %132, %131, %cst_37 {dimension_numbers = #tpu.dot_dimension_numbers<[1], [0], [0], [1], [0, 0, 1, 1], [], []>} : vector<16x80xf32>, vector<80x1024xf32>, vector<16x1024xf32> -> vector<16x1024xf32>
    %c0_38 = arith.constant 0 : index
    %c1024 = arith.constant 1024 : index
    %134 = vector.load %arg1[%c0_38, %c1024] : memref<16x2176xf32, #tpu.memory_space<vmem>>, vector<16x1xf32>
    %135 = vector.broadcast %134 : vector<16x1xf32> to vector<16x1024xf32>
    %136 = arith.addf %133, %135 : vector<16x1024xf32>
    %c0_39 = arith.constant 0 : index
    %c384 = arith.constant 384 : index
    %137 = vector.load %arg1[%c0_39, %c384] : memref<16x2176xf32, #tpu.memory_space<vmem>>, vector<16x8xf32>
    %138 = vector.extract_strided_slice %137 {offsets = [0, 0], sizes = [16, 1], strides = [1, 1]} : vector<16x8xf32> to vector<16x1xf32>
    %139 = vector.extract_strided_slice %136 {offsets = [0, 0], sizes = [16, 128], strides = [1, 1]} : vector<16x1024xf32> to vector<16x128xf32>
    %140 = vector.broadcast %138 : vector<16x1xf32> to vector<16x128xf32>
    %141 = arith.mulf %140, %139 : vector<16x128xf32>
    %142 = vector.extract_strided_slice %137 {offsets = [0, 1], sizes = [16, 1], strides = [1, 1]} : vector<16x8xf32> to vector<16x1xf32>
    %143 = vector.extract_strided_slice %136 {offsets = [0, 128], sizes = [16, 128], strides = [1, 1]} : vector<16x1024xf32> to vector<16x128xf32>
    %144 = vector.broadcast %142 : vector<16x1xf32> to vector<16x128xf32>
    %145 = arith.mulf %144, %143 : vector<16x128xf32>
    %146 = arith.addf %141, %145 : vector<16x128xf32>
    %147 = vector.extract_strided_slice %137 {offsets = [0, 2], sizes = [16, 1], strides = [1, 1]} : vector<16x8xf32> to vector<16x1xf32>
    %148 = vector.extract_strided_slice %136 {offsets = [0, 256], sizes = [16, 128], strides = [1, 1]} : vector<16x1024xf32> to vector<16x128xf32>
    %149 = vector.broadcast %147 : vector<16x1xf32> to vector<16x128xf32>
    %150 = arith.mulf %149, %148 : vector<16x128xf32>
    %151 = arith.addf %146, %150 : vector<16x128xf32>
    %152 = vector.extract_strided_slice %137 {offsets = [0, 3], sizes = [16, 1], strides = [1, 1]} : vector<16x8xf32> to vector<16x1xf32>
    %153 = vector.extract_strided_slice %136 {offsets = [0, 384], sizes = [16, 128], strides = [1, 1]} : vector<16x1024xf32> to vector<16x128xf32>
    %154 = vector.broadcast %152 : vector<16x1xf32> to vector<16x128xf32>
    %155 = arith.mulf %154, %153 : vector<16x128xf32>
    %156 = arith.addf %151, %155 : vector<16x128xf32>
    %157 = vector.extract_strided_slice %137 {offsets = [0, 4], sizes = [16, 1], strides = [1, 1]} : vector<16x8xf32> to vector<16x1xf32>
    %158 = vector.extract_strided_slice %136 {offsets = [0, 512], sizes = [16, 128], strides = [1, 1]} : vector<16x1024xf32> to vector<16x128xf32>
    %159 = vector.broadcast %157 : vector<16x1xf32> to vector<16x128xf32>
    %160 = arith.mulf %159, %158 : vector<16x128xf32>
    %161 = arith.addf %156, %160 : vector<16x128xf32>
    %162 = vector.extract_strided_slice %137 {offsets = [0, 5], sizes = [16, 1], strides = [1, 1]} : vector<16x8xf32> to vector<16x1xf32>
    %163 = vector.extract_strided_slice %136 {offsets = [0, 640], sizes = [16, 128], strides = [1, 1]} : vector<16x1024xf32> to vector<16x128xf32>
    %164 = vector.broadcast %162 : vector<16x1xf32> to vector<16x128xf32>
    %165 = arith.mulf %164, %163 : vector<16x128xf32>
    %166 = arith.addf %161, %165 : vector<16x128xf32>
    %167 = vector.extract_strided_slice %137 {offsets = [0, 6], sizes = [16, 1], strides = [1, 1]} : vector<16x8xf32> to vector<16x1xf32>
    %168 = vector.extract_strided_slice %136 {offsets = [0, 768], sizes = [16, 128], strides = [1, 1]} : vector<16x1024xf32> to vector<16x128xf32>
    %169 = vector.broadcast %167 : vector<16x1xf32> to vector<16x128xf32>
    %170 = arith.mulf %169, %168 : vector<16x128xf32>
    %171 = arith.addf %166, %170 : vector<16x128xf32>
    %172 = vector.extract_strided_slice %137 {offsets = [0, 7], sizes = [16, 1], strides = [1, 1]} : vector<16x8xf32> to vector<16x1xf32>
    %173 = vector.extract_strided_slice %136 {offsets = [0, 896], sizes = [16, 128], strides = [1, 1]} : vector<16x1024xf32> to vector<16x128xf32>
    %174 = vector.broadcast %172 : vector<16x1xf32> to vector<16x128xf32>
    %175 = arith.mulf %174, %173 : vector<16x128xf32>
    %176 = arith.addf %171, %175 : vector<16x128xf32>
    %c0_40 = arith.constant 0 : index
    %c1025 = arith.constant 1025 : index
    %177 = vector.load %arg1[%c0_40, %c1025] : memref<16x2176xf32, #tpu.memory_space<vmem>>, vector<16x1xf32>
    %178 = vector.broadcast %177 : vector<16x1xf32> to vector<16x128xf32>
    %179 = arith.addf %176, %178 : vector<16x128xf32>
    %180 = tpu.concatenate %179, %125 in 1 : vector<16x128xf32>, vector<16x128xf32> -> vector<16x256xf32>
    %c1024_41 = arith.constant 1024 : index
    %c0_42 = arith.constant 0 : index
    %181 = vector.load %arg2[%c1024_41, %c0_42] : memref<1456x16xf32, #tpu.memory_space<vmem>>, vector<256x10xf32>
    %cst_43 = arith.constant dense<0.000000e+00> : vector<16x10xf32>
    %182 = tpu.matmul %180, %181, %cst_43 {dimension_numbers = #tpu.dot_dimension_numbers<[1], [0], [0], [1], [0, 0, 1, 1], [], []>} : vector<16x256xf32>, vector<256x10xf32>, vector<16x10xf32> -> vector<16x10xf32>
    %c0_44 = arith.constant 0 : index
    %c896 = arith.constant 896 : index
    %183 = vector.load %arg1[%c0_44, %c896] : memref<16x2176xf32, #tpu.memory_space<vmem>>, vector<1x16xf32>
    %cst_45 = arith.constant dense<0.000000e+00> : vector<1x1024xf32>
    %184 = tpu.matmul %183, %43, %cst_45 {dimension_numbers = #tpu.dot_dimension_numbers<[1], [0], [0], [1], [0, 0, 1, 1], [], []>} : vector<1x16xf32>, vector<16x1024xf32>, vector<1x1024xf32> -> vector<1x1024xf32>
    %c0_46 = arith.constant 0 : index
    %c1152 = arith.constant 1152 : index
    %185 = vector.load %arg1[%c0_46, %c1152] : memref<16x2176xf32, #tpu.memory_space<vmem>>, vector<8x1024xf32>
    %186 = vector.broadcast %184 : vector<1x1024xf32> to vector<8x1024xf32>
    %187 = arith.mulf %185, %186 : vector<8x1024xf32>
    %c0_47 = arith.constant 0 : index
    %c0_48 = arith.constant 0 : index
    %188 = vector.load %arg2[%c0_47, %c0_48] : memref<1456x16xf32, #tpu.memory_space<vmem>>, vector<1024x10xf32>
    %cst_49 = arith.constant dense<0.000000e+00> : vector<8x10xf32>
    %189 = tpu.matmul %187, %188, %cst_49 {dimension_numbers = #tpu.dot_dimension_numbers<[1], [0], [0], [1], [0, 0, 1, 1], [], []>} : vector<8x1024xf32>, vector<1024x10xf32>, vector<8x10xf32> -> vector<8x10xf32>
    %c0_50 = arith.constant 0 : index
    %c1026 = arith.constant 1026 : index
    %190 = vector.load %arg1[%c0_50, %c1026] : memref<16x2176xf32, #tpu.memory_space<vmem>>, vector<8x1xf32>
    %191 = vector.broadcast %190 : vector<8x1xf32> to vector<8x10xf32>
    %192 = arith.addf %189, %191 : vector<8x10xf32>
    %cst_51 = arith.constant 0.000000e+00 : f32
    %193 = vector.broadcast %cst_51 : f32 to vector<8x10xf32>
    %194 = arith.maximumf %192, %193 : vector<8x10xf32>
    %c0_52 = arith.constant 0 : index
    %c640 = arith.constant 640 : index
    %195 = vector.load %arg1[%c0_52, %c640] : memref<16x2176xf32, #tpu.memory_space<vmem>>, vector<16x8xf32>
    %cst_53 = arith.constant dense<0.000000e+00> : vector<16x10xf32>
    %196 = tpu.matmul %195, %194, %cst_53 {dimension_numbers = #tpu.dot_dimension_numbers<[1], [0], [0], [1], [0, 0, 1, 1], [], []>} : vector<16x8xf32>, vector<8x10xf32>, vector<16x10xf32> -> vector<16x10xf32>
    %c0_54 = arith.constant 0 : index
    %c1027 = arith.constant 1027 : index
    %197 = vector.load %arg1[%c0_54, %c1027] : memref<16x2176xf32, #tpu.memory_space<vmem>>, vector<16x1xf32>
    %198 = vector.broadcast %197 : vector<16x1xf32> to vector<16x10xf32>
    %199 = arith.addf %196, %198 : vector<16x10xf32>
    %200 = arith.negf %199 : vector<16x10xf32>
    %201 = math.exp %200 : vector<16x10xf32>
    %cst_55 = arith.constant 1.000000e+00 : f32
    %202 = vector.broadcast %cst_55 : f32 to vector<16x10xf32>
    %203 = arith.addf %202, %201 : vector<16x10xf32>
    %204 = arith.divf %202, %203 : vector<16x10xf32>
    %205 = arith.mulf %204, %182 : vector<16x10xf32>
    %c1280 = arith.constant 1280 : index
    %c0_56 = arith.constant 0 : index
    %206 = vector.load %arg2[%c1280, %c0_56] : memref<1456x16xf32, #tpu.memory_space<vmem>>, vector<80x16xf32>
    %cst_57 = arith.constant dense<0.000000e+00> : vector<80x10xf32>
    %207 = tpu.matmul %206, %205, %cst_57 {dimension_numbers = #tpu.dot_dimension_numbers<[1], [0], [0], [1], [0, 0, 1, 1], [], []>} : vector<80x16xf32>, vector<16x10xf32>, vector<80x10xf32> -> vector<80x10xf32>
    %c1360 = arith.constant 1360 : index
    %c0_58 = arith.constant 0 : index
    %208 = vector.load %arg2[%c1360, %c0_58] : memref<1456x16xf32, #tpu.memory_space<vmem>>, vector<80x10xf32>
    %209 = arith.mulf %207, %208 : vector<80x10xf32>
    %c1440 = arith.constant 1440 : index
    %c0_59 = arith.constant 0 : index
    %210 = vector.load %arg2[%c1440, %c0_59] : memref<1456x16xf32, #tpu.memory_space<vmem>>, vector<10x2xf32>
    %cst_60 = arith.constant dense<0.000000e+00> : vector<80x2xf32>
    %211 = tpu.matmul %209, %210, %cst_60 {dimension_numbers = #tpu.dot_dimension_numbers<[1], [0], [0], [1], [0, 0, 1, 1], [], []>} : vector<80x10xf32>, vector<10x2xf32>, vector<80x2xf32> -> vector<80x2xf32>
    %c0_61 = arith.constant 0 : index
    %c768 = arith.constant 768 : index
    %212 = vector.load %arg1[%c0_61, %c768] : memref<16x2176xf32, #tpu.memory_space<vmem>>, vector<8x80xf32>
    %cst_62 = arith.constant dense<0.000000e+00> : vector<8x2xf32>
    %213 = tpu.matmul %212, %211, %cst_62 {dimension_numbers = #tpu.dot_dimension_numbers<[1], [0], [0], [1], [0, 0, 1, 1], [], []>} : vector<8x80xf32>, vector<80x2xf32>, vector<8x2xf32> -> vector<8x2xf32>
    %c0_63 = arith.constant 0 : index
    %c1028 = arith.constant 1028 : index
    %214 = vector.load %arg1[%c0_63, %c1028] : memref<16x2176xf32, #tpu.memory_space<vmem>>, vector<8x1xf32>
    %215 = vector.broadcast %214 : vector<8x1xf32> to vector<8x2xf32>
    %216 = arith.addf %213, %215 : vector<8x2xf32>
    %c0_64 = arith.constant 0 : index
    %c0_65 = arith.constant 0 : index
    %217 = vector.load %arg3[%c0_64, %c0_65] : memref<88x2xf32, #tpu.memory_space<vmem>>, vector<80x2xf32>
    tpu.vector_store %arg3[%c0_64, %c0_65], %211 {strides = array<i32>} : memref<88x2xf32, #tpu.memory_space<vmem>>, vector<80x2xf32>,
    %c80 = arith.constant 80 : index
    %c0_66 = arith.constant 0 : index
    %218 = vector.load %arg3[%c80, %c0_66] : memref<88x2xf32, #tpu.memory_space<vmem>>, vector<8x2xf32>
    tpu.vector_store %arg3[%c80, %c0_66], %216 {strides = array<i32>} : memref<88x2xf32, #tpu.memory_space<vmem>>, vector<8x2xf32>,
    return
  }
}

</mosaic_0001>

<llo_original>
// kernel: listen_net_forward.1
$region0: #{listen_net_forward.1}
  #allocation0 [shape = 'u32[]', space=smem, size = 0x4, offset = 0x4, fixed_abs, tag = 'smem constant byte address 0x4 - core index']
  #allocation1 [shape = 'u32[144,128]{1,0:T(1,128)}', space=vmem, size = 0x12000, scoped, tag = 'internal scratch']
  %s0 = inlined_call_operand.vmem [shape: f32[8,1152], index: 0, kind: input, shape index: {}]
  %s1 = inlined_call_operand.vmem [shape: f32[16,2176], index: 1, kind: input, shape index: {}]
  %s2 = inlined_call_operand.vmem [shape: f32[1456,16], index: 2, kind: input, shape index: {}]
  %s3 = inlined_call_operand.vmem [shape: f32[88,2], index: 3, kind: output, shape index: {}]
  %s4 = sld [smem:[#allocation0]]
  $region22: #{listen_net_forward.1} parent=0
    _
  %s6 = ssub.s32 1, %s4
  %s7 = scalar_select 0, %s6, %s4
  // Predicated region
  $region2: #{listen_net_forward.1} parent=0 // pred_check
    _
  $region3: #{listen_net_forward.1} parent=0 // pred_check_branch
    %9 = sbr.rel (0) target = $region5
  $region4: #{listen_net_forward.1} parent=0 // pred_region
    _
  $region5: #{listen_net_forward.1} parent=0 // pred_fallthru
    _
  // Predicated region
  $region6: #{listen_net_forward.1} parent=0 // pred_check
    _
  $region7: #{listen_net_forward.1} parent=0 // pred_check_branch
    %11 = sbr.rel (0) target = $region9
  $region8: #{listen_net_forward.1} parent=0 // pred_region
    _
  $region9: #{listen_net_forward.1} parent=0 // pred_fallthru
    _
  // Predicated region
  $region10: #{listen_net_forward.1} parent=0 // pred_check
    _
  $region11: #{listen_net_forward.1} parent=0 // pred_check_branch
    %13 = sbr.rel (0) target = $region13
  $region12: #{listen_net_forward.1} parent=0 // pred_region
    _
  $region13: #{listen_net_forward.1} parent=0 // pred_fallthru
    _
  %v14 = vld [vmem:[%s1] sm:$0xff]
  %v15 = vld [vmem:[%s1 + $0x88] sm:$0xff]
  %v16 = vld [vmem:[%s0] sm:$0xff]
  %v17 = vld [vmem:[%s0 + $0x8] sm:$0xff]
  %v18 = vld [vmem:[%s0 + $0x10] sm:$0xff]
  %v19 = vld [vmem:[%s0 + $0x18] sm:$0xff]
  %v20 = vld [vmem:[%s0 + $0x20] sm:$0xff]
  %v21 = vld [vmem:[%s0 + $0x28] sm:$0xff]
  %v22 = vld [vmem:[%s0 + $0x30] sm:$0xff]
  %v23 = vld [vmem:[%s0 + $0x38] sm:$0xff]
  %v24 = vld [vmem:[%s0 + $0x40] sm:$0xff]
  %vm25 = vcmask 64512
  %v27 = vsel %vm25, %v14, 0
  %v30 = vsel %vm25, %v15, 0
  %32 = vmatprep.subr.mxu0 %v17
  %33 = vmatpush1.msra.mxu0 %v16
  %34 = vmatprep.subr.mxu0 0.0
  %35 = vmatpush1.msra.mxu0 0.0
  %36 = vmatprep.subr.mxu0 0.0
  %37 = vmatpush1.msra.mxu0 0.0
  %38 = vmatprep.subr.mxu0 0.0
  %39 = vmatpush1.msra.mxu0 0.0
  %40 = vmatprep.subr.mxu0 0.0
  %41 = vmatpush1.msra.mxu0 0.0
  %42 = vmatprep.subr.mxu0 0.0
  %43 = vmatpush1.msra.mxu0 0.0
  %44 = vmatprep.subr.mxu0 0.0
  %45 = vmatpush1.msra.mxu0 0.0
  %46 = vmatprep.subr.mxu0 0.0
  %47 = vmatpush1.msra.mxu0 0.0
  %48 = vmatprep.subr.mxu0 0.0
  %49 = vmatpush1.msra.mxu0 0.0
  %50 = vmatprep.subr.mxu0 0.0
  %51 = vmatpush1.msra.mxu0 0.0
  %52 = vmatprep.subr.mxu0 0.0
  %53 = vmatpush1.msra.mxu0 0.0
  %54 = vmatprep.subr.mxu0 0.0
  %55 = vmatpush1.msra.mxu0 0.0
  %56 = vmatprep.subr.mxu0 0.0
  %57 = vmatpush1.msra.mxu0 0.0
  %58 = vmatprep.subr.mxu0 0.0
  %59 = vmatpush1.msra.mxu0 0.0
  %60 = vmatprep.subr.mxu0 0.0
  %61 = vmatpush1.msra.mxu0 0.0
  %62 = vmatprep.subr.mxu0 0.0
  %63 = vmatpush1.msra.mxu0 0.0
  %64 = vmatprep.subr.mxu0 0.0
  %65 = vmatpush1.msra.mxu0 0.0
  %66 = vmatprep.subr.mxu0 0.0
  %67 = vmatpush1.msra.mxu0 0.0
  %68 = vmatprep.subr.mxu0 0.0
  %69 = vmatpush1.msra.mxu0 0.0
  %70 = vmatprep.subr.mxu0 0.0
  %71 = vmatpush1.msra.mxu0 0.0
  %72 = vmatprep.subr.mxu0 0.0
  %73 = vmatpush1.msra.mxu0 0.0
  %74 = vmatprep.subr.mxu0 0.0
  %75 = vmatpush1.msra.mxu0 0.0
  %76 = vmatprep.subr.mxu0 0.0
  %77 = vmatpush1.msra.mxu0 0.0
  %78 = vmatprep.subr.mxu0 0.0
  %79 = vmatpush1.msra.mxu0 0.0
  %80 = vmatprep.subr.mxu0 0.0
  %81 = vmatpush1.msra.mxu0 0.0
  %82 = vmatprep.subr.mxu0 0.0
  %83 = vmatpush1.msra.mxu0 0.0
  %84 = vmatprep.subr.mxu0 0.0
  %85 = vmatpush1.msra.mxu0 0.0
  %86 = vmatprep.subr.mxu0 0.0
  %87 = vmatpush1.msra.mxu0 0.0
  %88 = vmatprep.subr.mxu0 0.0
  %89 = vmatpush1.msra.mxu0 0.0
  %90 = vmatprep.subr.mxu0 0.0
  %91 = vmatpush1.msra.mxu0 0.0
  %92 = vmatprep.subr.mxu0 0.0
  %93 = vmatpush1.msra.mxu0 0.0
  %94 = vmatprep.subr.mxu0 0.0
  %95 = vmatpush1.msra.mxu0 0.0
  %96 = vmatprep.mubr.f32.mxu0 0.0
  %97 = vmatmul.mubr.f32.gmra.mrb[0].mxu0 %v27
  %v98 = vpop.f32.mrb[0].mxu0
  %v99 = vadd.f32 0.0, %v98
  %v100 = vpop.f32.mrb[0].mxu0
  %v101 = vadd.f32 0.0, %v100
  %102 = vmatprep.mubr.f32.mxu0 0.0
  %103 = vmatmul.mubr.f32.gmra.mrb[0].mxu0 %v30
  %v104 = vpop.f32.mrb[0].mxu0
  %v105 = vadd.f32 0.0, %v104
  %v106 = vpop.f32.mrb[0].mxu0
  %v107 = vadd.f32 0.0, %v106
  %108 = vdwg.mxu0
  %109 = vmatprep.subr.mxu0 %v19
  %110 = vmatpush1.msra.mxu0 %v18
  %111 = vmatprep.subr.mxu0 0.0
  %112 = vmatpush1.msra.mxu0 0.0
  %113 = vmatprep.subr.mxu0 0.0
  %114 = vmatpush1.msra.mxu0 0.0
  %115 = vmatprep.subr.mxu0 0.0
  %116 = vmatpush1.msra.mxu0 0.0
  %117 = vmatprep.subr.mxu0 0.0
  %118 = vmatpush1.msra.mxu0 0.0
  %119 = vmatprep.subr.mxu0 0.0
  %120 = vmatpush1.msra.mxu0 0.0
  %121 = vmatprep.subr.mxu0 0.0
  %122 = vmatpush1.msra.mxu0 0.0
  %123 = vmatprep.subr.mxu0 0.0
  %124 = vmatpush1.msra.mxu0 0.0
  %125 = vmatprep.subr.mxu0 0.0
  %126 = vmatpush1.msra.mxu0 0.0
  %127 = vmatprep.subr.mxu0 0.0
  %128 = vmatpush1.msra.mxu0 0.0
  %129 = vmatprep.subr.mxu0 0.0
  %130 = vmatpush1.msra.mxu0 0.0
  %131 = vmatprep.subr.mxu0 0.0
  %132 = vmatpush1.msra.mxu0 0.0
  %133 = vmatprep.subr.mxu0 0.0
  %134 = vmatpush1.msra.mxu0 0.0
  %135 = vmatprep.subr.mxu0 0.0
  %136 = vmatpush1.msra.mxu0 0.0
  %137 = vmatprep.subr.mxu0 0.0
  %138 = vmatpush1.msra.mxu0 0.0
  %139 = vmatprep.subr.mxu0 0.0
  %140 = vmatpush1.msra.mxu0 0.0
  %141 = vmatprep.subr.mxu0 0.0
  %142 = vmatpush1.msra.mxu0 0.0
  %143 = vmatprep.subr.mxu0 0.0
  %144 = vmatpush1.msra.mxu0 0.0
  %145 = vmatprep.subr.mxu0 0.0
  %146 = vmatpush1.msra.mxu0 0.0
  %147 = vmatprep.subr.mxu0 0.0
  %148 = vmatpush1.msra.mxu0 0.0
  %149 = vmatprep.subr.mxu0 0.0
  %150 = vmatpush1.msra.mxu0 0.0
  %151 = vmatprep.subr.mxu0 0.0
  %152 = vmatpush1.msra.mxu0 0.0
  %153 = vmatprep.subr.mxu0 0.0
  %154 = vmatpush1.msra.mxu0 0.0
  %155 = vmatprep.subr.mxu0 0.0
  %156 = vmatpush1.msra.mxu0 0.0
  %157 = vmatprep.subr.mxu0 0.0
  %158 = vmatpush1.msra.mxu0 0.0
  %159 = vmatprep.subr.mxu0 0.0
  %160 = vmatpush1.msra.mxu0 0.0
  %161 = vmatprep.subr.mxu0 0.0
  %162 = vmatpush1.msra.mxu0 0.0
  %163 = vmatprep.subr.mxu0 0.0
  %164 = vmatpush1.msra.mxu0 0.0
  %165 = vmatprep.subr.mxu0 0.0
  %166 = vmatpush1.msra.mxu0 0.0
  %167 = vmatprep.subr.mxu0 0.0
  %168 = vmatpush1.msra.mxu0 0.0
  %169 = vmatprep.subr.mxu0 0.0
  %170 = vmatpush1.msra.mxu0 0.0
  %171 = vmatprep.subr.mxu0 0.0
  %172 = vmatpush1.msra.mxu0 0.0
  %173 = vmatprep.mubr.f32.mxu0 0.0
  %174 = vmatmul.mubr.f32.gmra.mrb[0].mxu0 %v27
  %v175 = vpop.f32.mrb[0].mxu0
  %v176 = vadd.f32 0.0, %v175
  %v177 = vpop.f32.mrb[0].mxu0
  %v178 = vadd.f32 0.0, %v177
  %179 = vmatprep.mubr.f32.mxu0 0.0
  %180 = vmatmul.mubr.f32.gmra.mrb[0].mxu0 %v30
  %v181 = vpop.f32.mrb[0].mxu0
  %v182 = vadd.f32 0.0, %v181
  %v183 = vpop.f32.mrb[0].mxu0
  %v184 = vadd.f32 0.0, %v183
  %185 = vdwg.mxu0
  %186 = vmatprep.subr.mxu0 %v21
  %187 = vmatpush1.msra.mxu0 %v20
  %188 = vmatprep.subr.mxu0 0.0
  %189 = vmatpush1.msra.mxu0 0.0
  %190 = vmatprep.subr.mxu0 0.0
  %191 = vmatpush1.msra.mxu0 0.0
  %192 = vmatprep.subr.mxu0 0.0
  %193 = vmatpush1.msra.mxu0 0.0
  %194 = vmatprep.subr.mxu0 0.0
  %195 = vmatpush1.msra.mxu0 0.0
  %196 = vmatprep.subr.mxu0 0.0
  %197 = vmatpush1.msra.mxu0 0.0
  %198 = vmatprep.subr.mxu0 0.0
  %199 = vmatpush1.msra.mxu0 0.0
  %200 = vmatprep.subr.mxu0 0.0
  %201 = vmatpush1.msra.mxu0 0.0
  %202 = vmatprep.subr.mxu0 0.0
  %203 = vmatpush1.msra.mxu0 0.0
  %204 = vmatprep.subr.mxu0 0.0
  %205 = vmatpush1.msra.mxu0 0.0
  %206 = vmatprep.subr.mxu0 0.0
  %207 = vmatpush1.msra.mxu0 0.0
  %208 = vmatprep.subr.mxu0 0.0
  %209 = vmatpush1.msra.mxu0 0.0
  %210 = vmatprep.subr.mxu0 0.0
  %211 = vmatpush1.msra.mxu0 0.0
  %212 = vmatprep.subr.mxu0 0.0
  %213 = vmatpush1.msra.mxu0 0.0
  %214 = vmatprep.subr.mxu0 0.0
  %215 = vmatpush1.msra.mxu0 0.0
  %216 = vmatprep.subr.mxu0 0.0
  %217 = vmatpush1.msra.mxu0 0.0
  %218 = vmatprep.subr.mxu0 0.0
  %219 = vmatpush1.msra.mxu0 0.0
  %220 = vmatprep.subr.mxu0 0.0
  %221 = vmatpush1.msra.mxu0 0.0
  %222 = vmatprep.subr.mxu0 0.0
  %223 = vmatpush1.msra.mxu0 0.0
  %224 = vmatprep.subr.mxu0 0.0
  %225 = vmatpush1.msra.mxu0 0.0
  %226 = vmatprep.subr.mxu0 0.0
  %227 = vmatpush1.msra.mxu0 0.0
  %228 = vmatprep.subr.mxu0 0.0
  %229 = vmatpush1.msra.mxu0 0.0
  %230 = vmatprep.subr.mxu0 0.0
  %231 = vmatpush1.msra.mxu0 0.0
  %232 = vmatprep.subr.mxu0 0.0
  %233 = vmatpush1.msra.mxu0 0.0
  %234 = vmatprep.subr.mxu0 0.0
  %235 = vmatpush1.msra.mxu0 0.0
  %236 = vmatprep.subr.mxu0 0.0
  %237 = vmatpush1.msra.mxu0 0.0
  %238 = vmatprep.subr.mxu0 0.0
  %239 = vmatpush1.msra.mxu0 0.0
  %240 = vmatprep.subr.mxu0 0.0
  %241 = vmatpush1.msra.mxu0 0.0
  %242 = vmatprep.subr.mxu0 0.0
  %243 = vmatpush1.msra.mxu0 0.0
  %244 = vmatprep.subr.mxu0 0.0
  %245 = vmatpush1.msra.mxu0 0.0
  %246 = vmatprep.subr.mxu0 0.0
  %247 = vmatpush1.msra.mxu0 0.0
  %248 = vmatprep.subr.mxu0 0.0
  %249 = vmatpush1.msra.mxu0 0.0
  %250 = vmatprep.mubr.f32.mxu0 0.0
  %251 = vmatmul.mubr.f32.gmra.mrb[0].mxu0 %v27
  %v252 = vpop.f32.mrb[0].mxu0
  %v253 = vadd.f32 0.0, %v252
  %v254 = vpop.f32.mrb[0].mxu0
  %v255 = vadd.f32 0.0, %v254
  %256 = vmatprep.mubr.f32.mxu0 0.0
  %257 = vmatmul.mubr.f32.gmra.mrb[0].mxu0 %v30
  %v258 = vpop.f32.mrb[0].mxu0
  %v259 = vadd.f32 0.0, %v258
  %v260 = vpop.f32.mrb[0].mxu0
  %v261 = vadd.f32 0.0, %v260
  %262 = vdwg.mxu0
  %263 = vmatprep.subr.mxu0 %v23
  %264 = vmatpush1.msra.mxu0 %v22
  %265 = vmatprep.subr.mxu0 0.0
  %266 = vmatpush1.msra.mxu0 0.0
  %267 = vmatprep.subr.mxu0 0.0
  %268 = vmatpush1.msra.mxu0 0.0
  %269 = vmatprep.subr.mxu0 0.0
  %270 = vmatpush1.msra.mxu0 0.0
  %271 = vmatprep.subr.mxu0 0.0
  %272 = vmatpush1.msra.mxu0 0.0
  %273 = vmatprep.subr.mxu0 0.0
  %274 = vmatpush1.msra.mxu0 0.0
  %275 = vmatprep.subr.mxu0 0.0
  %276 = vmatpush1.msra.mxu0 0.0
  %277 = vmatprep.subr.mxu0 0.0
  %278 = vmatpush1.msra.mxu0 0.0
  %279 = vmatprep.subr.mxu0 0.0
  %280 = vmatpush1.msra.mxu0 0.0
  %281 = vmatprep.subr.mxu0 0.0
  %282 = vmatpush1.msra.mxu0 0.0
  %283 = vmatprep.subr.mxu0 0.0
  %284 = vmatpush1.msra.mxu0 0.0
  %285 = vmatprep.subr.mxu0 0.0
  %286 = vmatpush1.msra.mxu0 0.0
  %287 = vmatprep.subr.mxu0 0.0
  %288 = vmatpush1.msra.mxu0 0.0
  %289 = vmatprep.subr.mxu0 0.0
  %290 = vmatpush1.msra.mxu0 0.0
  %291 = vmatprep.subr.mxu0 0.0
  %292 = vmatpush1.msra.mxu0 0.0
  %293 = vmatprep.subr.mxu0 0.0
  %294 = vmatpush1.msra.mxu0 0.0
  %295 = vmatprep.subr.mxu0 0.0
  %296 = vmatpush1.msra.mxu0 0.0
  %297 = vmatprep.subr.mxu0 0.0
  %298 = vmatpush1.msra.mxu0 0.0
  %299 = vmatprep.subr.mxu0 0.0
  %300 = vmatpush1.msra.mxu0 0.0
  %301 = vmatprep.subr.mxu0 0.0
  %302 = vmatpush1.msra.mxu0 0.0
  %303 = vmatprep.subr.mxu0 0.0
  %304 = vmatpush1.msra.mxu0 0.0
  %305 = vmatprep.subr.mxu0 0.0
  %306 = vmatpush1.msra.mxu0 0.0
  %307 = vmatprep.subr.mxu0 0.0
  %308 = vmatpush1.msra.mxu0 0.0
  %309 = vmatprep.subr.mxu0 0.0
  %310 = vmatpush1.msra.mxu0 0.0
  %311 = vmatprep.subr.mxu0 0.0
  %312 = vmatpush1.msra.mxu0 0.0
  %313 = vmatprep.subr.mxu0 0.0
  %314 = vmatpush1.msra.mxu0 0.0
  %315 = vmatprep.subr.mxu0 0.0
  %316 = vmatpush1.msra.mxu0 0.0
  %317 = vmatprep.subr.mxu0 0.0
  %318 = vmatpush1.msra.mxu0 0.0
  %319 = vmatprep.subr.mxu0 0.0
  %320 = vmatpush1.msra.mxu0 0.0
  %321 = vmatprep.subr.mxu0 0.0
  %322 = vmatpush1.msra.mxu0 0.0
  %323 = vmatprep.subr.mxu0 0.0
  %324 = vmatpush1.msra.mxu0 0.0
  %325 = vmatprep.subr.mxu0 0.0
  %326 = vmatpush1.msra.mxu0 0.0
  %327 = vmatprep.mubr.f32.mxu0 0.0
  %328 = vmatmul.mubr.f32.gmra.mrb[0].mxu0 %v27
  %v329 = vpop.f32.mrb[0].mxu0
  %v330 = vadd.f32 0.0, %v329
  %v331 = vpop.f32.mrb[0].mxu0
  %v332 = vadd.f32 0.0, %v331
  %333 = vmatprep.mubr.f32.mxu0 0.0
  %334 = vmatmul.mubr.f32.gmra.mrb[0].mxu0 %v30
  %v335 = vpop.f32.mrb[0].mxu0
  %v336 = vadd.f32 0.0, %v335
  %v337 = vpop.f32.mrb[0].mxu0
  %v338 = vadd.f32 0.0, %v337
  %339 = vdwg.mxu0
  %340 = vmatprep.subr.mxu0 0.0
  %341 = vmatpush1.msra.mxu0 %v24
  %342 = vmatprep.subr.mxu0 0.0
  %343 = vmatpush1.msra.mxu0 0.0
  %344 = vmatprep.subr.mxu0 0.0
  %345 = vmatpush1.msra.mxu0 0.0
  %346 = vmatprep.subr.mxu0 0.0
  %347 = vmatpush1.msra.mxu0 0.0
  %348 = vmatprep.subr.mxu0 0.0
  %349 = vmatpush1.msra.mxu0 0.0
  %350 = vmatprep.subr.mxu0 0.0
  %351 = vmatpush1.msra.mxu0 0.0
  %352 = vmatprep.subr.mxu0 0.0
  %353 = vmatpush1.msra.mxu0 0.0
  %354 = vmatprep.subr.mxu0 0.0
  %355 = vmatpush1.msra.mxu0 0.0
  %356 = vmatprep.subr.mxu0 0.0
  %357 = vmatpush1.msra.mxu0 0.0
  %358 = vmatprep.subr.mxu0 0.0
  %359 = vmatpush1.msra.mxu0 0.0
  %360 = vmatprep.subr.mxu0 0.0
  %361 = vmatpush1.msra.mxu0 0.0
  %362 = vmatprep.subr.mxu0 0.0
  %363 = vmatpush1.msra.mxu0 0.0
  %364 = vmatprep.subr.mxu0 0.0
  %365 = vmatpush1.msra.mxu0 0.0
  %366 = vmatprep.subr.mxu0 0.0
  %367 = vmatpush1.msra.mxu0 0.0
  %368 = vmatprep.subr.mxu0 0.0
  %369 = vmatpush1.msra.mxu0 0.0
  %370 = vmatprep.subr.mxu0 0.0
  %371 = vmatpush1.msra.mxu0 0.0
  %372 = vmatprep.subr.mxu0 0.0
  %373 = vmatpush1.msra.mxu0 0.0
  %374 = vmatprep.subr.mxu0 0.0
  %375 = vmatpush1.msra.mxu0 0.0
  %376 = vmatprep.subr.mxu0 0.0
  %377 = vmatpush1.msra.mxu0 0.0
  %378 = vmatprep.subr.mxu0 0.0
  %379 = vmatpush1.msra.mxu0 0.0
  %380 = vmatprep.subr.mxu0 0.0
  %381 = vmatpush1.msra.mxu0 0.0
  %382 = vmatprep.subr.mxu0 0.0
  %383 = vmatpush1.msra.mxu0 0.0
  %384 = vmatprep.subr.mxu0 0.0
  %385 = vmatpush1.msra.mxu0 0.0
  %386 = vmatprep.subr.mxu0 0.0
  %387 = vmatpush1.msra.mxu0 0.0
  %388 = vmatprep.subr.mxu0 0.0
  %389 = vmatpush1.msra.mxu0 0.0
  %390 = vmatprep.subr.mxu0 0.0
  %391 = vmatpush1.msra.mxu0 0.0
  %392 = vmatprep.subr.mxu0 0.0
  %393 = vmatpush1.msra.mxu0 0.0
  %394 = vmatprep.subr.mxu0 0.0
  %395 = vmatpush1.msra.mxu0 0.0
  %396 = vmatprep.subr.mxu0 0.0
  %397 = vmatpush1.msra.mxu0 0.0
  %398 = vmatprep.subr.mxu0 0.0
  %399 = vmatpush1.msra.mxu0 0.0
  %400 = vmatprep.subr.mxu0 0.0
  %401 = vmatpush1.msra.mxu0 0.0
  %402 = vmatprep.subr.mxu0 0.0
  %403 = vmatpush1.msra.mxu0 0.0
  %404 = vmatprep.mubr.f32.mxu0 0.0
  %405 = vmatmul.mubr.f32.gmra.mrb[0].mxu0 %v27
  %v406 = vpop.f32.mrb[0].mxu0
  %v407 = vadd.f32 0.0, %v406
  %v408 = vpop.f32.mrb[0].mxu0
  %409 = vmatprep.mubr.f32.mxu0 0.0
  %410 = vmatmul.mubr.f32.gmra.mrb[0].mxu0 %v30
  %v411 = vpop.f32.mrb[0].mxu0
  %v412 = vadd.f32 0.0, %v411
  %v413 = vpop.f32.mrb[0].mxu0
  %414 = vdwg.mxu0
  %v415 = vmul.f32 %v99, 0.70710677
  %v416 = vmul.f32 %v101, 0.70710677
  %v417 = vmul.f32 %v176, 0.70710677
  %v418 = vmul.f32 %v178, 0.70710677
  %v419 = vmul.f32 %v253, 0.70710677
  %v420 = vmul.f32 %v255, 0.70710677
  %v421 = vmul.f32 %v330, 0.70710677
  %v422 = vmul.f32 %v332, 0.70710677
  %v423 = vmul.f32 %v407, 0.70710677
  %v424 = vmul.f32 %v105, 0.70710677
  %v425 = vmul.f32 %v107, 0.70710677
  %v426 = vmul.f32 %v182, 0.70710677
  %v427 = vmul.f32 %v184, 0.70710677
  %v428 = vmul.f32 %v259, 0.70710677
  %v429 = vmul.f32 %v261, 0.70710677
  %v430 = vmul.f32 %v336, 0.70710677
  %v431 = vmul.f32 %v338, 0.70710677
  %v432 = vmul.f32 %v412, 0.70710677
  %v433 = vand.u32 2147483647, %v415
  %v434 = vand.u32 2147483647, %v416
  %v435 = vand.u32 2147483647, %v417
  %v436 = vand.u32 2147483647, %v418
  %v437 = vand.u32 2147483647, %v419
  %v438 = vand.u32 2147483647, %v420
  %v439 = vand.u32 2147483647, %v421
  %v440 = vand.u32 2147483647, %v422
  %v441 = vand.u32 2147483647, %v423
  %v442 = vand.u32 2147483647, %v424
  %v443 = vand.u32 2147483647, %v425
  %v444 = vand.u32 2147483647, %v426
  %v445 = vand.u32 2147483647, %v427
  %v446 = vand.u32 2147483647, %v428
  %v447 = vand.u32 2147483647, %v429
  %v448 = vand.u32 2147483647, %v430
  %v449 = vand.u32 2147483647, %v431
  %v450 = vand.u32 2147483647, %v432
  %v451 = vmul.f32 %v433, 0.3275911
  %v452 = vmul.f32 %v434, 0.3275911
  %v453 = vmul.f32 %v435, 0.3275911
  %v454 = vmul.f32 %v436, 0.3275911
  %v455 = vmul.f32 %v437, 0.3275911
  %v456 = vmul.f32 %v438, 0.3275911
  %v457 = vmul.f32 %v439, 0.3275911
  %v458 = vmul.f32 %v440, 0.3275911
  %v459 = vmul.f32 %v441, 0.3275911
  %v460 = vmul.f32 %v442, 0.3275911
  %v461 = vmul.f32 %v443, 0.3275911
  %v462 = vmul.f32 %v444, 0.3275911
  %v463 = vmul.f32 %v445, 0.3275911
  %v464 = vmul.f32 %v446, 0.3275911
  %v465 = vmul.f32 %v447, 0.3275911
  %v466 = vmul.f32 %v448, 0.3275911
  %v467 = vmul.f32 %v449, 0.3275911
  %v468 = vmul.f32 %v450, 0.3275911
  %v469 = vadd.f32 %v451, 1.0
  %v470 = vadd.f32 %v452, 1.0
  %v471 = vadd.f32 %v453, 1.0
  %v472 = vadd.f32 %v454, 1.0
  %v473 = vadd.f32 %v455, 1.0
  %v474 = vadd.f32 %v456, 1.0
  %v475 = vadd.f32 %v457, 1.0
  %v476 = vadd.f32 %v458, 1.0
  %v477 = vadd.f32 %v459, 1.0
  %v478 = vadd.f32 %v460, 1.0
  %v479 = vadd.f32 %v461, 1.0
  %v480 = vadd.f32 %v462, 1.0
  %v481 = vadd.f32 %v463, 1.0
  %v482 = vadd.f32 %v464, 1.0
  %v483 = vadd.f32 %v465, 1.0
  %v484 = vadd.f32 %v466, 1.0
  %v485 = vadd.f32 %v467, 1.0
  %v486 = vadd.f32 %v468, 1.0
  %v487 = vrcp.pop %v469
  %v488 = vmul.f32 1.0, %v487
  %v489 = vrcp.pop %v470
  %v490 = vmul.f32 1.0, %v489
  %v491 = vrcp.pop %v471
  %v492 = vmul.f32 1.0, %v491
  %v493 = vrcp.pop %v472
  %v494 = vmul.f32 1.0, %v493
  %v495 = vrcp.pop %v473
  %v496 = vmul.f32 1.0, %v495
  %v497 = vrcp.pop %v474
  %v498 = vmul.f32 1.0, %v497
  %v499 = vrcp.pop %v475
  %v500 = vmul.f32 1.0, %v499
  %v501 = vrcp.pop %v476
  %v502 = vmul.f32 1.0, %v501
  %v503 = vrcp.pop %v477
  %v504 = vmul.f32 1.0, %v503
  %v505 = vrcp.pop %v478
  %v506 = vmul.f32 1.0, %v505
  %v507 = vrcp.pop %v479
  %v508 = vmul.f32 1.0, %v507
  %v509 = vrcp.pop %v480
  %v510 = vmul.f32 1.0, %v509
  %v511 = vrcp.pop %v481
  %v512 = vmul.f32 1.0, %v511
  %v513 = vrcp.pop %v482
  %v514 = vmul.f32 1.0, %v513
  %v515 = vrcp.pop %v483
  %v516 = vmul.f32 1.0, %v515
  %v517 = vrcp.pop %v484
  %v518 = vmul.f32 1.0, %v517
  %v519 = vrcp.pop %v485
  %v520 = vmul.f32 1.0, %v519
  %v521 = vrcp.pop %v486
  %v522 = vmul.f32 1.0, %v521
  %v523 = vmul.f32 %v488, 1.0614054
  %v524 = vmul.f32 %v490, 1.0614054
  %v525 = vmul.f32 %v492, 1.0614054
  %v526 = vmul.f32 %v494, 1.0614054
  %v527 = vmul.f32 %v496, 1.0614054
  %v528 = vmul.f32 %v498, 1.0614054
  %v529 = vmul.f32 %v500, 1.0614054
  %v530 = vmul.f32 %v502, 1.0614054
  %v531 = vmul.f32 %v504, 1.0614054
  %v532 = vmul.f32 %v506, 1.0614054
  %v533 = vmul.f32 %v508, 1.0614054
  %v534 = vmul.f32 %v510, 1.0614054
  %v535 = vmul.f32 %v512, 1.0614054
  %v536 = vmul.f32 %v514, 1.0614054
  %v537 = vmul.f32 %v516, 1.0614054
  %v538 = vmul.f32 %v518, 1.0614054
  %v539 = vmul.f32 %v520, 1.0614054
  %v540 = vmul.f32 %v522, 1.0614054
  %v541 = vadd.f32 %v523, -1.4531521
  %v542 = vadd.f32 %v524, -1.4531521
  %v543 = vadd.f32 %v525, -1.4531521
  %v544 = vadd.f32 %v526, -1.4531521
  %v545 = vadd.f32 %v527, -1.4531521
  %v546 = vadd.f32 %v528, -1.4531521
  %v547 = vadd.f32 %v529, -1.4531521
  %v548 = vadd.f32 %v530, -1.4531521
  %v549 = vadd.f32 %v531, -1.4531521
  %v550 = vadd.f32 %v532, -1.4531521
  %v551 = vadd.f32 %v533, -1.4531521
  %v552 = vadd.f32 %v534, -1.4531521
  %v553 = vadd.f32 %v535, -1.4531521
  %v554 = vadd.f32 %v536, -1.4531521
  %v555 = vadd.f32 %v537, -1.4531521
  %v556 = vadd.f32 %v538, -1.4531521
  %v557 = vadd.f32 %v539, -1.4531521
  %v558 = vadd.f32 %v540, -1.4531521
  %v559 = vmul.f32 %v488, %v541
  %v560 = vmul.f32 %v490, %v542
  %v561 = vmul.f32 %v492, %v543
  %v562 = vmul.f32 %v494, %v544
  %v563 = vmul.f32 %v496, %v545
  %v564 = vmul.f32 %v498, %v546
  %v565 = vmul.f32 %v500, %v547
  %v566 = vmul.f32 %v502, %v548
  %v567 = vmul.f32 %v504, %v549
  %v568 = vmul.f32 %v506, %v550
  %v569 = vmul.f32 %v508, %v551
  %v570 = vmul.f32 %v510, %v552
  %v571 = vmul.f32 %v512, %v553
  %v572 = vmul.f32 %v514, %v554
  %v573 = vmul.f32 %v516, %v555
  %v574 = vmul.f32 %v518, %v556
  %v575 = vmul.f32 %v520, %v557
  %v576 = vmul.f32 %v522, %v558
  %v577 = vadd.f32 %v559, 1.4214138
  %v578 = vadd.f32 %v560, 1.4214138
  %v579 = vadd.f32 %v561, 1.4214138
  %v580 = vadd.f32 %v562, 1.4214138
  %v581 = vadd.f32 %v563, 1.4214138
  %v582 = vadd.f32 %v564, 1.4214138
  %v583 = vadd.f32 %v565, 1.4214138
  %v584 = vadd.f32 %v566, 1.4214138
  %v585 = vadd.f32 %v567, 1.4214138
  %v586 = vadd.f32 %v568, 1.4214138
  %v587 = vadd.f32 %v569, 1.4214138
  %v588 = vadd.f32 %v570, 1.4214138
  %v589 = vadd.f32 %v571, 1.4214138
  %v590 = vadd.f32 %v572, 1.4214138
  %v591 = vadd.f32 %v573, 1.4214138
  %v592 = vadd.f32 %v574, 1.4214138
  %v593 = vadd.f32 %v575, 1.4214138
  %v594 = vadd.f32 %v576, 1.4214138
  %v595 = vmul.f32 %v488, %v577
  %v596 = vmul.f32 %v490, %v578
  %v597 = vmul.f32 %v492, %v579
  %v598 = vmul.f32 %v494, %v580
  %v599 = vmul.f32 %v496, %v581
  %v600 = vmul.f32 %v498, %v582
  %v601 = vmul.f32 %v500, %v583
  %v602 = vmul.f32 %v502, %v584
  %v603 = vmul.f32 %v504, %v585
  %v604 = vmul.f32 %v506, %v586
  %v605 = vmul.f32 %v508, %v587
  %v606 = vmul.f32 %v510, %v588
  %v607 = vmul.f32 %v512, %v589
  %v608 = vmul.f32 %v514, %v590
  %v609 = vmul.f32 %v516, %v591
  %v610 = vmul.f32 %v518, %v592
  %v611 = vmul.f32 %v520, %v593
  %v612 = vmul.f32 %v522, %v594
  %v613 = vadd.f32 %v595, -0.28449672
  %v614 = vadd.f32 %v596, -0.28449672
  %v615 = vadd.f32 %v597, -0.28449672
  %v616 = vadd.f32 %v598, -0.28449672
  %v617 = vadd.f32 %v599, -0.28449672
  %v618 = vadd.f32 %v600, -0.28449672
  %v619 = vadd.f32 %v601, -0.28449672
  %v620 = vadd.f32 %v602, -0.28449672
  %v621 = vadd.f32 %v603, -0.28449672
  %v622 = vadd.f32 %v604, -0.28449672
  %v623 = vadd.f32 %v605, -0.28449672
  %v624 = vadd.f32 %v606, -0.28449672
  %v625 = vadd.f32 %v607, -0.28449672
  %v626 = vadd.f32 %v608, -0.28449672
  %v627 = vadd.f32 %v609, -0.28449672
  %v628 = vadd.f32 %v610, -0.28449672
  %v629 = vadd.f32 %v611, -0.28449672
  %v630 = vadd.f32 %v612, -0.28449672
  %v631 = vmul.f32 %v488, %v613
  %v632 = vmul.f32 %v490, %v614
  %v633 = vmul.f32 %v492, %v615
  %v634 = vmul.f32 %v494, %v616
  %v635 = vmul.f32 %v496, %v617
  %v636 = vmul.f32 %v498, %v618
  %v637 = vmul.f32 %v500, %v619
  %v638 = vmul.f32 %v502, %v620
  %v639 = vmul.f32 %v504, %v621
  %v640 = vmul.f32 %v506, %v622
  %v641 = vmul.f32 %v508, %v623
  %v642 = vmul.f32 %v510, %v624
  %v643 = vmul.f32 %v512, %v625
  %v644 = vmul.f32 %v514, %v626
  %v645 = vmul.f32 %v516, %v627
  %v646 = vmul.f32 %v518, %v628
  %v647 = vmul.f32 %v520, %v629
  %v648 = vmul.f32 %v522, %v630
  %v649 = vadd.f32 %v631, 0.2548296
  %v650 = vadd.f32 %v632, 0.2548296
  %v651 = vadd.f32 %v633, 0.2548296
  %v652 = vadd.f32 %v634, 0.2548296
  %v653 = vadd.f32 %v635, 0.2548296
  %v654 = vadd.f32 %v636, 0.2548296
  %v655 = vadd.f32 %v637, 0.2548296
  %v656 = vadd.f32 %v638, 0.2548296
  %v657 = vadd.f32 %v639, 0.2548296
  %v658 = vadd.f32 %v640, 0.2548296
  %v659 = vadd.f32 %v641, 0.2548296
  %v660 = vadd.f32 %v642, 0.2548296
  %v661 = vadd.f32 %v643, 0.2548296
  %v662 = vadd.f32 %v644, 0.2548296
  %v663 = vadd.f32 %v645, 0.2548296
  %v664 = vadd.f32 %v646, 0.2548296
  %v665 = vadd.f32 %v647, 0.2548296
  %v666 = vadd.f32 %v648, 0.2548296
  %v667 = vmul.f32 %v488, %v649
  %v668 = vmul.f32 %v490, %v650
  %v669 = vmul.f32 %v492, %v651
  %v670 = vmul.f32 %v494, %v652
  %v671 = vmul.f32 %v496, %v653
  %v672 = vmul.f32 %v498, %v654
  %v673 = vmul.f32 %v500, %v655
  %v674 = vmul.f32 %v502, %v656
  %v675 = vmul.f32 %v504, %v657
  %v676 = vmul.f32 %v506, %v658
  %v677 = vmul.f32 %v508, %v659
  %v678 = vmul.f32 %v510, %v660
  %v679 = vmul.f32 %v512, %v661
  %v680 = vmul.f32 %v514, %v662
  %v681 = vmul.f32 %v516, %v663
  %v682 = vmul.f32 %v518, %v664
  %v683 = vmul.f32 %v520, %v665
  %v684 = vmul.f32 %v522, %v666
  %v685 = vsub.f32 0.0, %v433
  %v686 = vsub.f32 0.0, %v434
  %v687 = vsub.f32 0.0, %v435
  %v688 = vsub.f32 0.0, %v436
  %v689 = vsub.f32 0.0, %v437
  %v690 = vsub.f32 0.0, %v438
  %v691 = vsub.f32 0.0, %v439
  %v692 = vsub.f32 0.0, %v440
  %v693 = vsub.f32 0.0, %v441
  %v694 = vsub.f32 0.0, %v442
  %v695 = vsub.f32 0.0, %v443
  %v696 = vsub.f32 0.0, %v444
  %v697 = vsub.f32 0.0, %v445
  %v698 = vsub.f32 0.0, %v446
  %v699 = vsub.f32 0.0, %v447
  %v700 = vsub.f32 0.0, %v448
  %v701 = vsub.f32 0.0, %v449
  %v702 = vsub.f32 0.0, %v450
  %v703 = vmul.f32 %v685, %v433
  %v704 = vmul.f32 %v686, %v434
  %v705 = vmul.f32 %v687, %v435
  %v706 = vmul.f32 %v688, %v436
  %v707 = vmul.f32 %v689, %v437
  %v708 = vmul.f32 %v690, %v438
  %v709 = vmul.f32 %v691, %v439
  %v710 = vmul.f32 %v692, %v440
  %v711 = vmul.f32 %v693, %v441
  %v712 = vmul.f32 %v694, %v442
  %v713 = vmul.f32 %v695, %v443
  %v714 = vmul.f32 %v696, %v444
  %v715 = vmul.f32 %v697, %v445
  %v716 = vmul.f32 %v698, %v446
  %v717 = vmul.f32 %v699, %v447
  %v718 = vmul.f32 %v700, %v448
  %v719 = vmul.f32 %v701, %v449
  %v720 = vmul.f32 %v702, %v450
  %v721 = vmul.f32 %v703, 1.442695
  %v722 = vpow.pop %v721
  %v723 = vmul.f32 %v704, 1.442695
  %v724 = vpow.pop %v723
  %v725 = vmul.f32 %v705, 1.442695
  %v726 = vpow.pop %v725
  %v727 = vmul.f32 %v706, 1.442695
  %v728 = vpow.pop %v727
  %v729 = vmul.f32 %v707, 1.442695
  %v730 = vpow.pop %v729
  %v731 = vmul.f32 %v708, 1.442695
  %v732 = vpow.pop %v731
  %v733 = vmul.f32 %v709, 1.442695
  %v734 = vpow.pop %v733
  %v735 = vmul.f32 %v710, 1.442695
  %v736 = vpow.pop %v735
  %v737 = vmul.f32 %v711, 1.442695
  %v738 = vpow.pop %v737
  %v739 = vmul.f32 %v712, 1.442695
  %v740 = vpow.pop %v739
  %v741 = vmul.f32 %v713, 1.442695
  %v742 = vpow.pop %v741
  %v743 = vmul.f32 %v714, 1.442695
  %v744 = vpow.pop %v743
  %v745 = vmul.f32 %v715, 1.442695
  %v746 = vpow.pop %v745
  %v747 = vmul.f32 %v716, 1.442695
  %v748 = vpow.pop %v747
  %v749 = vmul.f32 %v717, 1.442695
  %v750 = vpow.pop %v749
  %v751 = vmul.f32 %v718, 1.442695
  %v752 = vpow.pop %v751
  %v753 = vmul.f32 %v719, 1.442695
  %v754 = vpow.pop %v753
  %v755 = vmul.f32 %v720, 1.442695
  %v756 = vpow.pop %v755
  %v757 = vmul.f32 %v667, %v722
  %v758 = vmul.f32 %v668, %v724
  %v759 = vmul.f32 %v669, %v726
  %v760 = vmul.f32 %v670, %v728
  %v761 = vmul.f32 %v671, %v730
  %v762 = vmul.f32 %v672, %v732
  %v763 = vmul.f32 %v673, %v734
  %v764 = vmul.f32 %v674, %v736
  %v765 = vmul.f32 %v675, %v738
  %v766 = vmul.f32 %v676, %v740
  %v767 = vmul.f32 %v677, %v742
  %v768 = vmul.f32 %v678, %v744
  %v769 = vmul.f32 %v679, %v746
  %v770 = vmul.f32 %v680, %v748
  %v771 = vmul.f32 %v681, %v750
  %v772 = vmul.f32 %v682, %v752
  %v773 = vmul.f32 %v683, %v754
  %v774 = vmul.f32 %v684, %v756
  %v775 = vsub.f32 1.0, %v757
  %v776 = vsub.f32 1.0, %v758
  %v777 = vsub.f32 1.0, %v759
  %v778 = vsub.f32 1.0, %v760
  %v779 = vsub.f32 1.0, %v761
  %v780 = vsub.f32 1.0, %v762
  %v781 = vsub.f32 1.0, %v763
  %v782 = vsub.f32 1.0, %v764
  %v783 = vsub.f32 1.0, %v765
  %v784 = vsub.f32 1.0, %v766
  %v785 = vsub.f32 1.0, %v767
  %v786 = vsub.f32 1.0, %v768
  %v787 = vsub.f32 1.0, %v769
  %v788 = vsub.f32 1.0, %v770
  %v789 = vsub.f32 1.0, %v771
  %v790 = vsub.f32 1.0, %v772
  %v791 = vsub.f32 1.0, %v773
  %v792 = vsub.f32 1.0, %v774
  %vm793 = vcmp.ge.f32.partialorder %v415, 0.0
  %vm794 = vcmp.ge.f32.partialorder %v416, 0.0
  %vm795 = vcmp.ge.f32.partialorder %v417, 0.0
  %vm796 = vcmp.ge.f32.partialorder %v418, 0.0
  %vm797 = vcmp.ge.f32.partialorder %v419, 0.0
  %vm798 = vcmp.ge.f32.partialorder %v420, 0.0
  %vm799 = vcmp.ge.f32.partialorder %v421, 0.0
  %vm800 = vcmp.ge.f32.partialorder %v422, 0.0
  %vm801 = vcmp.ge.f32.partialorder %v423, 0.0
  %vm802 = vcmp.ge.f32.partialorder %v424, 0.0
  %vm803 = vcmp.ge.f32.partialorder %v425, 0.0
  %vm804 = vcmp.ge.f32.partialorder %v426, 0.0
  %vm805 = vcmp.ge.f32.partialorder %v427, 0.0
  %vm806 = vcmp.ge.f32.partialorder %v428, 0.0
  %vm807 = vcmp.ge.f32.partialorder %v429, 0.0
  %vm808 = vcmp.ge.f32.partialorder %v430, 0.0
  %vm809 = vcmp.ge.f32.partialorder %v431, 0.0
  %vm810 = vcmp.ge.f32.partialorder %v432, 0.0
  %v811 = vsub.f32 0.0, %v775
  %v812 = vsub.f32 0.0, %v776
  %v813 = vsub.f32 0.0, %v777
  %v814 = vsub.f32 0.0, %v778
  %v815 = vsub.f32 0.0, %v779
  %v816 = vsub.f32 0.0, %v780
  %v817 = vsub.f32 0.0, %v781
  %v818 = vsub.f32 0.0, %v782
  %v819 = vsub.f32 0.0, %v783
  %v820 = vsub.f32 0.0, %v784
  %v821 = vsub.f32 0.0, %v785
  %v822 = vsub.f32 0.0, %v786
  %v823 = vsub.f32 0.0, %v787
  %v824 = vsub.f32 0.0, %v788
  %v825 = vsub.f32 0.0, %v789
  %v826 = vsub.f32 0.0, %v790
  %v827 = vsub.f32 0.0, %v791
  %v828 = vsub.f32 0.0, %v792
  %v829 = vsel %vm793, %v775, %v811
  %v830 = vsel %vm794, %v776, %v812
  %v831 = vsel %vm795, %v777, %v813
  %v832 = vsel %vm796, %v778, %v814
  %v833 = vsel %vm797, %v779, %v815
  %v834 = vsel %vm798, %v780, %v816
  %v835 = vsel %vm799, %v781, %v817
  %v836 = vsel %vm800, %v782, %v818
  %v837 = vsel %vm801, %v783, %v819
  %v838 = vsel %vm802, %v784, %v820
  %v839 = vsel %vm803, %v785, %v821
  %v840 = vsel %vm804, %v786, %v822
  %v841 = vsel %vm805, %v787, %v823
  %v842 = vsel %vm806, %v788, %v824
  %v843 = vsel %vm807, %v789, %v825
  %v844 = vsel %vm808, %v790, %v826
  %v845 = vsel %vm809, %v791, %v827
  %v846 = vsel %vm810, %v792, %v828
  %v847 = vmul.f32 %v99, 0.5
  %v848 = vmul.f32 %v101, 0.5
  %v849 = vmul.f32 %v176, 0.5
  %v850 = vmul.f32 %v178, 0.5
  %v851 = vmul.f32 %v253, 0.5
  %v852 = vmul.f32 %v255, 0.5
  %v853 = vmul.f32 %v330, 0.5
  %v854 = vmul.f32 %v332, 0.5
  %v855 = vmul.f32 %v407, 0.5
  %v856 = vmul.f32 %v105, 0.5
  %v857 = vmul.f32 %v107, 0.5
  %v858 = vmul.f32 %v182, 0.5
  %v859 = vmul.f32 %v184, 0.5
  %v860 = vmul.f32 %v259, 0.5
  %v861 = vmul.f32 %v261, 0.5
  %v862 = vmul.f32 %v336, 0.5
  %v863 = vmul.f32 %v338, 0.5
  %v864 = vmul.f32 %v412, 0.5
  %v865 = vadd.f32 %v829, 1.0
  %v866 = vadd.f32 %v830, 1.0
  %v867 = vadd.f32 %v831, 1.0
  %v868 = vadd.f32 %v832, 1.0
  %v869 = vadd.f32 %v833, 1.0
  %v870 = vadd.f32 %v834, 1.0
  %v871 = vadd.f32 %v835, 1.0
  %v872 = vadd.f32 %v836, 1.0
  %v873 = vadd.f32 %v837, 1.0
  %v874 = vadd.f32 %v838, 1.0
  %v875 = vadd.f32 %v839, 1.0
  %v876 = vadd.f32 %v840, 1.0
  %v877 = vadd.f32 %v841, 1.0
  %v878 = vadd.f32 %v842, 1.0
  %v879 = vadd.f32 %v843, 1.0
  %v880 = vadd.f32 %v844, 1.0
  %v881 = vadd.f32 %v845, 1.0
  %v882 = vadd.f32 %v846, 1.0
  %v883 = vmul.f32 %v847, %v865
  %v884 = vmul.f32 %v848, %v866
  %v885 = vmul.f32 %v849, %v867
  %v886 = vmul.f32 %v850, %v868
  %v887 = vmul.f32 %v851, %v869
  %v888 = vmul.f32 %v852, %v870
  %v889 = vmul.f32 %v853, %v871
  %v890 = vmul.f32 %v854, %v872
  %v891 = vmul.f32 %v855, %v873
  %v892 = vmul.f32 %v856, %v874
  %v893 = vmul.f32 %v857, %v875
  %v894 = vmul.f32 %v858, %v876
  %v895 = vmul.f32 %v859, %v877
  %v896 = vmul.f32 %v860, %v878
  %v897 = vmul.f32 %v861, %v879
  %v898 = vmul.f32 %v862, %v880
  %v899 = vmul.f32 %v863, %v881
  %v900 = vmul.f32 %v864, %v882
  %v901 = vld [vmem:[%s1 + $0x8] sm:$0xff]
  %v902 = vld [vmem:[%s1 + $0x90] sm:$0xff]
  %vm903 = vcmask 130048
  %v905 = vsel %vm903, %v901, 0
  %v908 = vsel %vm903, %v902, 0
  %910 = vmatprep.subr.mxu0 %v884
  %911 = vmatpush1.msra.mxu0 %v883
  %912 = vmatprep.subr.mxu0 %v893
  %913 = vmatpush1.msra.mxu0 %v892
  %914 = vmatprep.subr.mxu0 0.0
  %915 = vmatpush1.msra.mxu0 0.0
  %916 = vmatprep.subr.mxu0 0.0
  %917 = vmatpush1.msra.mxu0 0.0
  %918 = vmatprep.subr.mxu0 0.0
  %919 = vmatpush1.msra.mxu0 0.0
  %920 = vmatprep.subr.mxu0 0.0
  %921 = vmatpush1.msra.mxu0 0.0
  %922 = vmatprep.subr.mxu0 0.0
  %923 = vmatpush1.msra.mxu0 0.0
  %924 = vmatprep.subr.mxu0 0.0
  %925 = vmatpush1.msra.mxu0 0.0
  %926 = vmatprep.subr.mxu0 0.0
  %927 = vmatpush1.msra.mxu0 0.0
  %928 = vmatprep.subr.mxu0 0.0
  %929 = vmatpush1.msra.mxu0 0.0
  %930 = vmatprep.subr.mxu0 0.0
  %931 = vmatpush1.msra.mxu0 0.0
  %932 = vmatprep.subr.mxu0 0.0
  %933 = vmatpush1.msra.mxu0 0.0
  %934 = vmatprep.subr.mxu0 0.0
  %935 = vmatpush1.msra.mxu0 0.0
  %936 = vmatprep.subr.mxu0 0.0
  %937 = vmatpush1.msra.mxu0 0.0
  %938 = vmatprep.subr.mxu0 0.0
  %939 = vmatpush1.msra.mxu0 0.0
  %940 = vmatprep.subr.mxu0 0.0
  %941 = vmatpush1.msra.mxu0 0.0
  %942 = vmatprep.subr.mxu0 0.0
  %943 = vmatpush1.msra.mxu0 0.0
  %944 = vmatprep.subr.mxu0 0.0
  %945 = vmatpush1.msra.mxu0 0.0
  %946 = vmatprep.subr.mxu0 0.0
  %947 = vmatpush1.msra.mxu0 0.0
  %948 = vmatprep.subr.mxu0 0.0
  %949 = vmatpush1.msra.mxu0 0.0
  %950 = vmatprep.subr.mxu0 0.0
  %951 = vmatpush1.msra.mxu0 0.0
  %952 = vmatprep.subr.mxu0 0.0
  %953 = vmatpush1.msra.mxu0 0.0
  %954 = vmatprep.subr.mxu0 0.0
  %955 = vmatpush1.msra.mxu0 0.0
  %956 = vmatprep.subr.mxu0 0.0
  %957 = vmatpush1.msra.mxu0 0.0
  %958 = vmatprep.subr.mxu0 0.0
  %959 = vmatpush1.msra.mxu0 0.0
  %960 = vmatprep.subr.mxu0 0.0
  %961 = vmatpush1.msra.mxu0 0.0
  %962 = vmatprep.subr.mxu0 0.0
  %963 = vmatpush1.msra.mxu0 0.0
  %964 = vmatprep.subr.mxu0 0.0
  %965 = vmatpush1.msra.mxu0 0.0
  %966 = vmatprep.subr.mxu0 0.0
  %967 = vmatpush1.msra.mxu0 0.0
  %968 = vmatprep.subr.mxu0 0.0
  %969 = vmatpush1.msra.mxu0 0.0
  %970 = vmatprep.subr.mxu0 0.0
  %971 = vmatpush1.msra.mxu0 0.0
  %972 = vmatprep.subr.mxu0 0.0
  %973 = vmatpush1.msra.mxu0 0.0
  %974 = vmatprep.mubr.f32.mxu0 0.0
  %975 = vmatmul.mubr.f32.gmra.mrb[0].mxu0 %v905
  %v976 = vpop.f32.mrb[0].mxu0
  %v977 = vadd.f32 0.0, %v976
  %v978 = vpop.f32.mrb[0].mxu0
  %v979 = vadd.f32 0.0, %v978
  %980 = vmatprep.mubr.f32.mxu0 0.0
  %981 = vmatmul.mubr.f32.gmra.mrb[0].mxu0 %v908
  %v982 = vpop.f32.mrb[0].mxu0
  %v983 = vadd.f32 0.0, %v982
  %v984 = vpop.f32.mrb[0].mxu0
  %v985 = vadd.f32 0.0, %v984
  %986 = vdwg.mxu0
  %987 = vmatprep.subr.mxu0 %v886
  %988 = vmatpush1.msra.mxu0 %v885
  %989 = vmatprep.subr.mxu0 %v895
  %990 = vmatpush1.msra.mxu0 %v894
  %991 = vmatprep.subr.mxu0 0.0
  %992 = vmatpush1.msra.mxu0 0.0
  %993 = vmatprep.subr.mxu0 0.0
  %994 = vmatpush1.msra.mxu0 0.0
  %995 = vmatprep.subr.mxu0 0.0
  %996 = vmatpush1.msra.mxu0 0.0
  %997 = vmatprep.subr.mxu0 0.0
  %998 = vmatpush1.msra.mxu0 0.0
  %999 = vmatprep.subr.mxu0 0.0
  %1000 = vmatpush1.msra.mxu0 0.0
  %1001 = vmatprep.subr.mxu0 0.0
  %1002 = vmatpush1.msra.mxu0 0.0
  %1003 = vmatprep.subr.mxu0 0.0
  %1004 = vmatpush1.msra.mxu0 0.0
  %1005 = vmatprep.subr.mxu0 0.0
  %1006 = vmatpush1.msra.mxu0 0.0
  %1007 = vmatprep.subr.mxu0 0.0
  %1008 = vmatpush1.msra.mxu0 0.0
  %1009 = vmatprep.subr.mxu0 0.0
  %1010 = vmatpush1.msra.mxu0 0.0
  %1011 = vmatprep.subr.mxu0 0.0
  %1012 = vmatpush1.msra.mxu0 0.0
  %1013 = vmatprep.subr.mxu0 0.0
  %1014 = vmatpush1.msra.mxu0 0.0
  %1015 = vmatprep.subr.mxu0 0.0
  %1016 = vmatpush1.msra.mxu0 0.0
  %1017 = vmatprep.subr.mxu0 0.0
  %1018 = vmatpush1.msra.mxu0 0.0
  %1019 = vmatprep.subr.mxu0 0.0
  %1020 = vmatpush1.msra.mxu0 0.0
  %1021 = vmatprep.subr.mxu0 0.0
  %1022 = vmatpush1.msra.mxu0 0.0
  %1023 = vmatprep.subr.mxu0 0.0
  %1024 = vmatpush1.msra.mxu0 0.0
  %1025 = vmatprep.subr.mxu0 0.0
  %1026 = vmatpush1.msra.mxu0 0.0
  %1027 = vmatprep.subr.mxu0 0.0
  %1028 = vmatpush1.msra.mxu0 0.0
  %1029 = vmatprep.subr.mxu0 0.0
  %1030 = vmatpush1.msra.mxu0 0.0
  %1031 = vmatprep.subr.mxu0 0.0
  %1032 = vmatpush1.msra.mxu0 0.0
  %1033 = vmatprep.subr.mxu0 0.0
  %1034 = vmatpush1.msra.mxu0 0.0
  %1035 = vmatprep.subr.mxu0 0.0
  %1036 = vmatpush1.msra.mxu0 0.0
  %1037 = vmatprep.subr.mxu0 0.0
  %1038 = vmatpush1.msra.mxu0 0.0
  %1039 = vmatprep.subr.mxu0 0.0
  %1040 = vmatpush1.msra.mxu0 0.0
  %1041 = vmatprep.subr.mxu0 0.0
  %1042 = vmatpush1.msra.mxu0 0.0
  %1043 = vmatprep.subr.mxu0 0.0
  %1044 = vmatpush1.msra.mxu0 0.0
  %1045 = vmatprep.subr.mxu0 0.0
  %1046 = vmatpush1.msra.mxu0 0.0
  %1047 = vmatprep.subr.mxu0 0.0
  %1048 = vmatpush1.msra.mxu0 0.0
  %1049 = vmatprep.subr.mxu0 0.0
  %1050 = vmatpush1.msra.mxu0 0.0
  %1051 = vmatprep.mubr.f32.mxu0 0.0
  %1052 = vmatmul.mubr.f32.gmra.mrb[0].mxu0 %v905
  %v1053 = vpop.f32.mrb[0].mxu0
  %v1054 = vadd.f32 0.0, %v1053
  %v1055 = vpop.f32.mrb[0].mxu0
  %v1056 = vadd.f32 0.0, %v1055
  %1057 = vmatprep.mubr.f32.mxu0 0.0
  %1058 = vmatmul.mubr.f32.gmra.mrb[0].mxu0 %v908
  %v1059 = vpop.f32.mrb[0].mxu0
  %v1060 = vadd.f32 0.0, %v1059
  %v1061 = vpop.f32.mrb[0].mxu0
  %v1062 = vadd.f32 0.0, %v1061
  %1063 = vdwg.mxu0
  %1064 = vmatprep.subr.mxu0 %v888
  %1065 = vmatpush1.msra.mxu0 %v887
  %1066 = vmatprep.subr.mxu0 %v897
  %1067 = vmatpush1.msra.mxu0 %v896
  %1068 = vmatprep.subr.mxu0 0.0
  %1069 = vmatpush1.msra.mxu0 0.0
  %1070 = vmatprep.subr.mxu0 0.0
  %1071 = vmatpush1.msra.mxu0 0.0
  %1072 = vmatprep.subr.mxu0 0.0
  %1073 = vmatpush1.msra.mxu0 0.0
  %1074 = vmatprep.subr.mxu0 0.0
  %1075 = vmatpush1.msra.mxu0 0.0
  %1076 = vmatprep.subr.mxu0 0.0
  %1077 = vmatpush1.msra.mxu0 0.0
  %1078 = vmatprep.subr.mxu0 0.0
  %1079 = vmatpush1.msra.mxu0 0.0
  %1080 = vmatprep.subr.mxu0 0.0
  %1081 = vmatpush1.msra.mxu0 0.0
  %1082 = vmatprep.subr.mxu0 0.0
  %1083 = vmatpush1.msra.mxu0 0.0
  %1084 = vmatprep.subr.mxu0 0.0
  %1085 = vmatpush1.msra.mxu0 0.0
  %1086 = vmatprep.subr.mxu0 0.0
  %1087 = vmatpush1.msra.mxu0 0.0
  %1088 = vmatprep.subr.mxu0 0.0
  %1089 = vmatpush1.msra.mxu0 0.0
  %1090 = vmatprep.subr.mxu0 0.0
  %1091 = vmatpush1.msra.mxu0 0.0
  %1092 = vmatprep.subr.mxu0 0.0
  %1093 = vmatpush1.msra.mxu0 0.0
  %1094 = vmatprep.subr.mxu0 0.0
  %1095 = vmatpush1.msra.mxu0 0.0
  %1096 = vmatprep.subr.mxu0 0.0
  %1097 = vmatpush1.msra.mxu0 0.0
  %1098 = vmatprep.subr.mxu0 0.0
  %1099 = vmatpush1.msra.mxu0 0.0
  %1100 = vmatprep.subr.mxu0 0.0
  %1101 = vmatpush1.msra.mxu0 0.0
  %1102 = vmatprep.subr.mxu0 0.0
  %1103 = vmatpush1.msra.mxu0 0.0
  %1104 = vmatprep.subr.mxu0 0.0
  %1105 = vmatpush1.msra.mxu0 0.0
  %1106 = vmatprep.subr.mxu0 0.0
  %1107 = vmatpush1.msra.mxu0 0.0
  %1108 = vmatprep.subr.mxu0 0.0
  %1109 = vmatpush1.msra.mxu0 0.0
  %1110 = vmatprep.subr.mxu0 0.0
  %1111 = vmatpush1.msra.mxu0 0.0
  %1112 = vmatprep.subr.mxu0 0.0
  %1113 = vmatpush1.msra.mxu0 0.0
  %1114 = vmatprep.subr.mxu0 0.0
  %1115 = vmatpush1.msra.mxu0 0.0
  %1116 = vmatprep.subr.mxu0 0.0
  %1117 = vmatpush1.msra.mxu0 0.0
  %1118 = vmatprep.subr.mxu0 0.0
  %1119 = vmatpush1.msra.mxu0 0.0
  %1120 = vmatprep.subr.mxu0 0.0
  %1121 = vmatpush1.msra.mxu0 0.0
  %1122 = vmatprep.subr.mxu0 0.0
  %1123 = vmatpush1.msra.mxu0 0.0
  %1124 = vmatprep.subr.mxu0 0.0
  %1125 = vmatpush1.msra.mxu0 0.0
  %1126 = vmatprep.subr.mxu0 0.0
  %1127 = vmatpush1.msra.mxu0 0.0
  %1128 = vmatprep.mubr.f32.mxu0 0.0
  %1129 = vmatmul.mubr.f32.gmra.mrb[0].mxu0 %v905
  %v1130 = vpop.f32.mrb[0].mxu0
  %v1131 = vadd.f32 0.0, %v1130
  %v1132 = vpop.f32.mrb[0].mxu0
  %v1133 = vadd.f32 0.0, %v1132
  %1134 = vmatprep.mubr.f32.mxu0 0.0
  %1135 = vmatmul.mubr.f32.gmra.mrb[0].mxu0 %v908
  %v1136 = vpop.f32.mrb[0].mxu0
  %v1137 = vadd.f32 0.0, %v1136
  %v1138 = vpop.f32.mrb[0].mxu0
  %v1139 = vadd.f32 0.0, %v1138
  %1140 = vdwg.mxu0
  %1141 = vmatprep.subr.mxu0 %v890
  %1142 = vmatpush1.msra.mxu0 %v889
  %1143 = vmatprep.subr.mxu0 %v899
  %1144 = vmatpush1.msra.mxu0 %v898
  %1145 = vmatprep.subr.mxu0 0.0
  %1146 = vmatpush1.msra.mxu0 0.0
  %1147 = vmatprep.subr.mxu0 0.0
  %1148 = vmatpush1.msra.mxu0 0.0
  %1149 = vmatprep.subr.mxu0 0.0
  %1150 = vmatpush1.msra.mxu0 0.0
  %1151 = vmatprep.subr.mxu0 0.0
  %1152 = vmatpush1.msra.mxu0 0.0
  %1153 = vmatprep.subr.mxu0 0.0
  %1154 = vmatpush1.msra.mxu0 0.0
  %1155 = vmatprep.subr.mxu0 0.0
  %1156 = vmatpush1.msra.mxu0 0.0
  %1157 = vmatprep.subr.mxu0 0.0
  %1158 = vmatpush1.msra.mxu0 0.0
  %1159 = vmatprep.subr.mxu0 0.0
  %1160 = vmatpush1.msra.mxu0 0.0
  %1161 = vmatprep.subr.mxu0 0.0
  %1162 = vmatpush1.msra.mxu0 0.0
  %1163 = vmatprep.subr.mxu0 0.0
  %1164 = vmatpush1.msra.mxu0 0.0
  %1165 = vmatprep.subr.mxu0 0.0
  %1166 = vmatpush1.msra.mxu0 0.0
  %1167 = vmatprep.subr.mxu0 0.0
  %1168 = vmatpush1.msra.mxu0 0.0
  %1169 = vmatprep.subr.mxu0 0.0
  %1170 = vmatpush1.msra.mxu0 0.0
  %1171 = vmatprep.subr.mxu0 0.0
  %1172 = vmatpush1.msra.mxu0 0.0
  %1173 = vmatprep.subr.mxu0 0.0
  %1174 = vmatpush1.msra.mxu0 0.0
  %1175 = vmatprep.subr.mxu0 0.0
  %1176 = vmatpush1.msra.mxu0 0.0
  %1177 = vmatprep.subr.mxu0 0.0
  %1178 = vmatpush1.msra.mxu0 0.0
  %1179 = vmatprep.subr.mxu0 0.0
  %1180 = vmatpush1.msra.mxu0 0.0
  %1181 = vmatprep.subr.mxu0 0.0
  %1182 = vmatpush1.msra.mxu0 0.0
  %1183 = vmatprep.subr.mxu0 0.0
  %1184 = vmatpush1.msra.mxu0 0.0
  %1185 = vmatprep.subr.mxu0 0.0
  %1186 = vmatpush1.msra.mxu0 0.0
  %1187 = vmatprep.subr.mxu0 0.0
  %1188 = vmatpush1.msra.mxu0 0.0
  %1189 = vmatprep.subr.mxu0 0.0
  %1190 = vmatpush1.msra.mxu0 0.0
  %1191 = vmatprep.subr.mxu0 0.0
  %1192 = vmatpush1.msra.mxu0 0.0
  %1193 = vmatprep.subr.mxu0 0.0
  %1194 = vmatpush1.msra.mxu0 0.0
  %1195 = vmatprep.subr.mxu0 0.0
  %1196 = vmatpush1.msra.mxu0 0.0
  %1197 = vmatprep.subr.mxu0 0.0
  %1198 = vmatpush1.msra.mxu0 0.0
  %1199 = vmatprep.subr.mxu0 0.0
  %1200 = vmatpush1.msra.mxu0 0.0
  %1201 = vmatprep.subr.mxu0 0.0
  %1202 = vmatpush1.msra.mxu0 0.0
  %1203 = vmatprep.subr.mxu0 0.0
  %1204 = vmatpush1.msra.mxu0 0.0
  %1205 = vmatprep.mubr.f32.mxu0 0.0
  %1206 = vmatmul.mubr.f32.gmra.mrb[0].mxu0 %v905
  %v1207 = vpop.f32.mrb[0].mxu0
  %v1208 = vadd.f32 0.0, %v1207
  %v1209 = vpop.f32.mrb[0].mxu0
  %v1210 = vadd.f32 0.0, %v1209
  %1211 = vmatprep.mubr.f32.mxu0 0.0
  %1212 = vmatmul.mubr.f32.gmra.mrb[0].mxu0 %v908
  %v1213 = vpop.f32.mrb[0].mxu0
  %v1214 = vadd.f32 0.0, %v1213
  %v1215 = vpop.f32.mrb[0].mxu0
  %v1216 = vadd.f32 0.0, %v1215
  %1217 = vdwg.mxu0
  %v1218 = vld [vmem:[%s1 + $0x10] sm:$0xff]
  %v1219 = vld [vmem:[%s1 + $0x98] sm:$0xff]
  %1221 = vset.pattern.permute.xlu0 0
  %1222 = vperm.xlu0 %1221, %v1218
  %v1223 = vpop.permute.xlu0 %1222
  %1226 = vset.pattern.permute.xlu0 0
  %1227 = vperm.xlu0 %1226, %v1219
  %v1228 = vpop.permute.xlu0 %1227
  %v1230 = vmul.f32 %v1223, %v977
  %v1231 = vmul.f32 %v1228, %v983
  %1232 = vset.pattern.permute.xlu0 1
  %1233 = vperm.xlu0 %1232, %v1218
  %v1234 = vpop.permute.xlu0 %1233
  %1236 = vset.pattern.permute.xlu0 1
  %1237 = vperm.xlu0 %1236, %v1219
  %v1238 = vpop.permute.xlu0 %1237
  %v1240 = vmul.f32 %v1234, %v979
  %v1241 = vmul.f32 %v1238, %v985
  %v1242 = vadd.f32 %v1230, %v1240
  %v1243 = vadd.f32 %v1231, %v1241
  %1244 = vset.pattern.permute.xlu0 2
  %1245 = vperm.xlu0 %1244, %v1218
  %v1246 = vpop.permute.xlu0 %1245
  %1248 = vset.pattern.permute.xlu0 2
  %1249 = vperm.xlu0 %1248, %v1219
  %v1250 = vpop.permute.xlu0 %1249
  %v1252 = vmul.f32 %v1246, %v1054
  %v1253 = vmul.f32 %v1250, %v1060
  %v1254 = vadd.f32 %v1242, %v1252
  %v1255 = vadd.f32 %v1243, %v1253
  %1256 = vset.pattern.permute.xlu0 3
  %1257 = vperm.xlu0 %1256, %v1218
  %v1258 = vpop.permute.xlu0 %1257
  %1260 = vset.pattern.permute.xlu0 3
  %1261 = vperm.xlu0 %1260, %v1219
  %v1262 = vpop.permute.xlu0 %1261
  %v1264 = vmul.f32 %v1258, %v1056
  %v1265 = vmul.f32 %v1262, %v1062
  %v1266 = vadd.f32 %v1254, %v1264
  %v1267 = vadd.f32 %v1255, %v1265
  %1268 = vset.pattern.permute.xlu0 4
  %1269 = vperm.xlu0 %1268, %v1218
  %v1270 = vpop.permute.xlu0 %1269
  %1272 = vset.pattern.permute.xlu0 4
  %1273 = vperm.xlu0 %1272, %v1219
  %v1274 = vpop.permute.xlu0 %1273
  %v1276 = vmul.f32 %v1270, %v1131
  %v1277 = vmul.f32 %v1274, %v1137
  %v1278 = vadd.f32 %v1266, %v1276
  %v1279 = vadd.f32 %v1267, %v1277
  %1280 = vset.pattern.permute.xlu0 5
  %1281 = vperm.xlu0 %1280, %v1218
  %v1282 = vpop.permute.xlu0 %1281
  %1284 = vset.pattern.permute.xlu0 5
  %1285 = vperm.xlu0 %1284, %v1219
  %v1286 = vpop.permute.xlu0 %1285
  %v1288 = vmul.f32 %v1282, %v1133
  %v1289 = vmul.f32 %v1286, %v1139
  %v1290 = vadd.f32 %v1278, %v1288
  %v1291 = vadd.f32 %v1279, %v1289
  %1292 = vset.pattern.permute.xlu0 6
  %1293 = vperm.xlu0 %1292, %v1218
  %v1294 = vpop.permute.xlu0 %1293
  %1296 = vset.pattern.permute.xlu0 6
  %1297 = vperm.xlu0 %1296, %v1219
  %v1298 = vpop.permute.xlu0 %1297
  %v1300 = vmul.f32 %v1294, %v1208
  %v1301 = vmul.f32 %v1298, %v1214
  %v1302 = vadd.f32 %v1290, %v1300
  %v1303 = vadd.f32 %v1291, %v1301
  %1304 = vset.pattern.permute.xlu0 7
  %1305 = vperm.xlu0 %1304, %v1218
  %v1306 = vpop.permute.xlu0 %1305
  %1308 = vset.pattern.permute.xlu0 7
  %1309 = vperm.xlu0 %1308, %v1219
  %v1310 = vpop.permute.xlu0 %1309
  %v1312 = vmul.f32 %v1306, %v1210
  %v1313 = vmul.f32 %v1310, %v1216
  %v1314 = vadd.f32 %v1302, %v1312
  %v1315 = vadd.f32 %v1303, %v1313
  %v1316 = vmul.f32 %v1314, 0.70710677
  %v1317 = vmul.f32 %v1315, 0.70710677
  %v1318 = vand.u32 2147483647, %v1316
  %v1319 = vand.u32 2147483647, %v1317
  %v1320 = vmul.f32 %v1318, 0.3275911
  %v1321 = vmul.f32 %v1319, 0.3275911
  %v1322 = vadd.f32 %v1320, 1.0
  %v1323 = vadd.f32 %v1321, 1.0
  %v1324 = vrcp.pop %v1322
  %v1325 = vmul.f32 1.0, %v1324
  %v1326 = vrcp.pop %v1323
  %v1327 = vmul.f32 1.0, %v1326
  %v1328 = vmul.f32 %v1325, 1.0614054
  %v1329 = vmul.f32 %v1327, 1.0614054
  %v1330 = vadd.f32 %v1328, -1.4531521
  %v1331 = vadd.f32 %v1329, -1.4531521
  %v1332 = vmul.f32 %v1325, %v1330
  %v1333 = vmul.f32 %v1327, %v1331
  %v1334 = vadd.f32 %v1332, 1.4214138
  %v1335 = vadd.f32 %v1333, 1.4214138
  %v1336 = vmul.f32 %v1325, %v1334
  %v1337 = vmul.f32 %v1327, %v1335
  %v1338 = vadd.f32 %v1336, -0.28449672
  %v1339 = vadd.f32 %v1337, -0.28449672
  %v1340 = vmul.f32 %v1325, %v1338
  %v1341 = vmul.f32 %v1327, %v1339
  %v1342 = vadd.f32 %v1340, 0.2548296
  %v1343 = vadd.f32 %v1341, 0.2548296
  %v1344 = vmul.f32 %v1325, %v1342
  %v1345 = vmul.f32 %v1327, %v1343
  %v1346 = vsub.f32 0.0, %v1318
  %v1347 = vsub.f32 0.0, %v1319
  %v1348 = vmul.f32 %v1346, %v1318
  %v1349 = vmul.f32 %v1347, %v1319
  %v1350 = vmul.f32 %v1348, 1.442695
  %v1351 = vpow.pop %v1350
  %v1352 = vmul.f32 %v1349, 1.442695
  %v1353 = vpow.pop %v1352
  %v1354 = vmul.f32 %v1344, %v1351
  %v1355 = vmul.f32 %v1345, %v1353
  %v1356 = vsub.f32 1.0, %v1354
  %v1357 = vsub.f32 1.0, %v1355
  %vm1358 = vcmp.ge.f32.partialorder %v1316, 0.0
  %vm1359 = vcmp.ge.f32.partialorder %v1317, 0.0
  %v1360 = vsub.f32 0.0, %v1356
  %v1361 = vsub.f32 0.0, %v1357
  %v1362 = vsel %vm1358, %v1356, %v1360
  %v1363 = vsel %vm1359, %v1357, %v1361
  %v1364 = vmul.f32 %v1314, 0.5
  %v1365 = vmul.f32 %v1315, 0.5
  %v1366 = vadd.f32 %v1362, 1.0
  %v1367 = vadd.f32 %v1363, 1.0
  %v1368 = vmul.f32 %v1364, %v1366
  %v1369 = vmul.f32 %v1365, %v1367
  %1388 = vrot.lane.b32.xlu0 %v883, 127
  %v1389 = vpop.permute.xlu0 %1388
  %1390 = vrot.lane.b32.xlu0 %v884, 127
  %v1391 = vpop.permute.xlu0 %1390
  %1392 = vrot.lane.b32.xlu0 %v885, 127
  %v1393 = vpop.permute.xlu0 %1392
  %1394 = vrot.lane.b32.xlu0 %v886, 127
  %v1395 = vpop.permute.xlu0 %1394
  %1396 = vrot.lane.b32.xlu0 %v887, 127
  %v1397 = vpop.permute.xlu0 %1396
  %1398 = vrot.lane.b32.xlu0 %v888, 127
  %v1399 = vpop.permute.xlu0 %1398
  %1400 = vrot.lane.b32.xlu0 %v889, 127
  %v1401 = vpop.permute.xlu0 %1400
  %1402 = vrot.lane.b32.xlu0 %v890, 127
  %v1403 = vpop.permute.xlu0 %1402
  %1404 = vrot.lane.b32.xlu0 %v891, 127
  %v1405 = vpop.permute.xlu0 %1404
  %1406 = vrot.lane.b32.xlu0 %v892, 127
  %v1407 = vpop.permute.xlu0 %1406
  %1408 = vrot.lane.b32.xlu0 %v893, 127
  %v1409 = vpop.permute.xlu0 %1408
  %1410 = vrot.lane.b32.xlu0 %v894, 127
  %v1411 = vpop.permute.xlu0 %1410
  %1412 = vrot.lane.b32.xlu0 %v895, 127
  %v1413 = vpop.permute.xlu0 %1412
  %1414 = vrot.lane.b32.xlu0 %v896, 127
  %v1415 = vpop.permute.xlu0 %1414
  %1416 = vrot.lane.b32.xlu0 %v897, 127
  %v1417 = vpop.permute.xlu0 %1416
  %1418 = vrot.lane.b32.xlu0 %v898, 127
  %v1419 = vpop.permute.xlu0 %1418
  %1420 = vrot.lane.b32.xlu0 %v899, 127
  %v1421 = vpop.permute.xlu0 %1420
  %1422 = vrot.lane.b32.xlu0 %v900, 127
  %v1423 = vpop.permute.xlu0 %1422
  %vm1424 = vcmask 1039360
  %v1425 = vsel %vm1424, %v1389, %v1391
  %v1426 = vsel %vm1424, %v1391, %v1393
  %v1427 = vsel %vm1424, %v1393, %v1395
  %v1428 = vsel %vm1424, %v1395, %v1397
  %v1429 = vsel %vm1424, %v1397, %v1399
  %v1430 = vsel %vm1424, %v1399, %v1401
  %v1431 = vsel %vm1424, %v1401, %v1403
  %v1432 = vsel %vm1424, %v1403, %v1405
  %v1433 = vsel %vm1424, %v1407, %v1409
  %v1434 = vsel %vm1424, %v1409, %v1411
  %v1435 = vsel %vm1424, %v1411, %v1413
  %v1436 = vsel %vm1424, %v1413, %v1415
  %v1437 = vsel %vm1424, %v1415, %v1417
  %v1438 = vsel %vm1424, %v1417, %v1419
  %v1439 = vsel %vm1424, %v1419, %v1421
  %v1440 = vsel %vm1424, %v1421, %v1423
  %1457 = vrot.lane.b32.xlu0 %v883, 126
  %v1458 = vpop.permute.xlu0 %1457
  %1459 = vrot.lane.b32.xlu0 %v884, 126
  %v1460 = vpop.permute.xlu0 %1459
  %1461 = vrot.lane.b32.xlu0 %v885, 126
  %v1462 = vpop.permute.xlu0 %1461
  %1463 = vrot.lane.b32.xlu0 %v886, 126
  %v1464 = vpop.permute.xlu0 %1463
  %1465 = vrot.lane.b32.xlu0 %v887, 126
  %v1466 = vpop.permute.xlu0 %1465
  %1467 = vrot.lane.b32.xlu0 %v888, 126
  %v1468 = vpop.permute.xlu0 %1467
  %1469 = vrot.lane.b32.xlu0 %v889, 126
  %v1470 = vpop.permute.xlu0 %1469
  %1471 = vrot.lane.b32.xlu0 %v890, 126
  %v1472 = vpop.permute.xlu0 %1471
  %1473 = vrot.lane.b32.xlu0 %v891, 126
  %v1474 = vpop.permute.xlu0 %1473
  %1475 = vrot.lane.b32.xlu0 %v892, 126
  %v1476 = vpop.permute.xlu0 %1475
  %1477 = vrot.lane.b32.xlu0 %v893, 126
  %v1478 = vpop.permute.xlu0 %1477
  %1479 = vrot.lane.b32.xlu0 %v894, 126
  %v1480 = vpop.permute.xlu0 %1479
  %1481 = vrot.lane.b32.xlu0 %v895, 126
  %v1482 = vpop.permute.xlu0 %1481
  %1483 = vrot.lane.b32.xlu0 %v896, 126
  %v1484 = vpop.permute.xlu0 %1483
  %1485 = vrot.lane.b32.xlu0 %v897, 126
  %v1486 = vpop.permute.xlu0 %1485
  %1487 = vrot.lane.b32.xlu0 %v898, 126
  %v1488 = vpop.permute.xlu0 %1487
  %1489 = vrot.lane.b32.xlu0 %v899, 126
  %v1490 = vpop.permute.xlu0 %1489
  %1491 = vrot.lane.b32.xlu0 %v900, 126
  %v1492 = vpop.permute.xlu0 %1491
  %vm1493 = vcmask 1031168
  %v1494 = vsel %vm1493, %v1458, %v1460
  %v1495 = vsel %vm1493, %v1460, %v1462
  %v1496 = vsel %vm1493, %v1462, %v1464
  %v1497 = vsel %vm1493, %v1464, %v1466
  %v1498 = vsel %vm1493, %v1466, %v1468
  %v1499 = vsel %vm1493, %v1468, %v1470
  %v1500 = vsel %vm1493, %v1470, %v1472
  %v1501 = vsel %vm1493, %v1472, %v1474
  %v1502 = vsel %vm1493, %v1476, %v1478
  %v1503 = vsel %vm1493, %v1478, %v1480
  %v1504 = vsel %vm1493, %v1480, %v1482
  %v1505 = vsel %vm1493, %v1482, %v1484
  %v1506 = vsel %vm1493, %v1484, %v1486
  %v1507 = vsel %vm1493, %v1486, %v1488
  %v1508 = vsel %vm1493, %v1488, %v1490
  %v1509 = vsel %vm1493, %v1490, %v1492
  %1526 = vrot.lane.b32.xlu0 %v883, 125
  %v1527 = vpop.permute.xlu0 %1526
  %1528 = vrot.lane.b32.xlu0 %v884, 125
  %v1529 = vpop.permute.xlu0 %1528
  %1530 = vrot.lane.b32.xlu0 %v885, 125
  %v1531 = vpop.permute.xlu0 %1530
  %1532 = vrot.lane.b32.xlu0 %v886, 125
  %v1533 = vpop.permute.xlu0 %1532
  %1534 = vrot.lane.b32.xlu0 %v887, 125
  %v1535 = vpop.permute.xlu0 %1534
  %1536 = vrot.lane.b32.xlu0 %v888, 125
  %v1537 = vpop.permute.xlu0 %1536
  %1538 = vrot.lane.b32.xlu0 %v889, 125
  %v1539 = vpop.permute.xlu0 %1538
  %1540 = vrot.lane.b32.xlu0 %v890, 125
  %v1541 = vpop.permute.xlu0 %1540
  %1542 = vrot.lane.b32.xlu0 %v891, 125
  %v1543 = vpop.permute.xlu0 %1542
  %1544 = vrot.lane.b32.xlu0 %v892, 125
  %v1545 = vpop.permute.xlu0 %1544
  %1546 = vrot.lane.b32.xlu0 %v893, 125
  %v1547 = vpop.permute.xlu0 %1546
  %1548 = vrot.lane.b32.xlu0 %v894, 125
  %v1549 = vpop.permute.xlu0 %1548
  %1550 = vrot.lane.b32.xlu0 %v895, 125
  %v1551 = vpop.permute.xlu0 %1550
  %1552 = vrot.lane.b32.xlu0 %v896, 125
  %v1553 = vpop.permute.xlu0 %1552
  %1554 = vrot.lane.b32.xlu0 %v897, 125
  %v1555 = vpop.permute.xlu0 %1554
  %1556 = vrot.lane.b32.xlu0 %v898, 125
  %v1557 = vpop.permute.xlu0 %1556
  %1558 = vrot.lane.b32.xlu0 %v899, 125
  %v1559 = vpop.permute.xlu0 %1558
  %1560 = vrot.lane.b32.xlu0 %v900, 125
  %v1561 = vpop.permute.xlu0 %1560
  %vm1562 = vcmask 1022976
  %v1563 = vsel %vm1562, %v1527, %v1529
  %v1564 = vsel %vm1562, %v1529, %v1531
  %v1565 = vsel %vm1562, %v1531, %v1533
  %v1566 = vsel %vm1562, %v1533, %v1535
  %v1567 = vsel %vm1562, %v1535, %v1537
  %v1568 = vsel %vm1562, %v1537, %v1539
  %v1569 = vsel %vm1562, %v1539, %v1541
  %v1570 = vsel %vm1562, %v1541, %v1543
  %v1571 = vsel %vm1562, %v1545, %v1547
  %v1572 = vsel %vm1562, %v1547, %v1549
  %v1573 = vsel %vm1562, %v1549, %v1551
  %v1574 = vsel %vm1562, %v1551, %v1553
  %v1575 = vsel %vm1562, %v1553, %v1555
  %v1576 = vsel %vm1562, %v1555, %v1557
  %v1577 = vsel %vm1562, %v1557, %v1559
  %v1578 = vsel %vm1562, %v1559, %v1561
  %1595 = vrot.lane.b32.xlu0 %v883, 124
  %v1596 = vpop.permute.xlu0 %1595
  %1597 = vrot.lane.b32.xlu0 %v884, 124
  %v1598 = vpop.permute.xlu0 %1597
  %1599 = vrot.lane.b32.xlu0 %v885, 124
  %v1600 = vpop.permute.xlu0 %1599
  %1601 = vrot.lane.b32.xlu0 %v886, 124
  %v1602 = vpop.permute.xlu0 %1601
  %1603 = vrot.lane.b32.xlu0 %v887, 124
  %v1604 = vpop.permute.xlu0 %1603
  %1605 = vrot.lane.b32.xlu0 %v888, 124
  %v1606 = vpop.permute.xlu0 %1605
  %1607 = vrot.lane.b32.xlu0 %v889, 124
  %v1608 = vpop.permute.xlu0 %1607
  %1609 = vrot.lane.b32.xlu0 %v890, 124
  %v1610 = vpop.permute.xlu0 %1609
  %1611 = vrot.lane.b32.xlu0 %v891, 124
  %v1612 = vpop.permute.xlu0 %1611
  %1613 = vrot.lane.b32.xlu0 %v892, 124
  %v1614 = vpop.permute.xlu0 %1613
  %1615 = vrot.lane.b32.xlu0 %v893, 124
  %v1616 = vpop.permute.xlu0 %1615
  %1617 = vrot.lane.b32.xlu0 %v894, 124
  %v1618 = vpop.permute.xlu0 %1617
  %1619 = vrot.lane.b32.xlu0 %v895, 124
  %v1620 = vpop.permute.xlu0 %1619
  %1621 = vrot.lane.b32.xlu0 %v896, 124
  %v1622 = vpop.permute.xlu0 %1621
  %1623 = vrot.lane.b32.xlu0 %v897, 124
  %v1624 = vpop.permute.xlu0 %1623
  %1625 = vrot.lane.b32.xlu0 %v898, 124
  %v1626 = vpop.permute.xlu0 %1625
  %1627 = vrot.lane.b32.xlu0 %v899, 124
  %v1628 = vpop.permute.xlu0 %1627
  %1629 = vrot.lane.b32.xlu0 %v900, 124
  %v1630 = vpop.permute.xlu0 %1629
  %vm1631 = vcmask 1014784
  %v1632 = vsel %vm1631, %v1596, %v1598
  %v1633 = vsel %vm1631, %v1598, %v1600
  %v1634 = vsel %vm1631, %v1600, %v1602
  %v1635 = vsel %vm1631, %v1602, %v1604
  %v1636 = vsel %vm1631, %v1604, %v1606
  %v1637 = vsel %vm1631, %v1606, %v1608
  %v1638 = vsel %vm1631, %v1608, %v1610
  %v1639 = vsel %vm1631, %v1610, %v1612
  %v1640 = vsel %vm1631, %v1614, %v1616
  %v1641 = vsel %vm1631, %v1616, %v1618
  %v1642 = vsel %vm1631, %v1618, %v1620
  %v1643 = vsel %vm1631, %v1620, %v1622
  %v1644 = vsel %vm1631, %v1622, %v1624
  %v1645 = vsel %vm1631, %v1624, %v1626
  %v1646 = vsel %vm1631, %v1626, %v1628
  %v1647 = vsel %vm1631, %v1628, %v1630
  %v1664 = vld [vmem:[%s1 + $0x20] sm:$0xff]
  %v1665 = vld [vmem:[%s1 + $0xa8] sm:$0xff]
  %v1666 = vld [vmem:[%s1 + $0x40] sm:$0xff]
  %v1667 = vld [vmem:[%s1 + $0xc8] sm:$0xff]
  %1669 = vset.pattern.permute.xlu0 0
  %1670 = vperm.xlu0 %1669, %v1666
  %v1671 = vpop.permute.xlu0 %1670
  %1674 = vset.pattern.permute.xlu0 0
  %1675 = vperm.xlu0 %1674, %v1667
  %v1676 = vpop.permute.xlu0 %1675
  %vm1678 = vcmask 654336
  %v1680 = vsel %vm1678, %v1664, 0
  %v1683 = vsel %vm1678, %v1665, 0
  %1685 = vmatprep.subr.mxu0 %v884
  %1686 = vmatpush1.msra.mxu0 %v883
  %1687 = vmatprep.subr.mxu0 %v893
  %1688 = vmatpush1.msra.mxu0 %v892
  %1689 = vmatprep.subr.mxu0 %v1426
  %1690 = vmatpush1.msra.mxu0 %v1425
  %1691 = vmatprep.subr.mxu0 %v1434
  %1692 = vmatpush1.msra.mxu0 %v1433
  %1693 = vmatprep.subr.mxu0 %v1495
  %1694 = vmatpush1.msra.mxu0 %v1494
  %1695 = vmatprep.subr.mxu0 %v1503
  %1696 = vmatpush1.msra.mxu0 %v1502
  %1697 = vmatprep.subr.mxu0 %v1564
  %1698 = vmatpush1.msra.mxu0 %v1563
  %1699 = vmatprep.subr.mxu0 %v1572
  %1700 = vmatpush1.msra.mxu0 %v1571
  %1701 = vmatprep.subr.mxu0 %v1633
  %1702 = vmatpush1.msra.mxu0 %v1632
  %1703 = vmatprep.subr.mxu0 %v1641
  %1704 = vmatpush1.msra.mxu0 %v1640
  %1705 = vmatprep.subr.mxu0 0.0
  %1706 = vmatpush1.msra.mxu0 0.0
  %1707 = vmatprep.subr.mxu0 0.0
  %1708 = vmatpush1.msra.mxu0 0.0
  %1709 = vmatprep.subr.mxu0 0.0
  %1710 = vmatpush1.msra.mxu0 0.0
  %1711 = vmatprep.subr.mxu0 0.0
  %1712 = vmatpush1.msra.mxu0 0.0
  %1713 = vmatprep.subr.mxu0 0.0
  %1714 = vmatpush1.msra.mxu0 0.0
  %1715 = vmatprep.subr.mxu0 0.0
  %1716 = vmatpush1.msra.mxu0 0.0
  %1717 = vmatprep.subr.mxu0 0.0
  %1718 = vmatpush1.msra.mxu0 0.0
  %1719 = vmatprep.subr.mxu0 0.0
  %1720 = vmatpush1.msra.mxu0 0.0
  %1721 = vmatprep.subr.mxu0 0.0
  %1722 = vmatpush1.msra.mxu0 0.0
  %1723 = vmatprep.subr.mxu0 0.0
  %1724 = vmatpush1.msra.mxu0 0.0
  %1725 = vmatprep.subr.mxu0 0.0
  %1726 = vmatpush1.msra.mxu0 0.0
  %1727 = vmatprep.subr.mxu0 0.0
  %1728 = vmatpush1.msra.mxu0 0.0
  %1729 = vmatprep.subr.mxu0 0.0
  %1730 = vmatpush1.msra.mxu0 0.0
  %1731 = vmatprep.subr.mxu0 0.0
  %1732 = vmatpush1.msra.mxu0 0.0
  %1733 = vmatprep.subr.mxu0 0.0
  %1734 = vmatpush1.msra.mxu0 0.0
  %1735 = vmatprep.subr.mxu0 0.0
  %1736 = vmatpush1.msra.mxu0 0.0
  %1737 = vmatprep.subr.mxu0 0.0
  %1738 = vmatpush1.msra.mxu0 0.0
  %1739 = vmatprep.subr.mxu0 0.0
  %1740 = vmatpush1.msra.mxu0 0.0
  %1741 = vmatprep.subr.mxu0 0.0
  %1742 = vmatpush1.msra.mxu0 0.0
  %1743 = vmatprep.subr.mxu0 0.0
  %1744 = vmatpush1.msra.mxu0 0.0
  %1745 = vmatprep.subr.mxu0 0.0
  %1746 = vmatpush1.msra.mxu0 0.0
  %1747 = vmatprep.subr.mxu0 0.0
  %1748 = vmatpush1.msra.mxu0 0.0
  %1749 = vmatprep.mubr.f32.mxu0 0.0
  %1750 = vmatmul.mubr.f32.gmra.mrb[0].mxu0 %v1680
  %v1751 = vpop.f32.mrb[0].mxu0
  %v1752 = vadd.f32 %v1671, %v1751
  %v1753 = vpop.f32.mrb[0].mxu0
  %v1754 = vadd.f32 %v1671, %v1753
  %1755 = vmatprep.mubr.f32.mxu0 0.0
  %1756 = vmatmul.mubr.f32.gmra.mrb[0].mxu0 %v1683
  %v1757 = vpop.f32.mrb[0].mxu0
  %v1758 = vadd.f32 %v1676, %v1757
  %v1759 = vpop.f32.mrb[0].mxu0
  %v1760 = vadd.f32 %v1676, %v1759
  %1761 = vdwg.mxu0
  %1762 = vmatprep.subr.mxu0 %v886
  %1763 = vmatpush1.msra.mxu0 %v885
  %1764 = vmatprep.subr.mxu0 %v895
  %1765 = vmatpush1.msra.mxu0 %v894
  %1766 = vmatprep.subr.mxu0 %v1428
  %1767 = vmatpush1.msra.mxu0 %v1427
  %1768 = vmatprep.subr.mxu0 %v1436
  %1769 = vmatpush1.msra.mxu0 %v1435
  %1770 = vmatprep.subr.mxu0 %v1497
  %1771 = vmatpush1.msra.mxu0 %v1496
  %1772 = vmatprep.subr.mxu0 %v1505
  %1773 = vmatpush1.msra.mxu0 %v1504
  %1774 = vmatprep.subr.mxu0 %v1566
  %1775 = vmatpush1.msra.mxu0 %v1565
  %1776 = vmatprep.subr.mxu0 %v1574
  %1777 = vmatpush1.msra.mxu0 %v1573
  %1778 = vmatprep.subr.mxu0 %v1635
  %1779 = vmatpush1.msra.mxu0 %v1634
  %1780 = vmatprep.subr.mxu0 %v1643
  %1781 = vmatpush1.msra.mxu0 %v1642
  %1782 = vmatprep.subr.mxu0 0.0
  %1783 = vmatpush1.msra.mxu0 0.0
  %1784 = vmatprep.subr.mxu0 0.0
  %1785 = vmatpush1.msra.mxu0 0.0
  %1786 = vmatprep.subr.mxu0 0.0
  %1787 = vmatpush1.msra.mxu0 0.0
  %1788 = vmatprep.subr.mxu0 0.0
  %1789 = vmatpush1.msra.mxu0 0.0
  %1790 = vmatprep.subr.mxu0 0.0
  %1791 = vmatpush1.msra.mxu0 0.0
  %1792 = vmatprep.subr.mxu0 0.0
  %1793 = vmatpush1.msra.mxu0 0.0
  %1794 = vmatprep.subr.mxu0 0.0
  %1795 = vmatpush1.msra.mxu0 0.0
  %1796 = vmatprep.subr.mxu0 0.0
  %1797 = vmatpush1.msra.mxu0 0.0
  %1798 = vmatprep.subr.mxu0 0.0
  %1799 = vmatpush1.msra.mxu0 0.0
  %1800 = vmatprep.subr.mxu0 0.0
  %1801 = vmatpush1.msra.mxu0 0.0
  %1802 = vmatprep.subr.mxu0 0.0
  %1803 = vmatpush1.msra.mxu0 0.0
  %1804 = vmatprep.subr.mxu0 0.0
  %1805 = vmatpush1.msra.mxu0 0.0
  %1806 = vmatprep.subr.mxu0 0.0
  %1807 = vmatpush1.msra.mxu0 0.0
  %1808 = vmatprep.subr.mxu0 0.0
  %1809 = vmatpush1.msra.mxu0 0.0
  %1810 = vmatprep.subr.mxu0 0.0
  %1811 = vmatpush1.msra.mxu0 0.0
  %1812 = vmatprep.subr.mxu0 0.0
  %1813 = vmatpush1.msra.mxu0 0.0
  %1814 = vmatprep.subr.mxu0 0.0
  %1815 = vmatpush1.msra.mxu0 0.0
  %1816 = vmatprep.subr.mxu0 0.0
  %1817 = vmatpush1.msra.mxu0 0.0
  %1818 = vmatprep.subr.mxu0 0.0
  %1819 = vmatpush1.msra.mxu0 0.0
  %1820 = vmatprep.subr.mxu0 0.0
  %1821 = vmatpush1.msra.mxu0 0.0
  %1822 = vmatprep.subr.mxu0 0.0
  %1823 = vmatpush1.msra.mxu0 0.0
  %1824 = vmatprep.subr.mxu0 0.0
  %1825 = vmatpush1.msra.mxu0 0.0
  %1826 = vmatprep.mubr.f32.mxu0 0.0
  %1827 = vmatmul.mubr.f32.gmra.mrb[0].mxu0 %v1680
  %v1828 = vpop.f32.mrb[0].mxu0
  %v1829 = vadd.f32 %v1671, %v1828
  %v1830 = vpop.f32.mrb[0].mxu0
  %v1831 = vadd.f32 %v1671, %v1830
  %1832 = vmatprep.mubr.f32.mxu0 0.0
  %1833 = vmatmul.mubr.f32.gmra.mrb[0].mxu0 %v1683
  %v1834 = vpop.f32.mrb[0].mxu0
  %v1835 = vadd.f32 %v1676, %v1834
  %v1836 = vpop.f32.mrb[0].mxu0
  %v1837 = vadd.f32 %v1676, %v1836
  %1838 = vdwg.mxu0
  %1839 = vmatprep.subr.mxu0 %v888
  %1840 = vmatpush1.msra.mxu0 %v887
  %1841 = vmatprep.subr.mxu0 %v897
  %1842 = vmatpush1.msra.mxu0 %v896
  %1843 = vmatprep.subr.mxu0 %v1430
  %1844 = vmatpush1.msra.mxu0 %v1429
  %1845 = vmatprep.subr.mxu0 %v1438
  %1846 = vmatpush1.msra.mxu0 %v1437
  %1847 = vmatprep.subr.mxu0 %v1499
  %1848 = vmatpush1.msra.mxu0 %v1498
  %1849 = vmatprep.subr.mxu0 %v1507
  %1850 = vmatpush1.msra.mxu0 %v1506
  %1851 = vmatprep.subr.mxu0 %v1568
  %1852 = vmatpush1.msra.mxu0 %v1567
  %1853 = vmatprep.subr.mxu0 %v1576
  %1854 = vmatpush1.msra.mxu0 %v1575
  %1855 = vmatprep.subr.mxu0 %v1637
  %1856 = vmatpush1.msra.mxu0 %v1636
  %1857 = vmatprep.subr.mxu0 %v1645
  %1858 = vmatpush1.msra.mxu0 %v1644
  %1859 = vmatprep.subr.mxu0 0.0
  %1860 = vmatpush1.msra.mxu0 0.0
  %1861 = vmatprep.subr.mxu0 0.0
  %1862 = vmatpush1.msra.mxu0 0.0
  %1863 = vmatprep.subr.mxu0 0.0
  %1864 = vmatpush1.msra.mxu0 0.0
  %1865 = vmatprep.subr.mxu0 0.0
  %1866 = vmatpush1.msra.mxu0 0.0
  %1867 = vmatprep.subr.mxu0 0.0
  %1868 = vmatpush1.msra.mxu0 0.0
  %1869 = vmatprep.subr.mxu0 0.0
  %1870 = vmatpush1.msra.mxu0 0.0
  %1871 = vmatprep.subr.mxu0 0.0
  %1872 = vmatpush1.msra.mxu0 0.0
  %1873 = vmatprep.subr.mxu0 0.0
  %1874 = vmatpush1.msra.mxu0 0.0
  %1875 = vmatprep.subr.mxu0 0.0
  %1876 = vmatpush1.msra.mxu0 0.0
  %1877 = vmatprep.subr.mxu0 0.0
  %1878 = vmatpush1.msra.mxu0 0.0
  %1879 = vmatprep.subr.mxu0 0.0
  %1880 = vmatpush1.msra.mxu0 0.0
  %1881 = vmatprep.subr.mxu0 0.0
  %1882 = vmatpush1.msra.mxu0 0.0
  %1883 = vmatprep.subr.mxu0 0.0
  %1884 = vmatpush1.msra.mxu0 0.0
  %1885 = vmatprep.subr.mxu0 0.0
  %1886 = vmatpush1.msra.mxu0 0.0
  %1887 = vmatprep.subr.mxu0 0.0
  %1888 = vmatpush1.msra.mxu0 0.0
  %1889 = vmatprep.subr.mxu0 0.0
  %1890 = vmatpush1.msra.mxu0 0.0
  %1891 = vmatprep.subr.mxu0 0.0
  %1892 = vmatpush1.msra.mxu0 0.0
  %1893 = vmatprep.subr.mxu0 0.0
  %1894 = vmatpush1.msra.mxu0 0.0
  %1895 = vmatprep.subr.mxu0 0.0
  %1896 = vmatpush1.msra.mxu0 0.0
  %1897 = vmatprep.subr.mxu0 0.0
  %1898 = vmatpush1.msra.mxu0 0.0
  %1899 = vmatprep.subr.mxu0 0.0
  %1900 = vmatpush1.msra.mxu0 0.0
  %1901 = vmatprep.subr.mxu0 0.0
  %1902 = vmatpush1.msra.mxu0 0.0
  %1903 = vmatprep.mubr.f32.mxu0 0.0
  %1904 = vmatmul.mubr.f32.gmra.mrb[0].mxu0 %v1680
  %v1905 = vpop.f32.mrb[0].mxu0
  %v1906 = vadd.f32 %v1671, %v1905
  %v1907 = vpop.f32.mrb[0].mxu0
  %v1908 = vadd.f32 %v1671, %v1907
  %1909 = vmatprep.mubr.f32.mxu0 0.0
  %1910 = vmatmul.mubr.f32.gmra.mrb[0].mxu0 %v1683
  %v1911 = vpop.f32.mrb[0].mxu0
  %v1912 = vadd.f32 %v1676, %v1911
  %v1913 = vpop.f32.mrb[0].mxu0
  %v1914 = vadd.f32 %v1676, %v1913
  %1915 = vdwg.mxu0
  %1916 = vmatprep.subr.mxu0 %v890
  %1917 = vmatpush1.msra.mxu0 %v889
  %1918 = vmatprep.subr.mxu0 %v899
  %1919 = vmatpush1.msra.mxu0 %v898
  %1920 = vmatprep.subr.mxu0 %v1432
  %1921 = vmatpush1.msra.mxu0 %v1431
  %1922 = vmatprep.subr.mxu0 %v1440
  %1923 = vmatpush1.msra.mxu0 %v1439
  %1924 = vmatprep.subr.mxu0 %v1501
  %1925 = vmatpush1.msra.mxu0 %v1500
  %1926 = vmatprep.subr.mxu0 %v1509
  %1927 = vmatpush1.msra.mxu0 %v1508
  %1928 = vmatprep.subr.mxu0 %v1570
  %1929 = vmatpush1.msra.mxu0 %v1569
  %1930 = vmatprep.subr.mxu0 %v1578
  %1931 = vmatpush1.msra.mxu0 %v1577
  %1932 = vmatprep.subr.mxu0 %v1639
  %1933 = vmatpush1.msra.mxu0 %v1638
  %1934 = vmatprep.subr.mxu0 %v1647
  %1935 = vmatpush1.msra.mxu0 %v1646
  %1936 = vmatprep.subr.mxu0 0.0
  %1937 = vmatpush1.msra.mxu0 0.0
  %1938 = vmatprep.subr.mxu0 0.0
  %1939 = vmatpush1.msra.mxu0 0.0
  %1940 = vmatprep.subr.mxu0 0.0
  %1941 = vmatpush1.msra.mxu0 0.0
  %1942 = vmatprep.subr.mxu0 0.0
  %1943 = vmatpush1.msra.mxu0 0.0
  %1944 = vmatprep.subr.mxu0 0.0
  %1945 = vmatpush1.msra.mxu0 0.0
  %1946 = vmatprep.subr.mxu0 0.0
  %1947 = vmatpush1.msra.mxu0 0.0
  %1948 = vmatprep.subr.mxu0 0.0
  %1949 = vmatpush1.msra.mxu0 0.0
  %1950 = vmatprep.subr.mxu0 0.0
  %1951 = vmatpush1.msra.mxu0 0.0
  %1952 = vmatprep.subr.mxu0 0.0
  %1953 = vmatpush1.msra.mxu0 0.0
  %1954 = vmatprep.subr.mxu0 0.0
  %1955 = vmatpush1.msra.mxu0 0.0
  %1956 = vmatprep.subr.mxu0 0.0
  %1957 = vmatpush1.msra.mxu0 0.0
  %1958 = vmatprep.subr.mxu0 0.0
  %1959 = vmatpush1.msra.mxu0 0.0
  %1960 = vmatprep.subr.mxu0 0.0
  %1961 = vmatpush1.msra.mxu0 0.0
  %1962 = vmatprep.subr.mxu0 0.0
  %1963 = vmatpush1.msra.mxu0 0.0
  %1964 = vmatprep.subr.mxu0 0.0
  %1965 = vmatpush1.msra.mxu0 0.0
  %1966 = vmatprep.subr.mxu0 0.0
  %1967 = vmatpush1.msra.mxu0 0.0
  %1968 = vmatprep.subr.mxu0 0.0
  %1969 = vmatpush1.msra.mxu0 0.0
  %1970 = vmatprep.subr.mxu0 0.0
  %1971 = vmatpush1.msra.mxu0 0.0
  %1972 = vmatprep.subr.mxu0 0.0
  %1973 = vmatpush1.msra.mxu0 0.0
  %1974 = vmatprep.subr.mxu0 0.0
  %1975 = vmatpush1.msra.mxu0 0.0
  %1976 = vmatprep.subr.mxu0 0.0
  %1977 = vmatpush1.msra.mxu0 0.0
  %1978 = vmatprep.subr.mxu0 0.0
  %1979 = vmatpush1.msra.mxu0 0.0
  %1980 = vmatprep.mubr.f32.mxu0 0.0
  %1981 = vmatmul.mubr.f32.gmra.mrb[0].mxu0 %v1680
  %v1982 = vpop.f32.mrb[0].mxu0
  %v1983 = vadd.f32 %v1671, %v1982
  %v1984 = vpop.f32.mrb[0].mxu0
  %v1985 = vadd.f32 %v1671, %v1984
  %1986 = vmatprep.mubr.f32.mxu0 0.0
  %1987 = vmatmul.mubr.f32.gmra.mrb[0].mxu0 %v1683
  %v1988 = vpop.f32.mrb[0].mxu0
  %v1989 = vadd.f32 %v1676, %v1988
  %v1990 = vpop.f32.mrb[0].mxu0
  %v1991 = vadd.f32 %v1676, %v1990
  %1992 = vdwg.mxu0
  %v1993 = vld [vmem:[%s1 + $0x18] sm:$0xff]
  %v1994 = vld [vmem:[%s1 + $0xa0] sm:$0xff]
  %1996 = vset.pattern.permute.xlu0 0
  %1997 = vperm.xlu0 %1996, %v1993
  %v1998 = vpop.permute.xlu0 %1997
  %2001 = vset.pattern.permute.xlu0 0
  %2002 = vperm.xlu0 %2001, %v1994
  %v2003 = vpop.permute.xlu0 %2002
  %v2005 = vmul.f32 %v1998, %v1752
  %v2006 = vmul.f32 %v2003, %v1758
  %2007 = vset.pattern.permute.xlu0 1
  %2008 = vperm.xlu0 %2007, %v1993
  %v2009 = vpop.permute.xlu0 %2008
  %2011 = vset.pattern.permute.xlu0 1
  %2012 = vperm.xlu0 %2011, %v1994
  %v2013 = vpop.permute.xlu0 %2012
  %v2015 = vmul.f32 %v2009, %v1754
  %v2016 = vmul.f32 %v2013, %v1760
  %v2017 = vadd.f32 %v2005, %v2015
  %v2018 = vadd.f32 %v2006, %v2016
  %2019 = vset.pattern.permute.xlu0 2
  %2020 = vperm.xlu0 %2019, %v1993
  %v2021 = vpop.permute.xlu0 %2020
  %2023 = vset.pattern.permute.xlu0 2
  %2024 = vperm.xlu0 %2023, %v1994
  %v2025 = vpop.permute.xlu0 %2024
  %v2027 = vmul.f32 %v2021, %v1829
  %v2028 = vmul.f32 %v2025, %v1835
  %v2029 = vadd.f32 %v2017, %v2027
  %v2030 = vadd.f32 %v2018, %v2028
  %2031 = vset.pattern.permute.xlu0 3
  %2032 = vperm.xlu0 %2031, %v1993
  %v2033 = vpop.permute.xlu0 %2032
  %2035 = vset.pattern.permute.xlu0 3
  %2036 = vperm.xlu0 %2035, %v1994
  %v2037 = vpop.permute.xlu0 %2036
  %v2039 = vmul.f32 %v2033, %v1831
  %v2040 = vmul.f32 %v2037, %v1837
  %v2041 = vadd.f32 %v2029, %v2039
  %v2042 = vadd.f32 %v2030, %v2040
  %2043 = vset.pattern.permute.xlu0 4
  %2044 = vperm.xlu0 %2043, %v1993
  %v2045 = vpop.permute.xlu0 %2044
  %2047 = vset.pattern.permute.xlu0 4
  %2048 = vperm.xlu0 %2047, %v1994
  %v2049 = vpop.permute.xlu0 %2048
  %v2051 = vmul.f32 %v2045, %v1906
  %v2052 = vmul.f32 %v2049, %v1912
  %v2053 = vadd.f32 %v2041, %v2051
  %v2054 = vadd.f32 %v2042, %v2052
  %2055 = vset.pattern.permute.xlu0 5
  %2056 = vperm.xlu0 %2055, %v1993
  %v2057 = vpop.permute.xlu0 %2056
  %2059 = vset.pattern.permute.xlu0 5
  %2060 = vperm.xlu0 %2059, %v1994
  %v2061 = vpop.permute.xlu0 %2060
  %v2063 = vmul.f32 %v2057, %v1908
  %v2064 = vmul.f32 %v2061, %v1914
  %v2065 = vadd.f32 %v2053, %v2063
  %v2066 = vadd.f32 %v2054, %v2064
  %2067 = vset.pattern.permute.xlu0 6
  %2068 = vperm.xlu0 %2067, %v1993
  %v2069 = vpop.permute.xlu0 %2068
  %2071 = vset.pattern.permute.xlu0 6
  %2072 = vperm.xlu0 %2071, %v1994
  %v2073 = vpop.permute.xlu0 %2072
  %v2075 = vmul.f32 %v2069, %v1983
  %v2076 = vmul.f32 %v2073, %v1989
  %v2077 = vadd.f32 %v2065, %v2075
  %v2078 = vadd.f32 %v2066, %v2076
  %2079 = vset.pattern.permute.xlu0 7
  %2080 = vperm.xlu0 %2079, %v1993
  %v2081 = vpop.permute.xlu0 %2080
  %2083 = vset.pattern.permute.xlu0 7
  %2084 = vperm.xlu0 %2083, %v1994
  %v2085 = vpop.permute.xlu0 %2084
  %v2087 = vmul.f32 %v2081, %v1985
  %v2088 = vmul.f32 %v2085, %v1991
  %v2089 = vadd.f32 %v2077, %v2087
  %v2090 = vadd.f32 %v2078, %v2088
  %2091 = vset.pattern.permute.xlu0 1
  %2092 = vperm.xlu0 %2091, %v1666
  %v2093 = vpop.permute.xlu0 %2092
  %2095 = vset.pattern.permute.xlu0 1
  %2096 = vperm.xlu0 %2095, %v1667
  %v2097 = vpop.permute.xlu0 %2096
  %v2099 = vadd.f32 %v2089, %v2093
  %v2100 = vadd.f32 %v2090, %v2097
  %v2101 = vld [vmem:[%s2 + $0x400] sm:$0xff]
  %v2102 = vld [vmem:[%s2 + $0x408] sm:$0xff]
  %v2103 = vld [vmem:[%s2 + $0x410] sm:$0xff]
  %v2104 = vld [vmem:[%s2 + $0x418] sm:$0xff]
  %v2105 = vld [vmem:[%s2 + $0x420] sm:$0xff]
  %v2106 = vld [vmem:[%s2 + $0x428] sm:$0xff]
  %v2107 = vld [vmem:[%s2 + $0x430] sm:$0xff]
  %v2108 = vld [vmem:[%s2 + $0x438] sm:$0xff]
  %v2109 = vld [vmem:[%s2 + $0x440] sm:$0xff]
  %v2110 = vld [vmem:[%s2 + $0x448] sm:$0xff]
  %v2111 = vld [vmem:[%s2 + $0x450] sm:$0xff]
  %v2112 = vld [vmem:[%s2 + $0x458] sm:$0xff]
  %v2113 = vld [vmem:[%s2 + $0x460] sm:$0xff]
  %v2114 = vld [vmem:[%s2 + $0x468] sm:$0xff]
  %v2115 = vld [vmem:[%s2 + $0x470] sm:$0xff]
  %v2116 = vld [vmem:[%s2 + $0x478] sm:$0xff]
  %v2117 = vld [vmem:[%s2 + $0x480] sm:$0xff]
  %v2118 = vld [vmem:[%s2 + $0x488] sm:$0xff]
  %v2119 = vld [vmem:[%s2 + $0x490] sm:$0xff]
  %v2120 = vld [vmem:[%s2 + $0x498] sm:$0xff]
  %v2121 = vld [vmem:[%s2 + $0x4a0] sm:$0xff]
  %v2122 = vld [vmem:[%s2 + $0x4a8] sm:$0xff]
  %v2123 = vld [vmem:[%s2 + $0x4b0] sm:$0xff]
  %v2124 = vld [vmem:[%s2 + $0x4b8] sm:$0xff]
  %v2125 = vld [vmem:[%s2 + $0x4c0] sm:$0xff]
  %v2126 = vld [vmem:[%s2 + $0x4c8] sm:$0xff]
  %v2127 = vld [vmem:[%s2 + $0x4d0] sm:$0xff]
  %v2128 = vld [vmem:[%s2 + $0x4d8] sm:$0xff]
  %v2129 = vld [vmem:[%s2 + $0x4e0] sm:$0xff]
  %v2130 = vld [vmem:[%s2 + $0x4e8] sm:$0xff]
  %v2131 = vld [vmem:[%s2 + $0x4f0] sm:$0xff]
  %v2132 = vld [vmem:[%s2 + $0x4f8] sm:$0xff]
  %2133 = vmatprep.subr.mxu0 0.0
  %2134 = vmatpush1.msra.mxu0 %v2101
  %2135 = vmatprep.subr.mxu0 0.0
  %2136 = vmatpush1.msra.mxu0 %v2102
  %2137 = vmatprep.subr.mxu0 0.0
  %2138 = vmatpush1.msra.mxu0 %v2103
  %2139 = vmatprep.subr.mxu0 0.0
  %2140 = vmatpush1.msra.mxu0 %v2104
  %2141 = vmatprep.subr.mxu0 0.0
  %2142 = vmatpush1.msra.mxu0 %v2105
  %2143 = vmatprep.subr.mxu0 0.0
  %2144 = vmatpush1.msra.mxu0 %v2106
  %2145 = vmatprep.subr.mxu0 0.0
  %2146 = vmatpush1.msra.mxu0 %v2107
  %2147 = vmatprep.subr.mxu0 0.0
  %2148 = vmatpush1.msra.mxu0 %v2108
  %2149 = vmatprep.subr.mxu0 0.0
  %2150 = vmatpush1.msra.mxu0 %v2109
  %2151 = vmatprep.subr.mxu0 0.0
  %2152 = vmatpush1.msra.mxu0 %v2110
  %2153 = vmatprep.subr.mxu0 0.0
  %2154 = vmatpush1.msra.mxu0 %v2111
  %2155 = vmatprep.subr.mxu0 0.0
  %2156 = vmatpush1.msra.mxu0 %v2112
  %2157 = vmatprep.subr.mxu0 0.0
  %2158 = vmatpush1.msra.mxu0 %v2113
  %2159 = vmatprep.subr.mxu0 0.0
  %2160 = vmatpush1.msra.mxu0 %v2114
  %2161 = vmatprep.subr.mxu0 0.0
  %2162 = vmatpush1.msra.mxu0 %v2115
  %2163 = vmatprep.subr.mxu0 0.0
  %2164 = vmatpush1.msra.mxu0 %v2116
  %2165 = vmatprep.subr.mxu0 0.0
  %2166 = vmatpush1.msra.mxu0 %v2117
  %2167 = vmatprep.subr.mxu0 0.0
  %2168 = vmatpush1.msra.mxu0 %v2118
  %2169 = vmatprep.subr.mxu0 0.0
  %2170 = vmatpush1.msra.mxu0 %v2119
  %2171 = vmatprep.subr.mxu0 0.0
  %2172 = vmatpush1.msra.mxu0 %v2120
  %2173 = vmatprep.subr.mxu0 0.0
  %2174 = vmatpush1.msra.mxu0 %v2121
  %2175 = vmatprep.subr.mxu0 0.0
  %2176 = vmatpush1.msra.mxu0 %v2122
  %2177 = vmatprep.subr.mxu0 0.0
  %2178 = vmatpush1.msra.mxu0 %v2123
  %2179 = vmatprep.subr.mxu0 0.0
  %2180 = vmatpush1.msra.mxu0 %v2124
  %2181 = vmatprep.subr.mxu0 0.0
  %2182 = vmatpush1.msra.mxu0 %v2125
  %2183 = vmatprep.subr.mxu0 0.0
  %2184 = vmatpush1.msra.mxu0 %v2126
  %2185 = vmatprep.subr.mxu0 0.0
  %2186 = vmatpush1.msra.mxu0 %v2127
  %2187 = vmatprep.subr.mxu0 0.0
  %2188 = vmatpush1.msra.mxu0 %v2128
  %2189 = vmatprep.subr.mxu0 0.0
  %2190 = vmatpush1.msra.mxu0 %v2129
  %2191 = vmatprep.subr.mxu0 0.0
  %2192 = vmatpush1.msra.mxu0 %v2130
  %2193 = vmatprep.subr.mxu0 0.0
  %2194 = vmatpush1.msra.mxu0 %v2131
  %2195 = vmatprep.subr.mxu0 0.0
  %2196 = vmatpush1.msra.mxu0 %v2132
  %2197 = vmatprep.mubr.f32.mxu0 %v1368
  %2198 = vmatmul.mubr.f32.gmra.mrb[0].mxu0 %v2099
  %v2199 = vpop.f32.mrb[0].mxu0
  %v2200 = vadd.f32 0.0, %v2199
  %v2201 = vpop.f32.mrb[0].mxu0
  %2202 = vmatprep.mubr.f32.mxu0 %v1369
  %2203 = vmatmul.mubr.f32.gmra.mrb[0].mxu0 %v2100
  %v2204 = vpop.f32.mrb[0].mxu0
  %v2205 = vadd.f32 0.0, %v2204
  %v2206 = vpop.f32.mrb[0].mxu0
  %2207 = vdwg.mxu0
  %v2208 = vld [vmem:[%s1 + $0x38] ss:$0 sm:$0xff]
  %v2210 = vsel %vm903, %v2208, 0
  %2212 = vmatprep.subr.mxu0 %v884
  %2213 = vmatpush1.msra.mxu0 %v883
  %2214 = vmatprep.subr.mxu0 %v893
  %2215 = vmatpush1.msra.mxu0 %v892
  %2216 = vmatprep.subr.mxu0 0.0
  %2217 = vmatpush1.msra.mxu0 0.0
  %2218 = vmatprep.subr.mxu0 0.0
  %2219 = vmatpush1.msra.mxu0 0.0
  %2220 = vmatprep.subr.mxu0 0.0
  %2221 = vmatpush1.msra.mxu0 0.0
  %2222 = vmatprep.subr.mxu0 0.0
  %2223 = vmatpush1.msra.mxu0 0.0
  %2224 = vmatprep.subr.mxu0 0.0
  %2225 = vmatpush1.msra.mxu0 0.0
  %2226 = vmatprep.subr.mxu0 0.0
  %2227 = vmatpush1.msra.mxu0 0.0
  %2228 = vmatprep.subr.mxu0 0.0
  %2229 = vmatpush1.msra.mxu0 0.0
  %2230 = vmatprep.subr.mxu0 0.0
  %2231 = vmatpush1.msra.mxu0 0.0
  %2232 = vmatprep.subr.mxu0 0.0
  %2233 = vmatpush1.msra.mxu0 0.0
  %2234 = vmatprep.subr.mxu0 0.0
  %2235 = vmatpush1.msra.mxu0 0.0
  %2236 = vmatprep.subr.mxu0 0.0
  %2237 = vmatpush1.msra.mxu0 0.0
  %2238 = vmatprep.subr.mxu0 0.0
  %2239 = vmatpush1.msra.mxu0 0.0
  %2240 = vmatprep.subr.mxu0 0.0
  %2241 = vmatpush1.msra.mxu0 0.0
  %2242 = vmatprep.subr.mxu0 0.0
  %2243 = vmatpush1.msra.mxu0 0.0
  %2244 = vmatprep.subr.mxu0 0.0
  %2245 = vmatpush1.msra.mxu0 0.0
  %2246 = vmatprep.subr.mxu0 0.0
  %2247 = vmatpush1.msra.mxu0 0.0
  %2248 = vmatprep.subr.mxu0 0.0
  %2249 = vmatpush1.msra.mxu0 0.0
  %2250 = vmatprep.subr.mxu0 0.0
  %2251 = vmatpush1.msra.mxu0 0.0
  %2252 = vmatprep.subr.mxu0 0.0
  %2253 = vmatpush1.msra.mxu0 0.0
  %2254 = vmatprep.subr.mxu0 0.0
  %2255 = vmatpush1.msra.mxu0 0.0
  %2256 = vmatprep.subr.mxu0 0.0
  %2257 = vmatpush1.msra.mxu0 0.0
  %2258 = vmatprep.subr.mxu0 0.0
  %2259 = vmatpush1.msra.mxu0 0.0
  %2260 = vmatprep.subr.mxu0 0.0
  %2261 = vmatpush1.msra.mxu0 0.0
  %2262 = vmatprep.subr.mxu0 0.0
  %2263 = vmatpush1.msra.mxu0 0.0
  %2264 = vmatprep.subr.mxu0 0.0
  %2265 = vmatpush1.msra.mxu0 0.0
  %2266 = vmatprep.subr.mxu0 0.0
  %2267 = vmatpush1.msra.mxu0 0.0
  %2268 = vmatprep.subr.mxu0 0.0
  %2269 = vmatpush1.msra.mxu0 0.0
  %2270 = vmatprep.subr.mxu0 0.0
  %2271 = vmatpush1.msra.mxu0 0.0
  %2272 = vmatprep.subr.mxu0 0.0
  %2273 = vmatpush1.msra.mxu0 0.0
  %2274 = vmatprep.subr.mxu0 0.0
  %2275 = vmatpush1.msra.mxu0 0.0
  %2276 = vmatprep.mubr.f32.mxu0 0.0
  %2277 = vmatmul.mubr.f32.gmra.mrb[0].mxu0 %v2210
  %v2278 = vpop.f32.mrb[0].mxu0
  %v2279 = vadd.f32 0.0, %v2278
  %v2280 = vpop.f32.mrb[0].mxu0
  %v2281 = vadd.f32 0.0, %v2280
  %2282 = vdwg.mxu0
  %2283 = vmatprep.subr.mxu0 %v886
  %2284 = vmatpush1.msra.mxu0 %v885
  %2285 = vmatprep.subr.mxu0 %v895
  %2286 = vmatpush1.msra.mxu0 %v894
  %2287 = vmatprep.subr.mxu0 0.0
  %2288 = vmatpush1.msra.mxu0 0.0
  %2289 = vmatprep.subr.mxu0 0.0
  %2290 = vmatpush1.msra.mxu0 0.0
  %2291 = vmatprep.subr.mxu0 0.0
  %2292 = vmatpush1.msra.mxu0 0.0
  %2293 = vmatprep.subr.mxu0 0.0
  %2294 = vmatpush1.msra.mxu0 0.0
  %2295 = vmatprep.subr.mxu0 0.0
  %2296 = vmatpush1.msra.mxu0 0.0
  %2297 = vmatprep.subr.mxu0 0.0
  %2298 = vmatpush1.msra.mxu0 0.0
  %2299 = vmatprep.subr.mxu0 0.0
  %2300 = vmatpush1.msra.mxu0 0.0
  %2301 = vmatprep.subr.mxu0 0.0
  %2302 = vmatpush1.msra.mxu0 0.0
  %2303 = vmatprep.subr.mxu0 0.0
  %2304 = vmatpush1.msra.mxu0 0.0
  %2305 = vmatprep.subr.mxu0 0.0
  %2306 = vmatpush1.msra.mxu0 0.0
  %2307 = vmatprep.subr.mxu0 0.0
  %2308 = vmatpush1.msra.mxu0 0.0
  %2309 = vmatprep.subr.mxu0 0.0
  %2310 = vmatpush1.msra.mxu0 0.0
  %2311 = vmatprep.subr.mxu0 0.0
  %2312 = vmatpush1.msra.mxu0 0.0
  %2313 = vmatprep.subr.mxu0 0.0
  %2314 = vmatpush1.msra.mxu0 0.0
  %2315 = vmatprep.subr.mxu0 0.0
  %2316 = vmatpush1.msra.mxu0 0.0
  %2317 = vmatprep.subr.mxu0 0.0
  %2318 = vmatpush1.msra.mxu0 0.0
  %2319 = vmatprep.subr.mxu0 0.0
  %2320 = vmatpush1.msra.mxu0 0.0
  %2321 = vmatprep.subr.mxu0 0.0
  %2322 = vmatpush1.msra.mxu0 0.0
  %2323 = vmatprep.subr.mxu0 0.0
  %2324 = vmatpush1.msra.mxu0 0.0
  %2325 = vmatprep.subr.mxu0 0.0
  %2326 = vmatpush1.msra.mxu0 0.0
  %2327 = vmatprep.subr.mxu0 0.0
  %2328 = vmatpush1.msra.mxu0 0.0
  %2329 = vmatprep.subr.mxu0 0.0
  %2330 = vmatpush1.msra.mxu0 0.0
  %2331 = vmatprep.subr.mxu0 0.0
  %2332 = vmatpush1.msra.mxu0 0.0
  %2333 = vmatprep.subr.mxu0 0.0
  %2334 = vmatpush1.msra.mxu0 0.0
  %2335 = vmatprep.subr.mxu0 0.0
  %2336 = vmatpush1.msra.mxu0 0.0
  %2337 = vmatprep.subr.mxu0 0.0
  %2338 = vmatpush1.msra.mxu0 0.0
  %2339 = vmatprep.subr.mxu0 0.0
  %2340 = vmatpush1.msra.mxu0 0.0
  %2341 = vmatprep.subr.mxu0 0.0
  %2342 = vmatpush1.msra.mxu0 0.0
  %2343 = vmatprep.subr.mxu0 0.0
  %2344 = vmatpush1.msra.mxu0 0.0
  %2345 = vmatprep.subr.mxu0 0.0
  %2346 = vmatpush1.msra.mxu0 0.0
  %2347 = vmatprep.mubr.f32.mxu0 0.0
  %2348 = vmatmul.mubr.f32.gmra.mrb[0].mxu0 %v2210
  %v2349 = vpop.f32.mrb[0].mxu0
  %v2350 = vadd.f32 0.0, %v2349
  %v2351 = vpop.f32.mrb[0].mxu0
  %v2352 = vadd.f32 0.0, %v2351
  %2353 = vdwg.mxu0
  %2354 = vmatprep.subr.mxu0 %v888
  %2355 = vmatpush1.msra.mxu0 %v887
  %2356 = vmatprep.subr.mxu0 %v897
  %2357 = vmatpush1.msra.mxu0 %v896
  %2358 = vmatprep.subr.mxu0 0.0
  %2359 = vmatpush1.msra.mxu0 0.0
  %2360 = vmatprep.subr.mxu0 0.0
  %2361 = vmatpush1.msra.mxu0 0.0
  %2362 = vmatprep.subr.mxu0 0.0
  %2363 = vmatpush1.msra.mxu0 0.0
  %2364 = vmatprep.subr.mxu0 0.0
  %2365 = vmatpush1.msra.mxu0 0.0
  %2366 = vmatprep.subr.mxu0 0.0
  %2367 = vmatpush1.msra.mxu0 0.0
  %2368 = vmatprep.subr.mxu0 0.0
  %2369 = vmatpush1.msra.mxu0 0.0
  %2370 = vmatprep.subr.mxu0 0.0
  %2371 = vmatpush1.msra.mxu0 0.0
  %2372 = vmatprep.subr.mxu0 0.0
  %2373 = vmatpush1.msra.mxu0 0.0
  %2374 = vmatprep.subr.mxu0 0.0
  %2375 = vmatpush1.msra.mxu0 0.0
  %2376 = vmatprep.subr.mxu0 0.0
  %2377 = vmatpush1.msra.mxu0 0.0
  %2378 = vmatprep.subr.mxu0 0.0
  %2379 = vmatpush1.msra.mxu0 0.0
  %2380 = vmatprep.subr.mxu0 0.0
  %2381 = vmatpush1.msra.mxu0 0.0
  %2382 = vmatprep.subr.mxu0 0.0
  %2383 = vmatpush1.msra.mxu0 0.0
  %2384 = vmatprep.subr.mxu0 0.0
  %2385 = vmatpush1.msra.mxu0 0.0
  %2386 = vmatprep.subr.mxu0 0.0
  %2387 = vmatpush1.msra.mxu0 0.0
  %2388 = vmatprep.subr.mxu0 0.0
  %2389 = vmatpush1.msra.mxu0 0.0
  %2390 = vmatprep.subr.mxu0 0.0
  %2391 = vmatpush1.msra.mxu0 0.0
  %2392 = vmatprep.subr.mxu0 0.0
  %2393 = vmatpush1.msra.mxu0 0.0
  %2394 = vmatprep.subr.mxu0 0.0
  %2395 = vmatpush1.msra.mxu0 0.0
  %2396 = vmatprep.subr.mxu0 0.0
  %2397 = vmatpush1.msra.mxu0 0.0
  %2398 = vmatprep.subr.mxu0 0.0
  %2399 = vmatpush1.msra.mxu0 0.0
  %2400 = vmatprep.subr.mxu0 0.0
  %2401 = vmatpush1.msra.mxu0 0.0
  %2402 = vmatprep.subr.mxu0 0.0
  %2403 = vmatpush1.msra.mxu0 0.0
  %2404 = vmatprep.subr.mxu0 0.0
  %2405 = vmatpush1.msra.mxu0 0.0
  %2406 = vmatprep.subr.mxu0 0.0
  %2407 = vmatpush1.msra.mxu0 0.0
  %2408 = vmatprep.subr.mxu0 0.0
  %2409 = vmatpush1.msra.mxu0 0.0
  %2410 = vmatprep.subr.mxu0 0.0
  %2411 = vmatpush1.msra.mxu0 0.0
  %2412 = vmatprep.subr.mxu0 0.0
  %2413 = vmatpush1.msra.mxu0 0.0
  %2414 = vmatprep.subr.mxu0 0.0
  %2415 = vmatpush1.msra.mxu0 0.0
  %2416 = vmatprep.subr.mxu0 0.0
  %2417 = vmatpush1.msra.mxu0 0.0
  %2418 = vmatprep.mubr.f32.mxu0 0.0
  %2419 = vmatmul.mubr.f32.gmra.mrb[0].mxu0 %v2210
  %v2420 = vpop.f32.mrb[0].mxu0
  %v2421 = vadd.f32 0.0, %v2420
  %v2422 = vpop.f32.mrb[0].mxu0
  %v2423 = vadd.f32 0.0, %v2422
  %2424 = vdwg.mxu0
  %2425 = vmatprep.subr.mxu0 %v890
  %2426 = vmatpush1.msra.mxu0 %v889
  %2427 = vmatprep.subr.mxu0 %v899
  %2428 = vmatpush1.msra.mxu0 %v898
  %2429 = vmatprep.subr.mxu0 0.0
  %2430 = vmatpush1.msra.mxu0 0.0
  %2431 = vmatprep.subr.mxu0 0.0
  %2432 = vmatpush1.msra.mxu0 0.0
  %2433 = vmatprep.subr.mxu0 0.0
  %2434 = vmatpush1.msra.mxu0 0.0
  %2435 = vmatprep.subr.mxu0 0.0
  %2436 = vmatpush1.msra.mxu0 0.0
  %2437 = vmatprep.subr.mxu0 0.0
  %2438 = vmatpush1.msra.mxu0 0.0
  %2439 = vmatprep.subr.mxu0 0.0
  %2440 = vmatpush1.msra.mxu0 0.0
  %2441 = vmatprep.subr.mxu0 0.0
  %2442 = vmatpush1.msra.mxu0 0.0
  %2443 = vmatprep.subr.mxu0 0.0
  %2444 = vmatpush1.msra.mxu0 0.0
  %2445 = vmatprep.subr.mxu0 0.0
  %2446 = vmatpush1.msra.mxu0 0.0
  %2447 = vmatprep.subr.mxu0 0.0
  %2448 = vmatpush1.msra.mxu0 0.0
  %2449 = vmatprep.subr.mxu0 0.0
  %2450 = vmatpush1.msra.mxu0 0.0
  %2451 = vmatprep.subr.mxu0 0.0
  %2452 = vmatpush1.msra.mxu0 0.0
  %2453 = vmatprep.subr.mxu0 0.0
  %2454 = vmatpush1.msra.mxu0 0.0
  %2455 = vmatprep.subr.mxu0 0.0
  %2456 = vmatpush1.msra.mxu0 0.0
  %2457 = vmatprep.subr.mxu0 0.0
  %2458 = vmatpush1.msra.mxu0 0.0
  %2459 = vmatprep.subr.mxu0 0.0
  %2460 = vmatpush1.msra.mxu0 0.0
  %2461 = vmatprep.subr.mxu0 0.0
  %2462 = vmatpush1.msra.mxu0 0.0
  %2463 = vmatprep.subr.mxu0 0.0
  %2464 = vmatpush1.msra.mxu0 0.0
  %2465 = vmatprep.subr.mxu0 0.0
  %2466 = vmatpush1.msra.mxu0 0.0
  %2467 = vmatprep.subr.mxu0 0.0
  %2468 = vmatpush1.msra.mxu0 0.0
  %2469 = vmatprep.subr.mxu0 0.0
  %2470 = vmatpush1.msra.mxu0 0.0
  %2471 = vmatprep.subr.mxu0 0.0
  %2472 = vmatpush1.msra.mxu0 0.0
  %2473 = vmatprep.subr.mxu0 0.0
  %2474 = vmatpush1.msra.mxu0 0.0
  %2475 = vmatprep.subr.mxu0 0.0
  %2476 = vmatpush1.msra.mxu0 0.0
  %2477 = vmatprep.subr.mxu0 0.0
  %2478 = vmatpush1.msra.mxu0 0.0
  %2479 = vmatprep.subr.mxu0 0.0
  %2480 = vmatpush1.msra.mxu0 0.0
  %2481 = vmatprep.subr.mxu0 0.0
  %2482 = vmatpush1.msra.mxu0 0.0
  %2483 = vmatprep.subr.mxu0 0.0
  %2484 = vmatpush1.msra.mxu0 0.0
  %2485 = vmatprep.subr.mxu0 0.0
  %2486 = vmatpush1.msra.mxu0 0.0
  %2487 = vmatprep.subr.mxu0 0.0
  %2488 = vmatpush1.msra.mxu0 0.0
  %2489 = vmatprep.mubr.f32.mxu0 0.0
  %2490 = vmatmul.mubr.f32.gmra.mrb[0].mxu0 %v2210
  %v2491 = vpop.f32.mrb[0].mxu0
  %v2492 = vadd.f32 0.0, %v2491
  %v2493 = vpop.f32.mrb[0].mxu0
  %v2494 = vadd.f32 0.0, %v2493
  %2495 = vdwg.mxu0
  %v2496 = vld [vmem:[%s1 + $0x48] sm:$0xff]
  %v2497 = vld [vmem:[%s1 + $0x50] sm:$0xff]
  %v2498 = vld [vmem:[%s1 + $0x58] sm:$0xff]
  %v2499 = vld [vmem:[%s1 + $0x60] sm:$0xff]
  %v2500 = vld [vmem:[%s1 + $0x68] sm:$0xff]
  %v2501 = vld [vmem:[%s1 + $0x70] sm:$0xff]
  %v2502 = vld [vmem:[%s1 + $0x78] sm:$0xff]
  %v2503 = vld [vmem:[%s1 + $0x80] sm:$0xff]
  %v2504 = vlaneseq
  %v2505 = vshrl.u32 %v2504, 7
  %v2506 = vsub.s32 0, %v2505
  %v2507 = vrot.slane %v2279, %v2506
  %v2508 = vlaneseq
  %v2509 = vshrl.u32 %v2508, 7
  %v2510 = vsub.s32 0, %v2509
  %v2511 = vrot.slane %v2281, %v2510
  %v2512 = vlaneseq
  %v2513 = vshrl.u32 %v2512, 7
  %v2514 = vsub.s32 0, %v2513
  %v2515 = vrot.slane %v2350, %v2514
  %v2516 = vlaneseq
  %v2517 = vshrl.u32 %v2516, 7
  %v2518 = vsub.s32 0, %v2517
  %v2519 = vrot.slane %v2352, %v2518
  %v2520 = vlaneseq
  %v2521 = vshrl.u32 %v2520, 7
  %v2522 = vsub.s32 0, %v2521
  %v2523 = vrot.slane %v2421, %v2522
  %v2524 = vlaneseq
  %v2525 = vshrl.u32 %v2524, 7
  %v2526 = vsub.s32 0, %v2525
  %v2527 = vrot.slane %v2423, %v2526
  %v2528 = vlaneseq
  %v2529 = vshrl.u32 %v2528, 7
  %v2530 = vsub.s32 0, %v2529
  %v2531 = vrot.slane %v2492, %v2530
  %v2532 = vlaneseq
  %v2533 = vshrl.u32 %v2532, 7
  %v2534 = vsub.s32 0, %v2533
  %v2535 = vrot.slane %v2494, %v2534
  %v2536 = vmul.f32 %v2496, %v2507
  %v2537 = vmul.f32 %v2497, %v2511
  %v2538 = vmul.f32 %v2498, %v2515
  %v2539 = vmul.f32 %v2499, %v2519
  %v2540 = vmul.f32 %v2500, %v2523
  %v2541 = vmul.f32 %v2501, %v2527
  %v2542 = vmul.f32 %v2502, %v2531
  %v2543 = vmul.f32 %v2503, %v2535
  %v2544 = vld [vmem:[%s2] sm:$0xff]
  %v2545 = vld [vmem:[%s2 + $0x8] sm:$0xff]
  %v2546 = vld [vmem:[%s2 + $0x10] sm:$0xff]
  %v2547 = vld [vmem:[%s2 + $0x18] sm:$0xff]
  %v2548 = vld [vmem:[%s2 + $0x20] sm:$0xff]
  %v2549 = vld [vmem:[%s2 + $0x28] sm:$0xff]
  %v2550 = vld [vmem:[%s2 + $0x30] sm:$0xff]
  %v2551 = vld [vmem:[%s2 + $0x38] sm:$0xff]
  %v2552 = vld [vmem:[%s2 + $0x40] sm:$0xff]
  %v2553 = vld [vmem:[%s2 + $0x48] sm:$0xff]
  %v2554 = vld [vmem:[%s2 + $0x50] sm:$0xff]
  %v2555 = vld [vmem:[%s2 + $0x58] sm:$0xff]
  %v2556 = vld [vmem:[%s2 + $0x60] sm:$0xff]
  %v2557 = vld [vmem:[%s2 + $0x68] sm:$0xff]
  %v2558 = vld [vmem:[%s2 + $0x70] sm:$0xff]
  %v2559 = vld [vmem:[%s2 + $0x78] sm:$0xff]
  %v2560 = vld [vmem:[%s2 + $0x80] sm:$0xff]
  %v2561 = vld [vmem:[%s2 + $0x88] sm:$0xff]
  %v2562 = vld [vmem:[%s2 + $0x90] sm:$0xff]
  %v2563 = vld [vmem:[%s2 + $0x98] sm:$0xff]
  %v2564 = vld [vmem:[%s2 + $0xa0] sm:$0xff]
  %v2565 = vld [vmem:[%s2 + $0xa8] sm:$0xff]
  %v2566 = vld [vmem:[%s2 + $0xb0] sm:$0xff]
  %v2567 = vld [vmem:[%s2 + $0xb8] sm:$0xff]
  %v2568 = vld [vmem:[%s2 + $0xc0] sm:$0xff]
  %v2569 = vld [vmem:[%s2 + $0xc8] sm:$0xff]
  %v2570 = vld [vmem:[%s2 + $0xd0] sm:$0xff]
  %v2571 = vld [vmem:[%s2 + $0xd8] sm:$0xff]
  %v2572 = vld [vmem:[%s2 + $0xe0] sm:$0xff]
  %v2573 = vld [vmem:[%s2 + $0xe8] sm:$0xff]
  %v2574 = vld [vmem:[%s2 + $0xf0] sm:$0xff]
  %v2575 = vld [vmem:[%s2 + $0xf8] sm:$0xff]
  %v2576 = vld [vmem:[%s2 + $0x100] sm:$0xff]
  %v2577 = vld [vmem:[%s2 + $0x108] sm:$0xff]
  %v2578 = vld [vmem:[%s2 + $0x110] sm:$0xff]
  %v2579 = vld [vmem:[%s2 + $0x118] sm:$0xff]
  %v2580 = vld [vmem:[%s2 + $0x120] sm:$0xff]
  %v2581 = vld [vmem:[%s2 + $0x128] sm:$0xff]
  %v2582 = vld [vmem:[%s2 + $0x130] sm:$0xff]
  %v2583 = vld [vmem:[%s2 + $0x138] sm:$0xff]
  %v2584 = vld [vmem:[%s2 + $0x140] sm:$0xff]
  %v2585 = vld [vmem:[%s2 + $0x148] sm:$0xff]
  %v2586 = vld [vmem:[%s2 + $0x150] sm:$0xff]
  %v2587 = vld [vmem:[%s2 + $0x158] sm:$0xff]
  %v2588 = vld [vmem:[%s2 + $0x160] sm:$0xff]
  %v2589 = vld [vmem:[%s2 + $0x168] sm:$0xff]
  %v2590 = vld [vmem:[%s2 + $0x170] sm:$0xff]
  %v2591 = vld [vmem:[%s2 + $0x178] sm:$0xff]
  %v2592 = vld [vmem:[%s2 + $0x180] sm:$0xff]
  %v2593 = vld [vmem:[%s2 + $0x188] sm:$0xff]
  %v2594 = vld [vmem:[%s2 + $0x190] sm:$0xff]
  %v2595 = vld [vmem:[%s2 + $0x198] sm:$0xff]
  %v2596 = vld [vmem:[%s2 + $0x1a0] sm:$0xff]
  %v2597 = vld [vmem:[%s2 + $0x1a8] sm:$0xff]
  %v2598 = vld [vmem:[%s2 + $0x1b0] sm:$0xff]
  %v2599 = vld [vmem:[%s2 + $0x1b8] sm:$0xff]
  %v2600 = vld [vmem:[%s2 + $0x1c0] sm:$0xff]
  %v2601 = vld [vmem:[%s2 + $0x1c8] sm:$0xff]
  %v2602 = vld [vmem:[%s2 + $0x1d0] sm:$0xff]
  %v2603 = vld [vmem:[%s2 + $0x1d8] sm:$0xff]
  %v2604 = vld [vmem:[%s2 + $0x1e0] sm:$0xff]
  %v2605 = vld [vmem:[%s2 + $0x1e8] sm:$0xff]
  %v2606 = vld [vmem:[%s2 + $0x1f0] sm:$0xff]
  %v2607 = vld [vmem:[%s2 + $0x1f8] sm:$0xff]
  %v2608 = vld [vmem:[%s2 + $0x200] sm:$0xff]
  %v2609 = vld [vmem:[%s2 + $0x208] sm:$0xff]
  %v2610 = vld [vmem:[%s2 + $0x210] sm:$0xff]
  %v2611 = vld [vmem:[%s2 + $0x218] sm:$0xff]
  %v2612 = vld [vmem:[%s2 + $0x220] sm:$0xff]
  %v2613 = vld [vmem:[%s2 + $0x228] sm:$0xff]
  %v2614 = vld [vmem:[%s2 + $0x230] sm:$0xff]
  %v2615 = vld [vmem:[%s2 + $0x238] sm:$0xff]
  %v2616 = vld [vmem:[%s2 + $0x240] sm:$0xff]
  %v2617 = vld [vmem:[%s2 + $0x248] sm:$0xff]
  %v2618 = vld [vmem:[%s2 + $0x250] sm:$0xff]
  %v2619 = vld [vmem:[%s2 + $0x258] sm:$0xff]
  %v2620 = vld [vmem:[%s2 + $0x260] sm:$0xff]
  %v2621 = vld [vmem:[%s2 + $0x268] sm:$0xff]
  %v2622 = vld [vmem:[%s2 + $0x270] sm:$0xff]
  %v2623 = vld [vmem:[%s2 + $0x278] sm:$0xff]
  %v2624 = vld [vmem:[%s2 + $0x280] sm:$0xff]
  %v2625 = vld [vmem:[%s2 + $0x288] sm:$0xff]
  %v2626 = vld [vmem:[%s2 + $0x290] sm:$0xff]
  %v2627 = vld [vmem:[%s2 + $0x298] sm:$0xff]
  %v2628 = vld [vmem:[%s2 + $0x2a0] sm:$0xff]
  %v2629 = vld [vmem:[%s2 + $0x2a8] sm:$0xff]
  %v2630 = vld [vmem:[%s2 + $0x2b0] sm:$0xff]
  %v2631 = vld [vmem:[%s2 + $0x2b8] sm:$0xff]
  %v2632 = vld [vmem:[%s2 + $0x2c0] sm:$0xff]
  %v2633 = vld [vmem:[%s2 + $0x2c8] sm:$0xff]
  %v2634 = vld [vmem:[%s2 + $0x2d0] sm:$0xff]
  %v2635 = vld [vmem:[%s2 + $0x2d8] sm:$0xff]
  %v2636 = vld [vmem:[%s2 + $0x2e0] sm:$0xff]
  %v2637 = vld [vmem:[%s2 + $0x2e8] sm:$0xff]
  %v2638 = vld [vmem:[%s2 + $0x2f0] sm:$0xff]
  %v2639 = vld [vmem:[%s2 + $0x2f8] sm:$0xff]
  %v2640 = vld [vmem:[%s2 + $0x300] sm:$0xff]
  %v2641 = vld [vmem:[%s2 + $0x308] sm:$0xff]
  %v2642 = vld [vmem:[%s2 + $0x310] sm:$0xff]
  %v2643 = vld [vmem:[%s2 + $0x318] sm:$0xff]
  %v2644 = vld [vmem:[%s2 + $0x320] sm:$0xff]
  %v2645 = vld [vmem:[%s2 + $0x328] sm:$0xff]
  %v2646 = vld [vmem:[%s2 + $0x330] sm:$0xff]
  %v2647 = vld [vmem:[%s2 + $0x338] sm:$0xff]
  %v2648 = vld [vmem:[%s2 + $0x340] sm:$0xff]
  %v2649 = vld [vmem:[%s2 + $0x348] sm:$0xff]
  %v2650 = vld [vmem:[%s2 + $0x350] sm:$0xff]
  %v2651 = vld [vmem:[%s2 + $0x358] sm:$0xff]
  %v2652 = vld [vmem:[%s2 + $0x360] sm:$0xff]
  %v2653 = vld [vmem:[%s2 + $0x368] sm:$0xff]
  %v2654 = vld [vmem:[%s2 + $0x370] sm:$0xff]
  %v2655 = vld [vmem:[%s2 + $0x378] sm:$0xff]
  %v2656 = vld [vmem:[%s2 + $0x380] sm:$0xff]
  %v2657 = vld [vmem:[%s2 + $0x388] sm:$0xff]
  %v2658 = vld [vmem:[%s2 + $0x390] sm:$0xff]
  %v2659 = vld [vmem:[%s2 + $0x398] sm:$0xff]
  %v2660 = vld [vmem:[%s2 + $0x3a0] sm:$0xff]
  %v2661 = vld [vmem:[%s2 + $0x3a8] sm:$0xff]
  %v2662 = vld [vmem:[%s2 + $0x3b0] sm:$0xff]
  %v2663 = vld [vmem:[%s2 + $0x3b8] sm:$0xff]
  %v2664 = vld [vmem:[%s2 + $0x3c0] sm:$0xff]
  %v2665 = vld [vmem:[%s2 + $0x3c8] sm:$0xff]
  %v2666 = vld [vmem:[%s2 + $0x3d0] sm:$0xff]
  %v2667 = vld [vmem:[%s2 + $0x3d8] sm:$0xff]
  %v2668 = vld [vmem:[%s2 + $0x3e0] sm:$0xff]
  %v2669 = vld [vmem:[%s2 + $0x3e8] sm:$0xff]
  %v2670 = vld [vmem:[%s2 + $0x3f0] sm:$0xff]
  %v2671 = vld [vmem:[%s2 + $0x3f8] sm:$0xff]
  %v2672 = vld [vmem:[%s1 + $0x40] sm:$0xff]
  %2674 = vset.pattern.permute.xlu0 2
  %2675 = vperm.xlu0 %2674, %v2672
  %v2676 = vpop.permute.xlu0 %2675
  %2678 = vmatprep.subr.mxu0 0.0
  %2679 = vmatpush1.msra.mxu0 %v2544
  %2680 = vmatprep.subr.mxu0 0.0
  %2681 = vmatpush1.msra.mxu0 %v2545
  %2682 = vmatprep.subr.mxu0 0.0
  %2683 = vmatpush1.msra.mxu0 %v2546
  %2684 = vmatprep.subr.mxu0 0.0
  %2685 = vmatpush1.msra.mxu0 %v2547
  %2686 = vmatprep.subr.mxu0 0.0
  %2687 = vmatpush1.msra.mxu0 %v2548
  %2688 = vmatprep.subr.mxu0 0.0
  %2689 = vmatpush1.msra.mxu0 %v2549
  %2690 = vmatprep.subr.mxu0 0.0
  %2691 = vmatpush1.msra.mxu0 %v2550
  %2692 = vmatprep.subr.mxu0 0.0
  %2693 = vmatpush1.msra.mxu0 %v2551
  %2694 = vmatprep.subr.mxu0 0.0
  %2695 = vmatpush1.msra.mxu0 %v2552
  %2696 = vmatprep.subr.mxu0 0.0
  %2697 = vmatpush1.msra.mxu0 %v2553
  %2698 = vmatprep.subr.mxu0 0.0
  %2699 = vmatpush1.msra.mxu0 %v2554
  %2700 = vmatprep.subr.mxu0 0.0
  %2701 = vmatpush1.msra.mxu0 %v2555
  %2702 = vmatprep.subr.mxu0 0.0
  %2703 = vmatpush1.msra.mxu0 %v2556
  %2704 = vmatprep.subr.mxu0 0.0
  %2705 = vmatpush1.msra.mxu0 %v2557
  %2706 = vmatprep.subr.mxu0 0.0
  %2707 = vmatpush1.msra.mxu0 %v2558
  %2708 = vmatprep.subr.mxu0 0.0
  %2709 = vmatpush1.msra.mxu0 %v2559
  %2710 = vmatprep.subr.mxu0 0.0
  %2711 = vmatpush1.msra.mxu0 %v2560
  %2712 = vmatprep.subr.mxu0 0.0
  %2713 = vmatpush1.msra.mxu0 %v2561
  %2714 = vmatprep.subr.mxu0 0.0
  %2715 = vmatpush1.msra.mxu0 %v2562
  %2716 = vmatprep.subr.mxu0 0.0
  %2717 = vmatpush1.msra.mxu0 %v2563
  %2718 = vmatprep.subr.mxu0 0.0
  %2719 = vmatpush1.msra.mxu0 %v2564
  %2720 = vmatprep.subr.mxu0 0.0
  %2721 = vmatpush1.msra.mxu0 %v2565
  %2722 = vmatprep.subr.mxu0 0.0
  %2723 = vmatpush1.msra.mxu0 %v2566
  %2724 = vmatprep.subr.mxu0 0.0
  %2725 = vmatpush1.msra.mxu0 %v2567
  %2726 = vmatprep.subr.mxu0 0.0
  %2727 = vmatpush1.msra.mxu0 %v2568
  %2728 = vmatprep.subr.mxu0 0.0
  %2729 = vmatpush1.msra.mxu0 %v2569
  %2730 = vmatprep.subr.mxu0 0.0
  %2731 = vmatpush1.msra.mxu0 %v2570
  %2732 = vmatprep.subr.mxu0 0.0
  %2733 = vmatpush1.msra.mxu0 %v2571
  %2734 = vmatprep.subr.mxu0 0.0
  %2735 = vmatpush1.msra.mxu0 %v2572
  %2736 = vmatprep.subr.mxu0 0.0
  %2737 = vmatpush1.msra.mxu0 %v2573
  %2738 = vmatprep.subr.mxu0 0.0
  %2739 = vmatpush1.msra.mxu0 %v2574
  %2740 = vmatprep.subr.mxu0 0.0
  %2741 = vmatpush1.msra.mxu0 %v2575
  %2742 = vmatprep.mubr.f32.mxu0 %v2537
  %2743 = vmatmul.mubr.f32.gmra.mrb[0].mxu0 %v2536
  %v2744 = vpop.f32.mrb[0].mxu0
  %v2745 = vadd.f32 %v2676, %v2744
  %v2746 = vpop.f32.mrb[0].mxu0
  %2747 = vdwg.mxu0
  %2748 = vmatprep.subr.mxu0 0.0
  %2749 = vmatpush1.msra.mxu0 %v2576
  %2750 = vmatprep.subr.mxu0 0.0
  %2751 = vmatpush1.msra.mxu0 %v2577
  %2752 = vmatprep.subr.mxu0 0.0
  %2753 = vmatpush1.msra.mxu0 %v2578
  %2754 = vmatprep.subr.mxu0 0.0
  %2755 = vmatpush1.msra.mxu0 %v2579
  %2756 = vmatprep.subr.mxu0 0.0
  %2757 = vmatpush1.msra.mxu0 %v2580
  %2758 = vmatprep.subr.mxu0 0.0
  %2759 = vmatpush1.msra.mxu0 %v2581
  %2760 = vmatprep.subr.mxu0 0.0
  %2761 = vmatpush1.msra.mxu0 %v2582
  %2762 = vmatprep.subr.mxu0 0.0
  %2763 = vmatpush1.msra.mxu0 %v2583
  %2764 = vmatprep.subr.mxu0 0.0
  %2765 = vmatpush1.msra.mxu0 %v2584
  %2766 = vmatprep.subr.mxu0 0.0
  %2767 = vmatpush1.msra.mxu0 %v2585
  %2768 = vmatprep.subr.mxu0 0.0
  %2769 = vmatpush1.msra.mxu0 %v2586
  %2770 = vmatprep.subr.mxu0 0.0
  %2771 = vmatpush1.msra.mxu0 %v2587
  %2772 = vmatprep.subr.mxu0 0.0
  %2773 = vmatpush1.msra.mxu0 %v2588
  %2774 = vmatprep.subr.mxu0 0.0
  %2775 = vmatpush1.msra.mxu0 %v2589
  %2776 = vmatprep.subr.mxu0 0.0
  %2777 = vmatpush1.msra.mxu0 %v2590
  %2778 = vmatprep.subr.mxu0 0.0
  %2779 = vmatpush1.msra.mxu0 %v2591
  %2780 = vmatprep.subr.mxu0 0.0
  %2781 = vmatpush1.msra.mxu0 %v2592
  %2782 = vmatprep.subr.mxu0 0.0
  %2783 = vmatpush1.msra.mxu0 %v2593
  %2784 = vmatprep.subr.mxu0 0.0
  %2785 = vmatpush1.msra.mxu0 %v2594
  %2786 = vmatprep.subr.mxu0 0.0
  %2787 = vmatpush1.msra.mxu0 %v2595
  %2788 = vmatprep.subr.mxu0 0.0
  %2789 = vmatpush1.msra.mxu0 %v2596
  %2790 = vmatprep.subr.mxu0 0.0
  %2791 = vmatpush1.msra.mxu0 %v2597
  %2792 = vmatprep.subr.mxu0 0.0
  %2793 = vmatpush1.msra.mxu0 %v2598
  %2794 = vmatprep.subr.mxu0 0.0
  %2795 = vmatpush1.msra.mxu0 %v2599
  %2796 = vmatprep.subr.mxu0 0.0
  %2797 = vmatpush1.msra.mxu0 %v2600
  %2798 = vmatprep.subr.mxu0 0.0
  %2799 = vmatpush1.msra.mxu0 %v2601
  %2800 = vmatprep.subr.mxu0 0.0
  %2801 = vmatpush1.msra.mxu0 %v2602
  %2802 = vmatprep.subr.mxu0 0.0
  %2803 = vmatpush1.msra.mxu0 %v2603
  %2804 = vmatprep.subr.mxu0 0.0
  %2805 = vmatpush1.msra.mxu0 %v2604
  %2806 = vmatprep.subr.mxu0 0.0
  %2807 = vmatpush1.msra.mxu0 %v2605
  %2808 = vmatprep.subr.mxu0 0.0
  %2809 = vmatpush1.msra.mxu0 %v2606
  %2810 = vmatprep.subr.mxu0 0.0
  %2811 = vmatpush1.msra.mxu0 %v2607
  %2812 = vmatprep.mubr.f32.mxu0 %v2539
  %2813 = vmatmul.mubr.f32.gmra.mrb[0].mxu0 %v2538
  %v2814 = vpop.f32.mrb[0].mxu0
  %v2815 = vadd.f32 %v2745, %v2814
  %v2816 = vpop.f32.mrb[0].mxu0
  %2817 = vdwg.mxu0
  %2818 = vmatprep.subr.mxu0 0.0
  %2819 = vmatpush1.msra.mxu0 %v2608
  %2820 = vmatprep.subr.mxu0 0.0
  %2821 = vmatpush1.msra.mxu0 %v2609
  %2822 = vmatprep.subr.mxu0 0.0
  %2823 = vmatpush1.msra.mxu0 %v2610
  %2824 = vmatprep.subr.mxu0 0.0
  %2825 = vmatpush1.msra.mxu0 %v2611
  %2826 = vmatprep.subr.mxu0 0.0
  %2827 = vmatpush1.msra.mxu0 %v2612
  %2828 = vmatprep.subr.mxu0 0.0
  %2829 = vmatpush1.msra.mxu0 %v2613
  %2830 = vmatprep.subr.mxu0 0.0
  %2831 = vmatpush1.msra.mxu0 %v2614
  %2832 = vmatprep.subr.mxu0 0.0
  %2833 = vmatpush1.msra.mxu0 %v2615
  %2834 = vmatprep.subr.mxu0 0.0
  %2835 = vmatpush1.msra.mxu0 %v2616
  %2836 = vmatprep.subr.mxu0 0.0
  %2837 = vmatpush1.msra.mxu0 %v2617
  %2838 = vmatprep.subr.mxu0 0.0
  %2839 = vmatpush1.msra.mxu0 %v2618
  %2840 = vmatprep.subr.mxu0 0.0
  %2841 = vmatpush1.msra.mxu0 %v2619
  %2842 = vmatprep.subr.mxu0 0.0
  %2843 = vmatpush1.msra.mxu0 %v2620
  %2844 = vmatprep.subr.mxu0 0.0
  %2845 = vmatpush1.msra.mxu0 %v2621
  %2846 = vmatprep.subr.mxu0 0.0
  %2847 = vmatpush1.msra.mxu0 %v2622
  %2848 = vmatprep.subr.mxu0 0.0
  %2849 = vmatpush1.msra.mxu0 %v2623
  %2850 = vmatprep.subr.mxu0 0.0
  %2851 = vmatpush1.msra.mxu0 %v2624
  %2852 = vmatprep.subr.mxu0 0.0
  %2853 = vmatpush1.msra.mxu0 %v2625
  %2854 = vmatprep.subr.mxu0 0.0
  %2855 = vmatpush1.msra.mxu0 %v2626
  %2856 = vmatprep.subr.mxu0 0.0
  %2857 = vmatpush1.msra.mxu0 %v2627
  %2858 = vmatprep.subr.mxu0 0.0
  %2859 = vmatpush1.msra.mxu0 %v2628
  %2860 = vmatprep.subr.mxu0 0.0
  %2861 = vmatpush1.msra.mxu0 %v2629
  %2862 = vmatprep.subr.mxu0 0.0
  %2863 = vmatpush1.msra.mxu0 %v2630
  %2864 = vmatprep.subr.mxu0 0.0
  %2865 = vmatpush1.msra.mxu0 %v2631
  %2866 = vmatprep.subr.mxu0 0.0
  %2867 = vmatpush1.msra.mxu0 %v2632
  %2868 = vmatprep.subr.mxu0 0.0
  %2869 = vmatpush1.msra.mxu0 %v2633
  %2870 = vmatprep.subr.mxu0 0.0
  %2871 = vmatpush1.msra.mxu0 %v2634
  %2872 = vmatprep.subr.mxu0 0.0
  %2873 = vmatpush1.msra.mxu0 %v2635
  %2874 = vmatprep.subr.mxu0 0.0
  %2875 = vmatpush1.msra.mxu0 %v2636
  %2876 = vmatprep.subr.mxu0 0.0
  %2877 = vmatpush1.msra.mxu0 %v2637
  %2878 = vmatprep.subr.mxu0 0.0
  %2879 = vmatpush1.msra.mxu0 %v2638
  %2880 = vmatprep.subr.mxu0 0.0
  %2881 = vmatpush1.msra.mxu0 %v2639
  %2882 = vmatprep.mubr.f32.mxu0 %v2541
  %2883 = vmatmul.mubr.f32.gmra.mrb[0].mxu0 %v2540
  %v2884 = vpop.f32.mrb[0].mxu0
  %v2885 = vadd.f32 %v2815, %v2884
  %v2886 = vpop.f32.mrb[0].mxu0
  %2887 = vdwg.mxu0
  %2888 = vmatprep.subr.mxu0 0.0
  %2889 = vmatpush1.msra.mxu0 %v2640
  %2890 = vmatprep.subr.mxu0 0.0
  %2891 = vmatpush1.msra.mxu0 %v2641
  %2892 = vmatprep.subr.mxu0 0.0
  %2893 = vmatpush1.msra.mxu0 %v2642
  %2894 = vmatprep.subr.mxu0 0.0
  %2895 = vmatpush1.msra.mxu0 %v2643
  %2896 = vmatprep.subr.mxu0 0.0
  %2897 = vmatpush1.msra.mxu0 %v2644
  %2898 = vmatprep.subr.mxu0 0.0
  %2899 = vmatpush1.msra.mxu0 %v2645
  %2900 = vmatprep.subr.mxu0 0.0
  %2901 = vmatpush1.msra.mxu0 %v2646
  %2902 = vmatprep.subr.mxu0 0.0
  %2903 = vmatpush1.msra.mxu0 %v2647
  %2904 = vmatprep.subr.mxu0 0.0
  %2905 = vmatpush1.msra.mxu0 %v2648
  %2906 = vmatprep.subr.mxu0 0.0
  %2907 = vmatpush1.msra.mxu0 %v2649
  %2908 = vmatprep.subr.mxu0 0.0
  %2909 = vmatpush1.msra.mxu0 %v2650
  %2910 = vmatprep.subr.mxu0 0.0
  %2911 = vmatpush1.msra.mxu0 %v2651
  %2912 = vmatprep.subr.mxu0 0.0
  %2913 = vmatpush1.msra.mxu0 %v2652
  %2914 = vmatprep.subr.mxu0 0.0
  %2915 = vmatpush1.msra.mxu0 %v2653
  %2916 = vmatprep.subr.mxu0 0.0
  %2917 = vmatpush1.msra.mxu0 %v2654
  %2918 = vmatprep.subr.mxu0 0.0
  %2919 = vmatpush1.msra.mxu0 %v2655
  %2920 = vmatprep.subr.mxu0 0.0
  %2921 = vmatpush1.msra.mxu0 %v2656
  %2922 = vmatprep.subr.mxu0 0.0
  %2923 = vmatpush1.msra.mxu0 %v2657
  %2924 = vmatprep.subr.mxu0 0.0
  %2925 = vmatpush1.msra.mxu0 %v2658
  %2926 = vmatprep.subr.mxu0 0.0
  %2927 = vmatpush1.msra.mxu0 %v2659
  %2928 = vmatprep.subr.mxu0 0.0
  %2929 = vmatpush1.msra.mxu0 %v2660
  %2930 = vmatprep.subr.mxu0 0.0
  %2931 = vmatpush1.msra.mxu0 %v2661
  %2932 = vmatprep.subr.mxu0 0.0
  %2933 = vmatpush1.msra.mxu0 %v2662
  %2934 = vmatprep.subr.mxu0 0.0
  %2935 = vmatpush1.msra.mxu0 %v2663
  %2936 = vmatprep.subr.mxu0 0.0
  %2937 = vmatpush1.msra.mxu0 %v2664
  %2938 = vmatprep.subr.mxu0 0.0
  %2939 = vmatpush1.msra.mxu0 %v2665
  %2940 = vmatprep.subr.mxu0 0.0
  %2941 = vmatpush1.msra.mxu0 %v2666
  %2942 = vmatprep.subr.mxu0 0.0
  %2943 = vmatpush1.msra.mxu0 %v2667
  %2944 = vmatprep.subr.mxu0 0.0
  %2945 = vmatpush1.msra.mxu0 %v2668
  %2946 = vmatprep.subr.mxu0 0.0
  %2947 = vmatpush1.msra.mxu0 %v2669
  %2948 = vmatprep.subr.mxu0 0.0
  %2949 = vmatpush1.msra.mxu0 %v2670
  %2950 = vmatprep.subr.mxu0 0.0
  %2951 = vmatpush1.msra.mxu0 %v2671
  %2952 = vmatprep.mubr.f32.mxu0 %v2543
  %2953 = vmatmul.mubr.f32.gmra.mrb[0].mxu0 %v2542
  %v2954 = vpop.f32.mrb[0].mxu0
  %v2955 = vadd.f32 %v2885, %v2954
  %v2956 = vpop.f32.mrb[0].mxu0
  %2957 = vdwg.mxu0
  %v2958 = vmax.f32 %v2955, 0.0
  %v2959 = vld [vmem:[%s1 + $0x28] sm:$0xff]
  %v2960 = vld [vmem:[%s1 + $0xb0] sm:$0xff]
  %2961 = vset.pattern.permute.xlu0 3
  %2962 = vperm.xlu0 %2961, %v1666
  %v2963 = vpop.permute.xlu0 %2962
  %2965 = vset.pattern.permute.xlu0 3
  %2966 = vperm.xlu0 %2965, %v1667
  %v2967 = vpop.permute.xlu0 %2966
  %v2970 = vsel %vm25, %v2959, 0
  %v2973 = vsel %vm25, %v2960, 0
  %2975 = vmatprep.subr.mxu0 0.0
  %2976 = vmatpush1.msra.mxu0 %v2958
  %2977 = vmatprep.subr.mxu0 0.0
  %2978 = vmatpush1.msra.mxu0 0.0
  %2979 = vmatprep.subr.mxu0 0.0
  %2980 = vmatpush1.msra.mxu0 0.0
  %2981 = vmatprep.subr.mxu0 0.0
  %2982 = vmatpush1.msra.mxu0 0.0
  %2983 = vmatprep.subr.mxu0 0.0
  %2984 = vmatpush1.msra.mxu0 0.0
  %2985 = vmatprep.subr.mxu0 0.0
  %2986 = vmatpush1.msra.mxu0 0.0
  %2987 = vmatprep.subr.mxu0 0.0
  %2988 = vmatpush1.msra.mxu0 0.0
  %2989 = vmatprep.subr.mxu0 0.0
  %2990 = vmatpush1.msra.mxu0 0.0
  %2991 = vmatprep.subr.mxu0 0.0
  %2992 = vmatpush1.msra.mxu0 0.0
  %2993 = vmatprep.subr.mxu0 0.0
  %2994 = vmatpush1.msra.mxu0 0.0
  %2995 = vmatprep.subr.mxu0 0.0
  %2996 = vmatpush1.msra.mxu0 0.0
  %2997 = vmatprep.subr.mxu0 0.0
  %2998 = vmatpush1.msra.mxu0 0.0
  %2999 = vmatprep.subr.mxu0 0.0
  %3000 = vmatpush1.msra.mxu0 0.0
  %3001 = vmatprep.subr.mxu0 0.0
  %3002 = vmatpush1.msra.mxu0 0.0
  %3003 = vmatprep.subr.mxu0 0.0
  %3004 = vmatpush1.msra.mxu0 0.0
  %3005 = vmatprep.subr.mxu0 0.0
  %3006 = vmatpush1.msra.mxu0 0.0
  %3007 = vmatprep.subr.mxu0 0.0
  %3008 = vmatpush1.msra.mxu0 0.0
  %3009 = vmatprep.subr.mxu0 0.0
  %3010 = vmatpush1.msra.mxu0 0.0
  %3011 = vmatprep.subr.mxu0 0.0
  %3012 = vmatpush1.msra.mxu0 0.0
  %3013 = vmatprep.subr.mxu0 0.0
  %3014 = vmatpush1.msra.mxu0 0.0
  %3015 = vmatprep.subr.mxu0 0.0
  %3016 = vmatpush1.msra.mxu0 0.0
  %3017 = vmatprep.subr.mxu0 0.0
  %3018 = vmatpush1.msra.mxu0 0.0
  %3019 = vmatprep.subr.mxu0 0.0
  %3020 = vmatpush1.msra.mxu0 0.0
  %3021 = vmatprep.subr.mxu0 0.0
  %3022 = vmatpush1.msra.mxu0 0.0
  %3023 = vmatprep.subr.mxu0 0.0
  %3024 = vmatpush1.msra.mxu0 0.0
  %3025 = vmatprep.subr.mxu0 0.0
  %3026 = vmatpush1.msra.mxu0 0.0
  %3027 = vmatprep.subr.mxu0 0.0
  %3028 = vmatpush1.msra.mxu0 0.0
  %3029 = vmatprep.subr.mxu0 0.0
  %3030 = vmatpush1.msra.mxu0 0.0
  %3031 = vmatprep.subr.mxu0 0.0
  %3032 = vmatpush1.msra.mxu0 0.0
  %3033 = vmatprep.subr.mxu0 0.0
  %3034 = vmatpush1.msra.mxu0 0.0
  %3035 = vmatprep.subr.mxu0 0.0
  %3036 = vmatpush1.msra.mxu0 0.0
  %3037 = vmatprep.subr.mxu0 0.0
  %3038 = vmatpush1.msra.mxu0 0.0
  %3039 = vmatprep.mubr.f32.mxu0 0.0
  %3040 = vmatmul.mubr.f32.gmra.mrb[0].mxu0 %v2970
  %v3041 = vpop.f32.mrb[0].mxu0
  %v3042 = vadd.f32 %v2963, %v3041
  %v3043 = vpop.f32.mrb[0].mxu0
  %3044 = vmatprep.mubr.f32.mxu0 0.0
  %3045 = vmatmul.mubr.f32.gmra.mrb[0].mxu0 %v2973
  %v3046 = vpop.f32.mrb[0].mxu0
  %v3047 = vadd.f32 %v2967, %v3046
  %v3048 = vpop.f32.mrb[0].mxu0
  %3049 = vdwg.mxu0
  %v3050 = vxor.u32 %v3042, 2147483648
  %v3051 = vxor.u32 %v3047, 2147483648
  %v3052 = vmul.f32 %v3050, 1.442695
  %v3053 = vpow.pop %v3052
  %v3054 = vmul.f32 %v3051, 1.442695
  %v3055 = vpow.pop %v3054
  %v3056 = vadd.f32 %v3053, 1.0
  %v3057 = vadd.f32 %v3055, 1.0
  %v3058 = vrcp.pop %v3056
  %v3059 = vmul.f32 1.0, %v3058
  %v3060 = vrcp.pop %v3057
  %v3061 = vmul.f32 1.0, %v3060
  %v3062 = vmul.f32 %v3059, %v2200
  %v3063 = vmul.f32 %v3061, %v2205
  %v3064 = vld [vmem:[%s2 + $0x500] sm:$0xff]
  %v3065 = vld [vmem:[%s2 + $0x508] sm:$0xff]
  %v3066 = vld [vmem:[%s2 + $0x510] sm:$0xff]
  %v3067 = vld [vmem:[%s2 + $0x518] sm:$0xff]
  %v3068 = vld [vmem:[%s2 + $0x520] sm:$0xff]
  %v3069 = vld [vmem:[%s2 + $0x528] sm:$0xff]
  %v3070 = vld [vmem:[%s2 + $0x530] sm:$0xff]
  %v3071 = vld [vmem:[%s2 + $0x538] sm:$0xff]
  %v3072 = vld [vmem:[%s2 + $0x540] sm:$0xff]
  %v3073 = vld [vmem:[%s2 + $0x548] sm:$0xff]
  %v3075 = vsel %vm903, %v3064, 0
  %v3078 = vsel %vm903, %v3065, 0
  %v3081 = vsel %vm903, %v3066, 0
  %v3084 = vsel %vm903, %v3067, 0
  %v3087 = vsel %vm903, %v3068, 0
  %v3090 = vsel %vm903, %v3069, 0
  %v3093 = vsel %vm903, %v3070, 0
  %v3096 = vsel %vm903, %v3071, 0
  %v3099 = vsel %vm903, %v3072, 0
  %v3102 = vsel %vm903, %v3073, 0
  %3104 = vmatprep.subr.mxu0 0.0
  %3105 = vmatpush1.msra.mxu0 %v3062
  %3106 = vmatprep.subr.mxu0 0.0
  %3107 = vmatpush1.msra.mxu0 %v3063
  %3108 = vmatprep.subr.mxu0 0.0
  %3109 = vmatpush1.msra.mxu0 0.0
  %3110 = vmatprep.subr.mxu0 0.0
  %3111 = vmatpush1.msra.mxu0 0.0
  %3112 = vmatprep.subr.mxu0 0.0
  %3113 = vmatpush1.msra.mxu0 0.0
  %3114 = vmatprep.subr.mxu0 0.0
  %3115 = vmatpush1.msra.mxu0 0.0
  %3116 = vmatprep.subr.mxu0 0.0
  %3117 = vmatpush1.msra.mxu0 0.0
  %3118 = vmatprep.subr.mxu0 0.0
  %3119 = vmatpush1.msra.mxu0 0.0
  %3120 = vmatprep.subr.mxu0 0.0
  %3121 = vmatpush1.msra.mxu0 0.0
  %3122 = vmatprep.subr.mxu0 0.0
  %3123 = vmatpush1.msra.mxu0 0.0
  %3124 = vmatprep.subr.mxu0 0.0
  %3125 = vmatpush1.msra.mxu0 0.0
  %3126 = vmatprep.subr.mxu0 0.0
  %3127 = vmatpush1.msra.mxu0 0.0
  %3128 = vmatprep.subr.mxu0 0.0
  %3129 = vmatpush1.msra.mxu0 0.0
  %3130 = vmatprep.subr.mxu0 0.0
  %3131 = vmatpush1.msra.mxu0 0.0
  %3132 = vmatprep.subr.mxu0 0.0
  %3133 = vmatpush1.msra.mxu0 0.0
  %3134 = vmatprep.subr.mxu0 0.0
  %3135 = vmatpush1.msra.mxu0 0.0
  %3136 = vmatprep.subr.mxu0 0.0
  %3137 = vmatpush1.msra.mxu0 0.0
  %3138 = vmatprep.subr.mxu0 0.0
  %3139 = vmatpush1.msra.mxu0 0.0
  %3140 = vmatprep.subr.mxu0 0.0
  %3141 = vmatpush1.msra.mxu0 0.0
  %3142 = vmatprep.subr.mxu0 0.0
  %3143 = vmatpush1.msra.mxu0 0.0
  %3144 = vmatprep.subr.mxu0 0.0
  %3145 = vmatpush1.msra.mxu0 0.0
  %3146 = vmatprep.subr.mxu0 0.0
  %3147 = vmatpush1.msra.mxu0 0.0
  %3148 = vmatprep.subr.mxu0 0.0
  %3149 = vmatpush1.msra.mxu0 0.0
  %3150 = vmatprep.subr.mxu0 0.0
  %3151 = vmatpush1.msra.mxu0 0.0
  %3152 = vmatprep.subr.mxu0 0.0
  %3153 = vmatpush1.msra.mxu0 0.0
  %3154 = vmatprep.subr.mxu0 0.0
  %3155 = vmatpush1.msra.mxu0 0.0
  %3156 = vmatprep.subr.mxu0 0.0
  %3157 = vmatpush1.msra.mxu0 0.0
  %3158 = vmatprep.subr.mxu0 0.0
  %3159 = vmatpush1.msra.mxu0 0.0
  %3160 = vmatprep.subr.mxu0 0.0
  %3161 = vmatpush1.msra.mxu0 0.0
  %3162 = vmatprep.subr.mxu0 0.0
  %3163 = vmatpush1.msra.mxu0 0.0
  %3164 = vmatprep.subr.mxu0 0.0
  %3165 = vmatpush1.msra.mxu0 0.0
  %3166 = vmatprep.subr.mxu0 0.0
  %3167 = vmatpush1.msra.mxu0 0.0
  %3168 = vmatprep.mubr.f32.mxu0 0.0
  %3169 = vmatmul.mubr.f32.gmra.mrb[0].mxu0 %v3075
  %v3170 = vpop.f32.mrb[0].mxu0
  %v3171 = vadd.f32 0.0, %v3170
  %v3172 = vpop.f32.mrb[0].mxu0
  %3173 = vmatprep.mubr.f32.mxu0 0.0
  %3174 = vmatmul.mubr.f32.gmra.mrb[0].mxu0 %v3078
  %v3175 = vpop.f32.mrb[0].mxu0
  %v3176 = vadd.f32 0.0, %v3175
  %v3177 = vpop.f32.mrb[0].mxu0
  %3178 = vmatprep.mubr.f32.mxu0 0.0
  %3179 = vmatmul.mubr.f32.gmra.mrb[0].mxu0 %v3081
  %v3180 = vpop.f32.mrb[0].mxu0
  %v3181 = vadd.f32 0.0, %v3180
  %v3182 = vpop.f32.mrb[0].mxu0
  %3183 = vmatprep.mubr.f32.mxu0 0.0
  %3184 = vmatmul.mubr.f32.gmra.mrb[0].mxu0 %v3084
  %v3185 = vpop.f32.mrb[0].mxu0
  %v3186 = vadd.f32 0.0, %v3185
  %v3187 = vpop.f32.mrb[0].mxu0
  %3188 = vmatprep.mubr.f32.mxu0 0.0
  %3189 = vmatmul.mubr.f32.gmra.mrb[0].mxu0 %v3087
  %v3190 = vpop.f32.mrb[0].mxu0
  %v3191 = vadd.f32 0.0, %v3190
  %v3192 = vpop.f32.mrb[0].mxu0
  %3193 = vmatprep.mubr.f32.mxu0 0.0
  %3194 = vmatmul.mubr.f32.gmra.mrb[0].mxu0 %v3090
  %v3195 = vpop.f32.mrb[0].mxu0
  %v3196 = vadd.f32 0.0, %v3195
  %v3197 = vpop.f32.mrb[0].mxu0
  %3198 = vmatprep.mubr.f32.mxu0 0.0
  %3199 = vmatmul.mubr.f32.gmra.mrb[0].mxu0 %v3093
  %v3200 = vpop.f32.mrb[0].mxu0
  %v3201 = vadd.f32 0.0, %v3200
  %v3202 = vpop.f32.mrb[0].mxu0
  %3203 = vmatprep.mubr.f32.mxu0 0.0
  %3204 = vmatmul.mubr.f32.gmra.mrb[0].mxu0 %v3096
  %v3205 = vpop.f32.mrb[0].mxu0
  %v3206 = vadd.f32 0.0, %v3205
  %v3207 = vpop.f32.mrb[0].mxu0
  %3208 = vmatprep.mubr.f32.mxu0 0.0
  %3209 = vmatmul.mubr.f32.gmra.mrb[0].mxu0 %v3099
  %v3210 = vpop.f32.mrb[0].mxu0
  %v3211 = vadd.f32 0.0, %v3210
  %v3212 = vpop.f32.mrb[0].mxu0
  %3213 = vmatprep.mubr.f32.mxu0 0.0
  %3214 = vmatmul.mubr.f32.gmra.mrb[0].mxu0 %v3102
  %v3215 = vpop.f32.mrb[0].mxu0
  %v3216 = vadd.f32 0.0, %v3215
  %v3217 = vpop.f32.mrb[0].mxu0
  %3218 = vdwg.mxu0
  %v3219 = vld [vmem:[%s2 + $0x550] sm:$0xff]
  %v3220 = vld [vmem:[%s2 + $0x558] sm:$0xff]
  %v3221 = vld [vmem:[%s2 + $0x560] sm:$0xff]
  %v3222 = vld [vmem:[%s2 + $0x568] sm:$0xff]
  %v3223 = vld [vmem:[%s2 + $0x570] sm:$0xff]
  %v3224 = vld [vmem:[%s2 + $0x578] sm:$0xff]
  %v3225 = vld [vmem:[%s2 + $0x580] sm:$0xff]
  %v3226 = vld [vmem:[%s2 + $0x588] sm:$0xff]
  %v3227 = vld [vmem:[%s2 + $0x590] sm:$0xff]
  %v3228 = vld [vmem:[%s2 + $0x598] sm:$0xff]
  %v3229 = vmul.f32 %v3171, %v3219
  %v3230 = vmul.f32 %v3176, %v3220
  %v3231 = vmul.f32 %v3181, %v3221
  %v3232 = vmul.f32 %v3186, %v3222
  %v3233 = vmul.f32 %v3191, %v3223
  %v3234 = vmul.f32 %v3196, %v3224
  %v3235 = vmul.f32 %v3201, %v3225
  %v3236 = vmul.f32 %v3206, %v3226
  %v3237 = vmul.f32 %v3211, %v3227
  %v3238 = vmul.f32 %v3216, %v3228
  %v3239 = vld [vmem:[%s2 + $0x5a0] sm:$0xff]
  %v3240 = vld [vmem:[%s2 + $0x5a8] sm:$0x3]
  %vm3241 = vcmask 80896
  %v3243 = vsel %vm3241, %v3229, 0
  %v3246 = vsel %vm3241, %v3230, 0
  %v3249 = vsel %vm3241, %v3231, 0
  %v3252 = vsel %vm3241, %v3232, 0
  %v3255 = vsel %vm3241, %v3233, 0
  %v3258 = vsel %vm3241, %v3234, 0
  %v3261 = vsel %vm3241, %v3235, 0
  %v3264 = vsel %vm3241, %v3236, 0
  %v3267 = vsel %vm3241, %v3237, 0
  %v3270 = vsel %vm3241, %v3238, 0
  %vm3272 = vcmask 1041408
  %v3274 = vsel %vm3272, %v3240, 0
  %3276 = vmatprep.subr.mxu0 0.0
  %3277 = vmatpush1.msra.mxu0 %v3239
  %3278 = vmatprep.subr.mxu0 0.0
  %3279 = vmatpush1.msra.mxu0 %v3274
  %3280 = vmatprep.subr.mxu0 0.0
  %3281 = vmatpush1.msra.mxu0 0.0
  %3282 = vmatprep.subr.mxu0 0.0
  %3283 = vmatpush1.msra.mxu0 0.0
  %3284 = vmatprep.subr.mxu0 0.0
  %3285 = vmatpush1.msra.mxu0 0.0
  %3286 = vmatprep.subr.mxu0 0.0
  %3287 = vmatpush1.msra.mxu0 0.0
  %3288 = vmatprep.subr.mxu0 0.0
  %3289 = vmatpush1.msra.mxu0 0.0
  %3290 = vmatprep.subr.mxu0 0.0
  %3291 = vmatpush1.msra.mxu0 0.0
  %3292 = vmatprep.subr.mxu0 0.0
  %3293 = vmatpush1.msra.mxu0 0.0
  %3294 = vmatprep.subr.mxu0 0.0
  %3295 = vmatpush1.msra.mxu0 0.0
  %3296 = vmatprep.subr.mxu0 0.0
  %3297 = vmatpush1.msra.mxu0 0.0
  %3298 = vmatprep.subr.mxu0 0.0
  %3299 = vmatpush1.msra.mxu0 0.0
  %3300 = vmatprep.subr.mxu0 0.0
  %3301 = vmatpush1.msra.mxu0 0.0
  %3302 = vmatprep.subr.mxu0 0.0
  %3303 = vmatpush1.msra.mxu0 0.0
  %3304 = vmatprep.subr.mxu0 0.0
  %3305 = vmatpush1.msra.mxu0 0.0
  %3306 = vmatprep.subr.mxu0 0.0
  %3307 = vmatpush1.msra.mxu0 0.0
  %3308 = vmatprep.subr.mxu0 0.0
  %3309 = vmatpush1.msra.mxu0 0.0
  %3310 = vmatprep.subr.mxu0 0.0
  %3311 = vmatpush1.msra.mxu0 0.0
  %3312 = vmatprep.subr.mxu0 0.0
  %3313 = vmatpush1.msra.mxu0 0.0
  %3314 = vmatprep.subr.mxu0 0.0
  %3315 = vmatpush1.msra.mxu0 0.0
  %3316 = vmatprep.subr.mxu0 0.0
  %3317 = vmatpush1.msra.mxu0 0.0
  %3318 = vmatprep.subr.mxu0 0.0
  %3319 = vmatpush1.msra.mxu0 0.0
  %3320 = vmatprep.subr.mxu0 0.0
  %3321 = vmatpush1.msra.mxu0 0.0
  %3322 = vmatprep.subr.mxu0 0.0
  %3323 = vmatpush1.msra.mxu0 0.0
  %3324 = vmatprep.subr.mxu0 0.0
  %3325 = vmatpush1.msra.mxu0 0.0
  %3326 = vmatprep.subr.mxu0 0.0
  %3327 = vmatpush1.msra.mxu0 0.0
  %3328 = vmatprep.subr.mxu0 0.0
  %3329 = vmatpush1.msra.mxu0 0.0
  %3330 = vmatprep.subr.mxu0 0.0
  %3331 = vmatpush1.msra.mxu0 0.0
  %3332 = vmatprep.subr.mxu0 0.0
  %3333 = vmatpush1.msra.mxu0 0.0
  %3334 = vmatprep.subr.mxu0 0.0
  %3335 = vmatpush1.msra.mxu0 0.0
  %3336 = vmatprep.subr.mxu0 0.0
  %3337 = vmatpush1.msra.mxu0 0.0
  %3338 = vmatprep.subr.mxu0 0.0
  %3339 = vmatpush1.msra.mxu0 0.0
  %3340 = vmatprep.mubr.f32.mxu0 0.0
  %3341 = vmatmul.mubr.f32.gmra.mrb[0].mxu0 %v3243
  %v3342 = vpop.f32.mrb[0].mxu0
  %v3343 = vadd.f32 0.0, %v3342
  %v3344 = vpop.f32.mrb[0].mxu0
  %3345 = vmatprep.mubr.f32.mxu0 0.0
  %3346 = vmatmul.mubr.f32.gmra.mrb[0].mxu0 %v3246
  %v3347 = vpop.f32.mrb[0].mxu0
  %v3348 = vadd.f32 0.0, %v3347
  %v3349 = vpop.f32.mrb[0].mxu0
  %3350 = vmatprep.mubr.f32.mxu0 0.0
  %3351 = vmatmul.mubr.f32.gmra.mrb[0].mxu0 %v3249
  %v3352 = vpop.f32.mrb[0].mxu0
  %v3353 = vadd.f32 0.0, %v3352
  %v3354 = vpop.f32.mrb[0].mxu0
  %3355 = vmatprep.mubr.f32.mxu0 0.0
  %3356 = vmatmul.mubr.f32.gmra.mrb[0].mxu0 %v3252
  %v3357 = vpop.f32.mrb[0].mxu0
  %v3358 = vadd.f32 0.0, %v3357
  %v3359 = vpop.f32.mrb[0].mxu0
  %3360 = vmatprep.mubr.f32.mxu0 0.0
  %3361 = vmatmul.mubr.f32.gmra.mrb[0].mxu0 %v3255
  %v3362 = vpop.f32.mrb[0].mxu0
  %v3363 = vadd.f32 0.0, %v3362
  %v3364 = vpop.f32.mrb[0].mxu0
  %3365 = vmatprep.mubr.f32.mxu0 0.0
  %3366 = vmatmul.mubr.f32.gmra.mrb[0].mxu0 %v3258
  %v3367 = vpop.f32.mrb[0].mxu0
  %v3368 = vadd.f32 0.0, %v3367
  %v3369 = vpop.f32.mrb[0].mxu0
  %3370 = vmatprep.mubr.f32.mxu0 0.0
  %3371 = vmatmul.mubr.f32.gmra.mrb[0].mxu0 %v3261
  %v3372 = vpop.f32.mrb[0].mxu0
  %v3373 = vadd.f32 0.0, %v3372
  %v3374 = vpop.f32.mrb[0].mxu0
  %3375 = vmatprep.mubr.f32.mxu0 0.0
  %3376 = vmatmul.mubr.f32.gmra.mrb[0].mxu0 %v3264
  %v3377 = vpop.f32.mrb[0].mxu0
  %v3378 = vadd.f32 0.0, %v3377
  %v3379 = vpop.f32.mrb[0].mxu0
  %3380 = vmatprep.mubr.f32.mxu0 0.0
  %3381 = vmatmul.mubr.f32.gmra.mrb[0].mxu0 %v3267
  %v3382 = vpop.f32.mrb[0].mxu0
  %v3383 = vadd.f32 0.0, %v3382
  %v3384 = vpop.f32.mrb[0].mxu0
  %3385 = vmatprep.mubr.f32.mxu0 0.0
  %3386 = vmatmul.mubr.f32.gmra.mrb[0].mxu0 %v3270
  %v3387 = vpop.f32.mrb[0].mxu0
  %v3388 = vadd.f32 0.0, %v3387
  %v3389 = vpop.f32.mrb[0].mxu0
  %3390 = vdwg.mxu0
  %v3391 = vld [vmem:[%s1 + $0x30] sm:$0xff]
  %3392 = vset.pattern.permute.xlu0 4
  %3393 = vperm.xlu0 %3392, %v2672
  %v3394 = vpop.permute.xlu0 %3393
  %v3397 = vsel %vm1678, %v3391, 0
  %3399 = vmatprep.subr.mxu0 0.0
  %3400 = vmatpush1.msra.mxu0 %v3343
  %3401 = vmatprep.subr.mxu0 0.0
  %3402 = vmatpush1.msra.mxu0 %v3348
  %3403 = vmatprep.subr.mxu0 0.0
  %3404 = vmatpush1.msra.mxu0 %v3353
  %3405 = vmatprep.subr.mxu0 0.0
  %3406 = vmatpush1.msra.mxu0 %v3358
  %3407 = vmatprep.subr.mxu0 0.0
  %3408 = vmatpush1.msra.mxu0 %v3363
  %3409 = vmatprep.subr.mxu0 0.0
  %3410 = vmatpush1.msra.mxu0 %v3368
  %3411 = vmatprep.subr.mxu0 0.0
  %3412 = vmatpush1.msra.mxu0 %v3373
  %3413 = vmatprep.subr.mxu0 0.0
  %3414 = vmatpush1.msra.mxu0 %v3378
  %3415 = vmatprep.subr.mxu0 0.0
  %3416 = vmatpush1.msra.mxu0 %v3383
  %3417 = vmatprep.subr.mxu0 0.0
  %3418 = vmatpush1.msra.mxu0 %v3388
  %3419 = vmatprep.subr.mxu0 0.0
  %3420 = vmatpush1.msra.mxu0 0.0
  %3421 = vmatprep.subr.mxu0 0.0
  %3422 = vmatpush1.msra.mxu0 0.0
  %3423 = vmatprep.subr.mxu0 0.0
  %3424 = vmatpush1.msra.mxu0 0.0
  %3425 = vmatprep.subr.mxu0 0.0
  %3426 = vmatpush1.msra.mxu0 0.0
  %3427 = vmatprep.subr.mxu0 0.0
  %3428 = vmatpush1.msra.mxu0 0.0
  %3429 = vmatprep.subr.mxu0 0.0
  %3430 = vmatpush1.msra.mxu0 0.0
  %3431 = vmatprep.subr.mxu0 0.0
  %3432 = vmatpush1.msra.mxu0 0.0
  %3433 = vmatprep.subr.mxu0 0.0
  %3434 = vmatpush1.msra.mxu0 0.0
  %3435 = vmatprep.subr.mxu0 0.0
  %3436 = vmatpush1.msra.mxu0 0.0
  %3437 = vmatprep.subr.mxu0 0.0
  %3438 = vmatpush1.msra.mxu0 0.0
  %3439 = vmatprep.subr.mxu0 0.0
  %3440 = vmatpush1.msra.mxu0 0.0
  %3441 = vmatprep.subr.mxu0 0.0
  %3442 = vmatpush1.msra.mxu0 0.0
  %3443 = vmatprep.subr.mxu0 0.0
  %3444 = vmatpush1.msra.mxu0 0.0
  %3445 = vmatprep.subr.mxu0 0.0
  %3446 = vmatpush1.msra.mxu0 0.0
  %3447 = vmatprep.subr.mxu0 0.0
  %3448 = vmatpush1.msra.mxu0 0.0
  %3449 = vmatprep.subr.mxu0 0.0
  %3450 = vmatpush1.msra.mxu0 0.0
  %3451 = vmatprep.subr.mxu0 0.0
  %3452 = vmatpush1.msra.mxu0 0.0
  %3453 = vmatprep.subr.mxu0 0.0
  %3454 = vmatpush1.msra.mxu0 0.0
  %3455 = vmatprep.subr.mxu0 0.0
  %3456 = vmatpush1.msra.mxu0 0.0
  %3457 = vmatprep.subr.mxu0 0.0
  %3458 = vmatpush1.msra.mxu0 0.0
  %3459 = vmatprep.subr.mxu0 0.0
  %3460 = vmatpush1.msra.mxu0 0.0
  %3461 = vmatprep.subr.mxu0 0.0
  %3462 = vmatpush1.msra.mxu0 0.0
  %3463 = vmatprep.mubr.f32.mxu0 0.0
  %3464 = vmatmul.mubr.f32.gmra.mrb[0].mxu0 %v3397
  %v3465 = vpop.f32.mrb[0].mxu0
  %v3466 = vadd.f32 %v3394, %v3465
  %v3467 = vpop.f32.mrb[0].mxu0
  %3468 = vdwg.mxu0
  %vm3469 = vcmask 15360
  %3470 = vst.msk [vmem:[%s3] sm:$0xff] %vm3469, %v3343
  %3471 = vst.msk [vmem:[%s3 + $0x8] sm:$0xff] %vm3469, %v3348
  %3472 = vst.msk [vmem:[%s3 + $0x10] sm:$0xff] %vm3469, %v3353
  %3473 = vst.msk [vmem:[%s3 + $0x18] sm:$0xff] %vm3469, %v3358
  %3474 = vst.msk [vmem:[%s3 + $0x20] sm:$0xff] %vm3469, %v3363
  %3475 = vst.msk [vmem:[%s3 + $0x28] sm:$0xff] %vm3469, %v3368
  %3476 = vst.msk [vmem:[%s3 + $0x30] sm:$0xff] %vm3469, %v3373
  %3477 = vst.msk [vmem:[%s3 + $0x38] sm:$0xff] %vm3469, %v3378
  %3478 = vst.msk [vmem:[%s3 + $0x40] sm:$0xff] %vm3469, %v3383
  %3479 = vst.msk [vmem:[%s3 + $0x48] sm:$0xff] %vm3469, %v3388
  %3480 = vst.msk [vmem:[%s3 + $0x50] sm:$0xff] %vm3469, %v3466
  // Predicated region
  $region14: #{listen_net_forward.1} parent=0 // pred_check
    _
  $region15: #{listen_net_forward.1} parent=0 // pred_check_branch
    %3482 = sbr.rel (0) target = $region17
  $region16: #{listen_net_forward.1} parent=0 // pred_region
    _
  $region17: #{listen_net_forward.1} parent=0 // pred_fallthru
    _
  // Predicated region
  $region18: #{listen_net_forward.1} parent=0 // pred_check
    _
  $region19: #{listen_net_forward.1} parent=0 // pred_check_branch
    %3484 = sbr.rel (0) target = $region21
  $region20: #{listen_net_forward.1} parent=0 // pred_region
    _
  $region21: #{listen_net_forward.1} parent=0 // pred_fallthru
    _

</llo_original>
